<compile_context>
chip_gen: v5e
topology: v5e:2x2
jax: 0.10.0
libtpu: 0.0.40
codegen_flags: <defaults>
</compile_context>

<pallas_src>
import math
import numpy as np
import jax
import jax.numpy as jnp
from jax.experimental import pallas as pl
from jax.experimental.pallas import tpu as pltpu

# ---- small static config, consistent with the module's constructor ----
S = 8            # dim 0 of src: the axis self-attention attends over
MAX_LEN = 8      # dim 1 of src: "max_len" == Conv1d in-channels == PE axis (<= 30)
IN_DIM = 16
D_MODEL = 32
NHEAD = 4
DIM_FF = 32
NUM_LAYERS = 2
LN_EPS = 1e-5
PE_TABLE_LEN = 30   # PositionalEncoding default max_len

N_TOK = MAX_LEN * S          # 64 flattened tokens (s-major: n = s*MAX_LEN + l)
PACK_LANES = 128

# ---- row layout of the single packed parameter array (all 8-row aligned) ----
R_WMAP = 0                         # 16 rows, cols 0:32   (sqrt(d_model) * wmap).T
R_ADDVEC = 16                      # 64 rows, cols 0:32   bmap + positional encoding (s-major)
R_WCONV = 80                       # 8 rows,  cols 0:64   Conv1d(max_len,1,1) as (S, N_TOK)
R_ABIAS = 88                       # 64 rows, cols 0:64   same-position additive mask (0 / -1e30)
R_LAYER0 = 152
LAYER_STRIDE = 136                 # 4 weight blocks (32 rows each) + 8 vector rows
O_WQKV = 0                         # 32 rows, cols 0:96   (Q columns pre-scaled by 1/sqrt(dh))
O_WO = 32                          # 32 rows, cols 0:32
O_W1 = 64                          # 32 rows, cols 0:32
O_W2 = 96                          # 32 rows, cols 0:32
O_VEC = 128                        # 8 rows: bqkv(96), bo, ln1g, ln1b, ln2g, ln2b, b1, b2
R_BC = R_LAYER0 + NUM_LAYERS * LAYER_STRIDE   # 424: Conv1d bias replicated across 32 lanes
PACK_ROWS = ((R_BC + 1 + 7) // 8) * 8          # 432


def _layernorm(x, g, b):
    mu = jnp.mean(x, axis=-1, keepdims=True)
    xc = x - mu
    var = jnp.mean(xc * xc, axis=-1, keepdims=True)
    return xc * jax.lax.rsqrt(var + LN_EPS) * g + b


def merging_transformer_kernel(src_ref, p_ref, out_ref):
    d = D_MODEL
    dh = d // NHEAD
    f32 = jnp.float32

    # ---- parameter views (single packed VMEM array, all static slices) ----
    wmap_t = p_ref[R_WMAP:R_WMAP + IN_DIM, 0:d]          # (16, 32), already * sqrt(d_model)
    addvec = p_ref[R_ADDVEC:R_ADDVEC + N_TOK, 0:d]       # (64, 32), bmap + PE, s-major tokens
    abias = p_ref[R_ABIAS:R_ABIAS + N_TOK, 0:N_TOK]      # (64, 64), 0 / -1e30 same-l mask
    wconv = p_ref[R_WCONV:R_WCONV + S, 0:N_TOK]          # (8, 64),  Conv1d as one matmul

    # per-head lane masks over the 32 model lanes (built once, reused by both layers)
    lane = jax.lax.broadcasted_iota(jnp.int32, (N_TOK, d), 1)
    head_mask = [(lane >= h * dh) & (lane < (h + 1) * dh) for h in range(NHEAD)]

    # input projection + (bias + positional encoding); sqrt(d_model) folded into wmap_t
    x = jnp.dot(src_ref[...], wmap_t, preferred_element_type=f32) + addvec     # (64, 32)

    for layer in range(NUM_LAYERS):
        b = R_LAYER0 + layer * LAYER_STRIDE
        vb = b + O_VEC
        wqkv_t = p_ref[b + O_WQKV:b + O_WQKV + d, 0:3 * d]      # (32, 96), Q cols / sqrt(dh)
        wo_t = p_ref[b + O_WO:b + O_WO + d, 0:d]                # (32, 32)
        w1_t = p_ref[b + O_W1:b + O_W1 + d, 0:DIM_FF]           # (32, 32)
        w2_t = p_ref[b + O_W2:b + O_W2 + DIM_FF, 0:d]           # (32, 32)

        # fused QKV projection: one (64,32)@(32,96) matmul + one bias add
        qkv = jnp.dot(x, wqkv_t, preferred_element_type=f32) \
            + p_ref[vb + 0:vb + 1, 0:3 * d]                     # (64, 96)
        q_all = qkv[:, 0:d]            # pre-scaled by 1/sqrt(dh) at pack time
        k_all = qkv[:, d:2 * d]
        v_all = qkv[:, 2 * d:3 * d]

        # masked full-score attention: 2 lane-wide 2-D matmuls per head,
        # no per-head dh=8 slices, no reshapes, no concat.
        ctx = None
        for h in range(NHEAD):
            q_h = jnp.where(head_mask[h], q_all, 0.0)           # zero off-head lanes (VPU)
            v_h = jnp.where(head_mask[h], v_all, 0.0)
            s_h = jax.lax.dot_general(                          # (64, 64) = Q_h @ K^T
                q_h, k_all, (((1,), (1,)), ((), ())),
                preferred_element_type=f32) + abias             # mask applied BEFORE max
            s_h = s_h - jnp.max(s_h, axis=-1, keepdims=True)
            p_h = jnp.exp(s_h)                                  # off-block entries -> exactly 0
            p_h = p_h * pl.reciprocal(jnp.sum(p_h, axis=-1, keepdims=True),
                                      approx=True)
            pv = jnp.dot(p_h, v_h, preferred_element_type=f32)  # only head-h lanes nonzero
            ctx = pv if ctx is None else ctx + pv               # (64, 32) accumulated context

        attn = jnp.dot(ctx, wo_t, preferred_element_type=f32) \
            + p_ref[vb + 1:vb + 2, 0:d]
        x = _layernorm(x + attn, p_ref[vb + 2:vb + 3, 0:d], p_ref[vb + 3:vb + 4, 0:d])

        # FFN as two dense 2-D matmuls
        hid = jnp.maximum(
            jnp.dot(x, w1_t, preferred_element_type=f32)
            + p_ref[vb + 6:vb + 7, 0:DIM_FF], 0.0)
        ff = jnp.dot(hid, w2_t, preferred_element_type=f32) \
            + p_ref[vb + 7:vb + 8, 0:d]
        x = _layernorm(x + ff, p_ref[vb + 4:vb + 5, 0:d], p_ref[vb + 5:vb + 6, 0:d])

    # Conv1d(max_len, 1, 1) expressed as one (8,64)@(64,32) matmul + bias
    out_ref[...] = jnp.dot(wconv, x, preferred_element_type=f32) \
        + p_ref[R_BC:R_BC + 1, 0:d]                             # (S, D_MODEL)


@jax.jit
def merging_transformer(src, packed):
    # src: (S, MAX_LEN, IN_DIM) exactly as the PyTorch forward receives it.
    src2d = src.reshape(S * MAX_LEN, IN_DIM)      # free contiguous s-major flatten
    # For throughput on v6e/v7x one would stack several sequences along the token
    # axis / a "parallel" grid axis; single-forward semantics of the module kept here.
    out = pl.pallas_call(
        merging_transformer_kernel,
        out_shape=jax.ShapeDtypeStruct((S, D_MODEL), jnp.float32),
        in_specs=[pl.BlockSpec(memory_space=pltpu.MemorySpace.VMEM),
                  pl.BlockSpec(memory_space=pltpu.MemorySpace.VMEM)],
        out_specs=pl.BlockSpec(memory_space=pltpu.MemorySpace.VMEM),
    )(src2d, packed)
    return out.reshape(S, 1, D_MODEL)


def pack_params(params):
    """One-time host-side packing of every parameter tensor into a single
    (PACK_ROWS, 128) f32 array -> the kernel needs only 2 input DMAs."""
    f32 = jnp.float32
    d = D_MODEL
    dh = d // NHEAD
    P = jnp.zeros((PACK_ROWS, PACK_LANES), f32)

    # input projection with sqrt(d_model) folded into the weight (not the bias)
    P = P.at[R_WMAP:R_WMAP + IN_DIM, 0:d].set(params['wmap'].T * math.sqrt(d))

    # bmap + positional encoding, pre-tiled over the s-major token grid (l = n % MAX_LEN)
    addvec = jnp.tile(params['pe'] + params['bmap'][0][None, :], (S, 1))
    P = P.at[R_ADDVEC:R_ADDVEC + N_TOK, 0:d].set(addvec)

    # Conv1d(max_len,1,1) as a (S, N_TOK) weight matrix over s-major tokens
    wconv = jnp.kron(jnp.eye(S, dtype=f32), params['wc'][0][None, :].astype(f32))
    P = P.at[R_WCONV:R_WCONV + S, 0:N_TOK].set(wconv)

    # same-position additive attention mask: token n may only attend to token m
    # with the same MAX_LEN index (n % MAX_LEN == m % MAX_LEN); -1e30 elsewhere.
    tok_l = np.arange(N_TOK) % MAX_LEN
    abias = np.where(tok_l[:, None] == tok_l[None, :], 0.0, -1e30).astype(np.float32)
    P = P.at[R_ABIAS:R_ABIAS + N_TOK, 0:N_TOK].set(jnp.asarray(abias))

    inv_sqrt_dh = 1.0 / math.sqrt(dh)
    for l in range(NUM_LAYERS):
        b = R_LAYER0 + l * LAYER_STRIDE
        wqkv_t = params['wqkv'][l].T                        # (d, 3d); cols 0:d are Q
        wqkv_t = wqkv_t.at[:, 0:d].multiply(inv_sqrt_dh)    # fold 1/sqrt(d_head) into Q
        bqkv = params['bqkv'][l, 0].at[0:d].multiply(inv_sqrt_dh)
        P = P.at[b + O_WQKV:b + O_WQKV + d, 0:3 * d].set(wqkv_t)
        P = P.at[b + O_WO:b + O_WO + d, 0:d].set(params['wo'][l].T)
        P = P.at[b + O_W1:b + O_W1 + d, 0:DIM_FF].set(params['w1'][l].T)
        P = P.at[b + O_W2:b + O_W2 + DIM_FF, 0:d].set(params['w2'][l].T)
        vb = b + O_VEC
        P = P.at[vb + 0, 0:3 * d].set(bqkv)
        P = P.at[vb + 1, 0:d].set(params['bo'][l, 0])
        P = P.at[vb + 2, 0:d].set(params['ln1g'][l, 0])
        P = P.at[vb + 3, 0:d].set(params['ln1b'][l, 0])
        P = P.at[vb + 4, 0:d].set(params['ln2g'][l, 0])
        P = P.at[vb + 5, 0:d].set(params['ln2b'][l, 0])
        P = P.at[vb + 6, 0:DIM_FF].set(params['b1'][l, 0])
        P = P.at[vb + 7, 0:d].set(params['b2'][l, 0])

    P = P.at[R_BC, 0:d].set(jnp.full((d,), params['bc'][0, 0], f32))
    return P


def init_params(key):
    f32 = jnp.float32
    d, nl, dff = D_MODEL, NUM_LAYERS, DIM_FF
    ks = jax.random.split(key, 12)
    params = {
        'wmap': jax.random.normal(ks[0], (d, IN_DIM), f32) / math.sqrt(IN_DIM),
        'bmap': jax.random.normal(ks[1], (1, d), f32) * 0.02,
        'wqkv': jax.random.normal(ks[2], (nl, 3 * d, d), f32) / math.sqrt(d),
        'bqkv': jax.random.normal(ks[3], (nl, 1, 3 * d), f32) * 0.02,
        'wo':   jax.random.normal(ks[4], (nl, d, d), f32) / math.sqrt(d),
        'bo':   jax.random.normal(ks[5], (nl, 1, d), f32) * 0.02,
        'ln1g': jnp.ones((nl, 1, d), f32), 'ln1b': jnp.zeros((nl, 1, d), f32),
        'ln2g': jnp.ones((nl, 1, d), f32), 'ln2b': jnp.zeros((nl, 1, d), f32),
        'w1':   jax.random.normal(ks[6], (nl, dff, d), f32) / math.sqrt(d),
        'b1':   jax.random.normal(ks[7], (nl, 1, dff), f32) * 0.02,
        'w2':   jax.random.normal(ks[8], (nl, d, dff), f32) / math.sqrt(dff),
        'b2':   jax.random.normal(ks[9], (nl, 1, d), f32) * 0.02,
        'wc':   jax.random.normal(ks[10], (1, MAX_LEN), f32) / MAX_LEN,
        'bc':   jax.random.normal(ks[11], (1, 1), f32) * 0.02,
    }
    # sinusoidal positional encoding table (module builds max_len=30, forward slices :MAX_LEN)
    pos = jnp.arange(PE_TABLE_LEN, dtype=f32)[:, None]
    div = jnp.exp(jnp.arange(0, d, 2, dtype=f32) * (-math.log(10000.0) / d))
    pe = jnp.zeros((PE_TABLE_LEN, d), f32)
    pe = pe.at[:, 0::2].set(jnp.sin(pos * div))
    pe = pe.at[:, 1::2].set(jnp.cos(pos * div))
    params['pe'] = pe[:MAX_LEN]
    return params


def reference_forward(src, params):
    """Pure-JAX reference in the original PyTorch (S, MAX_LEN, feat) layout."""
    d, dh = D_MODEL, D_MODEL // NHEAD

    def ln(y, g, b):
        mu = jnp.mean(y, -1, keepdims=True)
        var = jnp.mean((y - mu) ** 2, -1, keepdims=True)
        return (y - mu) / jnp.sqrt(var + LN_EPS) * g + b

    x = src * math.sqrt(d)
    x = jnp.einsum('sli,di->sld', x, params['wmap']) + params['bmap'][0]
    x = x + params['pe'][None, :, :]
    for layer in range(NUM_LAYERS):
        wqkv, bqkv = params['wqkv'][layer], params['bqkv'][layer, 0]
        q = jnp.einsum('sld,ed->sle', x, wqkv[:d]) + bqkv[:d]
        k = jnp.einsum('sld,ed->sle', x, wqkv[d:2 * d]) + bqkv[d:2 * d]
        v = jnp.einsum('sld,ed->sle', x, wqkv[2 * d:]) + bqkv[2 * d:]
        heads = []
        for h in range(NHEAD):
            lo, hi = h * dh, (h + 1) * dh
            scores = jnp.einsum('sld,tld->lst', q[..., lo:hi], k[..., lo:hi]) / math.sqrt(dh)
            p = jax.nn.softmax(scores, axis=-1)
            heads.append(jnp.einsum('lst,tld->sld', p, v[..., lo:hi]))
        ctx = jnp.concatenate(heads, axis=-1)
        attn = jnp.einsum('sld,ed->sle', ctx, params['wo'][layer]) + params['bo'][layer, 0]
        x = ln(x + attn, params['ln1g'][layer, 0], params['ln1b'][layer, 0])
        hid = jax.nn.relu(jnp.einsum('sld,fd->slf', x, params['w1'][layer]) + params['b1'][layer, 0])
        ff = jnp.einsum('slf,df->sld', hid, params['w2'][layer]) + params['b2'][layer, 0]
        x = ln(x + ff, params['ln2g'][layer, 0], params['ln2b'][layer, 0])
    out = jnp.sum(x * params['wc'][0][None, :, None], axis=1) + params['bc'][0, 0]
    return out[:, None, :]


if __name__ == "__main__":
    key = jax.random.PRNGKey(0)
    k_src, k_par = jax.random.split(key)
    src = jax.random.normal(k_src, (S, MAX_LEN, IN_DIM), jnp.float32)
    params = init_params(k_par)
    packed = pack_params(params)          # one-time host-side packing

    out = merging_transformer(src, packed)
    jax.block_until_ready(out)

    ref = reference_forward(src, params)
    assert out.shape == (S, 1, D_MODEL), out.shape
    assert bool(jnp.all(jnp.isfinite(out)))
    err = float(jnp.max(jnp.abs(out - ref)))
    assert bool(jnp.allclose(out, ref, rtol=1e-2, atol=1e-2)), err
    print("KERNEL_OK")
</pallas_src>

<mosaic_0001>
module attributes {stable_mosaic.version = 11 : i64} {
  func.func @merging_transformer_kernel(%arg0: memref<64x16xf32, #tpu.memory_space<vmem>>, %arg1: memref<432x128xf32, #tpu.memory_space<vmem>>, %arg2: memref<8x32xf32, #tpu.memory_space<vmem>>) attributes {dimension_semantics = [], scalar_prefetch = 0 : i64, scratch_operands = 0 : i64, tpu.core_type = #tpu.core_type<tc>} {
    %c0 = arith.constant 0 : index
    %c0_0 = arith.constant 0 : index
    %0 = vector.load %arg1[%c0, %c0_0] : memref<432x128xf32, #tpu.memory_space<vmem>>, vector<16x32xf32>
    %c16 = arith.constant 16 : index
    %c0_1 = arith.constant 0 : index
    %1 = vector.load %arg1[%c16, %c0_1] : memref<432x128xf32, #tpu.memory_space<vmem>>, vector<64x32xf32>
    %c88 = arith.constant 88 : index
    %c0_2 = arith.constant 0 : index
    %2 = vector.load %arg1[%c88, %c0_2] : memref<432x128xf32, #tpu.memory_space<vmem>>, vector<64x64xf32>
    %c80 = arith.constant 80 : index
    %c0_3 = arith.constant 0 : index
    %3 = vector.load %arg1[%c80, %c0_3] : memref<432x128xf32, #tpu.memory_space<vmem>>, vector<8x64xf32>
    %4 = tpu.iota {dimensions = array<i32: 1>} : vector<64x32xi32>
    %c0_i32 = arith.constant 0 : i32
    %5 = vector.broadcast %c0_i32 : i32 to vector<64x32xi32>
    %6 = arith.cmpi sge, %4, %5 : vector<64x32xi32>
    %c8_i32 = arith.constant 8 : i32
    %7 = vector.broadcast %c8_i32 : i32 to vector<64x32xi32>
    %8 = arith.cmpi slt, %4, %7 : vector<64x32xi32>
    %9 = arith.andi %6, %8 : vector<64x32xi1>
    %c8_i32_4 = arith.constant 8 : i32
    %10 = vector.broadcast %c8_i32_4 : i32 to vector<64x32xi32>
    %11 = arith.cmpi sge, %4, %10 : vector<64x32xi32>
    %c16_i32 = arith.constant 16 : i32
    %12 = vector.broadcast %c16_i32 : i32 to vector<64x32xi32>
    %13 = arith.cmpi slt, %4, %12 : vector<64x32xi32>
    %14 = arith.andi %11, %13 : vector<64x32xi1>
    %c16_i32_5 = arith.constant 16 : i32
    %15 = vector.broadcast %c16_i32_5 : i32 to vector<64x32xi32>
    %16 = arith.cmpi sge, %4, %15 : vector<64x32xi32>
    %c24_i32 = arith.constant 24 : i32
    %17 = vector.broadcast %c24_i32 : i32 to vector<64x32xi32>
    %18 = arith.cmpi slt, %4, %17 : vector<64x32xi32>
    %19 = arith.andi %16, %18 : vector<64x32xi1>
    %c24_i32_6 = arith.constant 24 : i32
    %20 = vector.broadcast %c24_i32_6 : i32 to vector<64x32xi32>
    %21 = arith.cmpi sge, %4, %20 : vector<64x32xi32>
    %c32_i32 = arith.constant 32 : i32
    %22 = vector.broadcast %c32_i32 : i32 to vector<64x32xi32>
    %23 = arith.cmpi slt, %4, %22 : vector<64x32xi32>
    %24 = arith.andi %21, %23 : vector<64x32xi1>
    %c0_7 = arith.constant 0 : index
    %c0_8 = arith.constant 0 : index
    %25 = vector.load %arg0[%c0_7, %c0_8] : memref<64x16xf32, #tpu.memory_space<vmem>>, vector<64x16xf32>
    %cst = arith.constant dense<0.000000e+00> : vector<64x32xf32>
    %26 = tpu.matmul %25, %0, %cst {dimension_numbers = #tpu.dot_dimension_numbers<[1], [0], [0], [1], [0, 0, 1, 1], [], []>} : vector<64x16xf32>, vector<16x32xf32>, vector<64x32xf32> -> vector<64x32xf32>
    %27 = arith.addf %26, %1 : vector<64x32xf32>
    %c152 = arith.constant 152 : index
    %c0_9 = arith.constant 0 : index
    %28 = vector.load %arg1[%c152, %c0_9] : memref<432x128xf32, #tpu.memory_space<vmem>>, vector<32x96xf32>
    %c184 = arith.constant 184 : index
    %c0_10 = arith.constant 0 : index
    %29 = vector.load %arg1[%c184, %c0_10] : memref<432x128xf32, #tpu.memory_space<vmem>>, vector<32x32xf32>
    %c216 = arith.constant 216 : index
    %c0_11 = arith.constant 0 : index
    %30 = vector.load %arg1[%c216, %c0_11] : memref<432x128xf32, #tpu.memory_space<vmem>>, vector<32x32xf32>
    %c248 = arith.constant 248 : index
    %c0_12 = arith.constant 0 : index
    %31 = vector.load %arg1[%c248, %c0_12] : memref<432x128xf32, #tpu.memory_space<vmem>>, vector<32x32xf32>
    %cst_13 = arith.constant dense<0.000000e+00> : vector<64x96xf32>
    %32 = tpu.matmul %27, %28, %cst_13 {dimension_numbers = #tpu.dot_dimension_numbers<[1], [0], [0], [1], [0, 0, 1, 1], [], []>} : vector<64x32xf32>, vector<32x96xf32>, vector<64x96xf32> -> vector<64x96xf32>
    %c280 = arith.constant 280 : index
    %c0_14 = arith.constant 0 : index
    %33 = vector.load %arg1[%c280, %c0_14] : memref<432x128xf32, #tpu.memory_space<vmem>>, vector<1x96xf32>
    %34 = vector.broadcast %33 : vector<1x96xf32> to vector<64x96xf32>
    %35 = arith.addf %32, %34 : vector<64x96xf32>
    %36 = vector.extract_strided_slice %35 {offsets = [0, 0], sizes = [64, 32], strides = [1, 1]} : vector<64x96xf32> to vector<64x32xf32>
    %37 = vector.extract_strided_slice %35 {offsets = [0, 32], sizes = [64, 32], strides = [1, 1]} : vector<64x96xf32> to vector<64x32xf32>
    %38 = vector.extract_strided_slice %35 {offsets = [0, 64], sizes = [64, 32], strides = [1, 1]} : vector<64x96xf32> to vector<64x32xf32>
    %cst_15 = arith.constant 0.000000e+00 : f32
    %39 = vector.broadcast %cst_15 : f32 to vector<64x32xf32>
    %40 = arith.select %9, %36, %39 : vector<64x32xi1>, vector<64x32xf32>
    %cst_16 = arith.constant 0.000000e+00 : f32
    %41 = vector.broadcast %cst_16 : f32 to vector<64x32xf32>
    %42 = arith.select %9, %38, %41 : vector<64x32xi1>, vector<64x32xf32>
    %cst_17 = arith.constant dense<0.000000e+00> : vector<64x64xf32>
    %43 = tpu.matmul %40, %37, %cst_17 {dimension_numbers = #tpu.dot_dimension_numbers<[1], [1], [0], [0], [0, 0, 1, 0], [], []>} : vector<64x32xf32>, vector<64x32xf32>, vector<64x64xf32> -> vector<64x64xf32>
    %44 = arith.addf %43, %2 : vector<64x64xf32>
    %cst_18 = arith.constant dense<0xFF800000> : vector<64xf32>
    %45 = vector.multi_reduction <maximumf>, %44, %cst_18 [1] : vector<64x64xf32> to vector<64xf32>
    %46 = vector.shape_cast %45 : vector<64xf32> to vector<64x1xf32>
    %47 = vector.broadcast %46 : vector<64x1xf32> to vector<64x64xf32>
    %48 = arith.subf %44, %47 : vector<64x64xf32>
    %49 = math.exp %48 : vector<64x64xf32>
    %cst_19 = arith.constant dense<0.000000e+00> : vector<64xf32>
    %50 = vector.multi_reduction <add>, %49, %cst_19 [1] : vector<64x64xf32> to vector<64xf32>
    %51 = vector.shape_cast %50 : vector<64xf32> to vector<64x1xf32>
    %52 = tpu.reciprocal %51 {approx = true} : vector<64x1xf32> -> vector<64x1xf32>
    %53 = vector.broadcast %52 : vector<64x1xf32> to vector<64x64xf32>
    %54 = arith.mulf %49, %53 : vector<64x64xf32>
    %cst_20 = arith.constant dense<0.000000e+00> : vector<64x32xf32>
    %55 = tpu.matmul %54, %42, %cst_20 {dimension_numbers = #tpu.dot_dimension_numbers<[1], [0], [0], [1], [0, 0, 1, 1], [], []>} : vector<64x64xf32>, vector<64x32xf32>, vector<64x32xf32> -> vector<64x32xf32>
    %cst_21 = arith.constant 0.000000e+00 : f32
    %56 = vector.broadcast %cst_21 : f32 to vector<64x32xf32>
    %57 = arith.select %14, %36, %56 : vector<64x32xi1>, vector<64x32xf32>
    %cst_22 = arith.constant 0.000000e+00 : f32
    %58 = vector.broadcast %cst_22 : f32 to vector<64x32xf32>
    %59 = arith.select %14, %38, %58 : vector<64x32xi1>, vector<64x32xf32>
    %cst_23 = arith.constant dense<0.000000e+00> : vector<64x64xf32>
    %60 = tpu.matmul %57, %37, %cst_23 {dimension_numbers = #tpu.dot_dimension_numbers<[1], [1], [0], [0], [0, 0, 1, 0], [], []>} : vector<64x32xf32>, vector<64x32xf32>, vector<64x64xf32> -> vector<64x64xf32>
    %61 = arith.addf %60, %2 : vector<64x64xf32>
    %cst_24 = arith.constant dense<0xFF800000> : vector<64xf32>
    %62 = vector.multi_reduction <maximumf>, %61, %cst_24 [1] : vector<64x64xf32> to vector<64xf32>
    %63 = vector.shape_cast %62 : vector<64xf32> to vector<64x1xf32>
    %64 = vector.broadcast %63 : vector<64x1xf32> to vector<64x64xf32>
    %65 = arith.subf %61, %64 : vector<64x64xf32>
    %66 = math.exp %65 : vector<64x64xf32>
    %cst_25 = arith.constant dense<0.000000e+00> : vector<64xf32>
    %67 = vector.multi_reduction <add>, %66, %cst_25 [1] : vector<64x64xf32> to vector<64xf32>
    %68 = vector.shape_cast %67 : vector<64xf32> to vector<64x1xf32>
    %69 = tpu.reciprocal %68 {approx = true} : vector<64x1xf32> -> vector<64x1xf32>
    %70 = vector.broadcast %69 : vector<64x1xf32> to vector<64x64xf32>
    %71 = arith.mulf %66, %70 : vector<64x64xf32>
    %cst_26 = arith.constant dense<0.000000e+00> : vector<64x32xf32>
    %72 = tpu.matmul %71, %59, %cst_26 {dimension_numbers = #tpu.dot_dimension_numbers<[1], [0], [0], [1], [0, 0, 1, 1], [], []>} : vector<64x64xf32>, vector<64x32xf32>, vector<64x32xf32> -> vector<64x32xf32>
    %73 = arith.addf %55, %72 : vector<64x32xf32>
    %cst_27 = arith.constant 0.000000e+00 : f32
    %74 = vector.broadcast %cst_27 : f32 to vector<64x32xf32>
    %75 = arith.select %19, %36, %74 : vector<64x32xi1>, vector<64x32xf32>
    %cst_28 = arith.constant 0.000000e+00 : f32
    %76 = vector.broadcast %cst_28 : f32 to vector<64x32xf32>
    %77 = arith.select %19, %38, %76 : vector<64x32xi1>, vector<64x32xf32>
    %cst_29 = arith.constant dense<0.000000e+00> : vector<64x64xf32>
    %78 = tpu.matmul %75, %37, %cst_29 {dimension_numbers = #tpu.dot_dimension_numbers<[1], [1], [0], [0], [0, 0, 1, 0], [], []>} : vector<64x32xf32>, vector<64x32xf32>, vector<64x64xf32> -> vector<64x64xf32>
    %79 = arith.addf %78, %2 : vector<64x64xf32>
    %cst_30 = arith.constant dense<0xFF800000> : vector<64xf32>
    %80 = vector.multi_reduction <maximumf>, %79, %cst_30 [1] : vector<64x64xf32> to vector<64xf32>
    %81 = vector.shape_cast %80 : vector<64xf32> to vector<64x1xf32>
    %82 = vector.broadcast %81 : vector<64x1xf32> to vector<64x64xf32>
    %83 = arith.subf %79, %82 : vector<64x64xf32>
    %84 = math.exp %83 : vector<64x64xf32>
    %cst_31 = arith.constant dense<0.000000e+00> : vector<64xf32>
    %85 = vector.multi_reduction <add>, %84, %cst_31 [1] : vector<64x64xf32> to vector<64xf32>
    %86 = vector.shape_cast %85 : vector<64xf32> to vector<64x1xf32>
    %87 = tpu.reciprocal %86 {approx = true} : vector<64x1xf32> -> vector<64x1xf32>
    %88 = vector.broadcast %87 : vector<64x1xf32> to vector<64x64xf32>
    %89 = arith.mulf %84, %88 : vector<64x64xf32>
    %cst_32 = arith.constant dense<0.000000e+00> : vector<64x32xf32>
    %90 = tpu.matmul %89, %77, %cst_32 {dimension_numbers = #tpu.dot_dimension_numbers<[1], [0], [0], [1], [0, 0, 1, 1], [], []>} : vector<64x64xf32>, vector<64x32xf32>, vector<64x32xf32> -> vector<64x32xf32>
    %91 = arith.addf %73, %90 : vector<64x32xf32>
    %cst_33 = arith.constant 0.000000e+00 : f32
    %92 = vector.broadcast %cst_33 : f32 to vector<64x32xf32>
    %93 = arith.select %24, %36, %92 : vector<64x32xi1>, vector<64x32xf32>
    %cst_34 = arith.constant 0.000000e+00 : f32
    %94 = vector.broadcast %cst_34 : f32 to vector<64x32xf32>
    %95 = arith.select %24, %38, %94 : vector<64x32xi1>, vector<64x32xf32>
    %cst_35 = arith.constant dense<0.000000e+00> : vector<64x64xf32>
    %96 = tpu.matmul %93, %37, %cst_35 {dimension_numbers = #tpu.dot_dimension_numbers<[1], [1], [0], [0], [0, 0, 1, 0], [], []>} : vector<64x32xf32>, vector<64x32xf32>, vector<64x64xf32> -> vector<64x64xf32>
    %97 = arith.addf %96, %2 : vector<64x64xf32>
    %cst_36 = arith.constant dense<0xFF800000> : vector<64xf32>
    %98 = vector.multi_reduction <maximumf>, %97, %cst_36 [1] : vector<64x64xf32> to vector<64xf32>
    %99 = vector.shape_cast %98 : vector<64xf32> to vector<64x1xf32>
    %100 = vector.broadcast %99 : vector<64x1xf32> to vector<64x64xf32>
    %101 = arith.subf %97, %100 : vector<64x64xf32>
    %102 = math.exp %101 : vector<64x64xf32>
    %cst_37 = arith.constant dense<0.000000e+00> : vector<64xf32>
    %103 = vector.multi_reduction <add>, %102, %cst_37 [1] : vector<64x64xf32> to vector<64xf32>
    %104 = vector.shape_cast %103 : vector<64xf32> to vector<64x1xf32>
    %105 = tpu.reciprocal %104 {approx = true} : vector<64x1xf32> -> vector<64x1xf32>
    %106 = vector.broadcast %105 : vector<64x1xf32> to vector<64x64xf32>
    %107 = arith.mulf %102, %106 : vector<64x64xf32>
    %cst_38 = arith.constant dense<0.000000e+00> : vector<64x32xf32>
    %108 = tpu.matmul %107, %95, %cst_38 {dimension_numbers = #tpu.dot_dimension_numbers<[1], [0], [0], [1], [0, 0, 1, 1], [], []>} : vector<64x64xf32>, vector<64x32xf32>, vector<64x32xf32> -> vector<64x32xf32>
    %109 = arith.addf %91, %108 : vector<64x32xf32>
    %cst_39 = arith.constant dense<0.000000e+00> : vector<64x32xf32>
    %110 = tpu.matmul %109, %29, %cst_39 {dimension_numbers = #tpu.dot_dimension_numbers<[1], [0], [0], [1], [0, 0, 1, 1], [], []>} : vector<64x32xf32>, vector<32x32xf32>, vector<64x32xf32> -> vector<64x32xf32>
    %c281 = arith.constant 281 : index
    %c0_40 = arith.constant 0 : index
    %111 = vector.load %arg1[%c281, %c0_40] : memref<432x128xf32, #tpu.memory_space<vmem>>, vector<1x32xf32>
    %112 = vector.broadcast %111 : vector<1x32xf32> to vector<64x32xf32>
    %113 = arith.addf %110, %112 : vector<64x32xf32>
    %114 = arith.addf %27, %113 : vector<64x32xf32>
    %c282 = arith.constant 282 : index
    %c0_41 = arith.constant 0 : index
    %115 = vector.load %arg1[%c282, %c0_41] : memref<432x128xf32, #tpu.memory_space<vmem>>, vector<1x32xf32>
    %c283 = arith.constant 283 : index
    %c0_42 = arith.constant 0 : index
    %116 = vector.load %arg1[%c283, %c0_42] : memref<432x128xf32, #tpu.memory_space<vmem>>, vector<1x32xf32>
    %cst_43 = arith.constant dense<0.000000e+00> : vector<64xf32>
    %117 = vector.multi_reduction <add>, %114, %cst_43 [1] : vector<64x32xf32> to vector<64xf32>
    %118 = vector.shape_cast %117 : vector<64xf32> to vector<64x1xf32>
    %cst_44 = arith.constant 3.200000e+01 : f32
    %119 = vector.broadcast %cst_44 : f32 to vector<64x1xf32>
    %120 = arith.divf %118, %119 : vector<64x1xf32>
    %121 = vector.broadcast %120 : vector<64x1xf32> to vector<64x32xf32>
    %122 = arith.subf %114, %121 : vector<64x32xf32>
    %123 = arith.mulf %122, %122 : vector<64x32xf32>
    %cst_45 = arith.constant dense<0.000000e+00> : vector<64xf32>
    %124 = vector.multi_reduction <add>, %123, %cst_45 [1] : vector<64x32xf32> to vector<64xf32>
    %125 = vector.shape_cast %124 : vector<64xf32> to vector<64x1xf32>
    %cst_46 = arith.constant 3.200000e+01 : f32
    %126 = vector.broadcast %cst_46 : f32 to vector<64x1xf32>
    %127 = arith.divf %125, %126 : vector<64x1xf32>
    %cst_47 = arith.constant 9.99999974E-6 : f32
    %128 = vector.broadcast %cst_47 : f32 to vector<64x1xf32>
    %129 = arith.addf %127, %128 : vector<64x1xf32>
    %130 = math.rsqrt %129 : vector<64x1xf32>
    %131 = vector.broadcast %130 : vector<64x1xf32> to vector<64x32xf32>
    %132 = arith.mulf %122, %131 : vector<64x32xf32>
    %133 = vector.broadcast %115 : vector<1x32xf32> to vector<64x32xf32>
    %134 = arith.mulf %132, %133 : vector<64x32xf32>
    %135 = vector.broadcast %116 : vector<1x32xf32> to vector<64x32xf32>
    %136 = arith.addf %134, %135 : vector<64x32xf32>
    %cst_48 = arith.constant dense<0.000000e+00> : vector<64x32xf32>
    %137 = tpu.matmul %136, %30, %cst_48 {dimension_numbers = #tpu.dot_dimension_numbers<[1], [0], [0], [1], [0, 0, 1, 1], [], []>} : vector<64x32xf32>, vector<32x32xf32>, vector<64x32xf32> -> vector<64x32xf32>
    %c286 = arith.constant 286 : index
    %c0_49 = arith.constant 0 : index
    %138 = vector.load %arg1[%c286, %c0_49] : memref<432x128xf32, #tpu.memory_space<vmem>>, vector<1x32xf32>
    %139 = vector.broadcast %138 : vector<1x32xf32> to vector<64x32xf32>
    %140 = arith.addf %137, %139 : vector<64x32xf32>
    %cst_50 = arith.constant 0.000000e+00 : f32
    %141 = vector.broadcast %cst_50 : f32 to vector<64x32xf32>
    %142 = arith.maximumf %140, %141 : vector<64x32xf32>
    %cst_51 = arith.constant dense<0.000000e+00> : vector<64x32xf32>
    %143 = tpu.matmul %142, %31, %cst_51 {dimension_numbers = #tpu.dot_dimension_numbers<[1], [0], [0], [1], [0, 0, 1, 1], [], []>} : vector<64x32xf32>, vector<32x32xf32>, vector<64x32xf32> -> vector<64x32xf32>
    %c287 = arith.constant 287 : index
    %c0_52 = arith.constant 0 : index
    %144 = vector.load %arg1[%c287, %c0_52] : memref<432x128xf32, #tpu.memory_space<vmem>>, vector<1x32xf32>
    %145 = vector.broadcast %144 : vector<1x32xf32> to vector<64x32xf32>
    %146 = arith.addf %143, %145 : vector<64x32xf32>
    %147 = arith.addf %136, %146 : vector<64x32xf32>
    %c284 = arith.constant 284 : index
    %c0_53 = arith.constant 0 : index
    %148 = vector.load %arg1[%c284, %c0_53] : memref<432x128xf32, #tpu.memory_space<vmem>>, vector<1x32xf32>
    %c285 = arith.constant 285 : index
    %c0_54 = arith.constant 0 : index
    %149 = vector.load %arg1[%c285, %c0_54] : memref<432x128xf32, #tpu.memory_space<vmem>>, vector<1x32xf32>
    %cst_55 = arith.constant dense<0.000000e+00> : vector<64xf32>
    %150 = vector.multi_reduction <add>, %147, %cst_55 [1] : vector<64x32xf32> to vector<64xf32>
    %151 = vector.shape_cast %150 : vector<64xf32> to vector<64x1xf32>
    %cst_56 = arith.constant 3.200000e+01 : f32
    %152 = vector.broadcast %cst_56 : f32 to vector<64x1xf32>
    %153 = arith.divf %151, %152 : vector<64x1xf32>
    %154 = vector.broadcast %153 : vector<64x1xf32> to vector<64x32xf32>
    %155 = arith.subf %147, %154 : vector<64x32xf32>
    %156 = arith.mulf %155, %155 : vector<64x32xf32>
    %cst_57 = arith.constant dense<0.000000e+00> : vector<64xf32>
    %157 = vector.multi_reduction <add>, %156, %cst_57 [1] : vector<64x32xf32> to vector<64xf32>
    %158 = vector.shape_cast %157 : vector<64xf32> to vector<64x1xf32>
    %cst_58 = arith.constant 3.200000e+01 : f32
    %159 = vector.broadcast %cst_58 : f32 to vector<64x1xf32>
    %160 = arith.divf %158, %159 : vector<64x1xf32>
    %cst_59 = arith.constant 9.99999974E-6 : f32
    %161 = vector.broadcast %cst_59 : f32 to vector<64x1xf32>
    %162 = arith.addf %160, %161 : vector<64x1xf32>
    %163 = math.rsqrt %162 : vector<64x1xf32>
    %164 = vector.broadcast %163 : vector<64x1xf32> to vector<64x32xf32>
    %165 = arith.mulf %155, %164 : vector<64x32xf32>
    %166 = vector.broadcast %148 : vector<1x32xf32> to vector<64x32xf32>
    %167 = arith.mulf %165, %166 : vector<64x32xf32>
    %168 = vector.broadcast %149 : vector<1x32xf32> to vector<64x32xf32>
    %169 = arith.addf %167, %168 : vector<64x32xf32>
    %c288 = arith.constant 288 : index
    %c0_60 = arith.constant 0 : index
    %170 = vector.load %arg1[%c288, %c0_60] : memref<432x128xf32, #tpu.memory_space<vmem>>, vector<32x96xf32>
    %c320 = arith.constant 320 : index
    %c0_61 = arith.constant 0 : index
    %171 = vector.load %arg1[%c320, %c0_61] : memref<432x128xf32, #tpu.memory_space<vmem>>, vector<32x32xf32>
    %c352 = arith.constant 352 : index
    %c0_62 = arith.constant 0 : index
    %172 = vector.load %arg1[%c352, %c0_62] : memref<432x128xf32, #tpu.memory_space<vmem>>, vector<32x32xf32>
    %c384 = arith.constant 384 : index
    %c0_63 = arith.constant 0 : index
    %173 = vector.load %arg1[%c384, %c0_63] : memref<432x128xf32, #tpu.memory_space<vmem>>, vector<32x32xf32>
    %cst_64 = arith.constant dense<0.000000e+00> : vector<64x96xf32>
    %174 = tpu.matmul %169, %170, %cst_64 {dimension_numbers = #tpu.dot_dimension_numbers<[1], [0], [0], [1], [0, 0, 1, 1], [], []>} : vector<64x32xf32>, vector<32x96xf32>, vector<64x96xf32> -> vector<64x96xf32>
    %c416 = arith.constant 416 : index
    %c0_65 = arith.constant 0 : index
    %175 = vector.load %arg1[%c416, %c0_65] : memref<432x128xf32, #tpu.memory_space<vmem>>, vector<1x96xf32>
    %176 = vector.broadcast %175 : vector<1x96xf32> to vector<64x96xf32>
    %177 = arith.addf %174, %176 : vector<64x96xf32>
    %178 = vector.extract_strided_slice %177 {offsets = [0, 0], sizes = [64, 32], strides = [1, 1]} : vector<64x96xf32> to vector<64x32xf32>
    %179 = vector.extract_strided_slice %177 {offsets = [0, 32], sizes = [64, 32], strides = [1, 1]} : vector<64x96xf32> to vector<64x32xf32>
    %180 = vector.extract_strided_slice %177 {offsets = [0, 64], sizes = [64, 32], strides = [1, 1]} : vector<64x96xf32> to vector<64x32xf32>
    %cst_66 = arith.constant 0.000000e+00 : f32
    %181 = vector.broadcast %cst_66 : f32 to vector<64x32xf32>
    %182 = arith.select %9, %178, %181 : vector<64x32xi1>, vector<64x32xf32>
    %cst_67 = arith.constant 0.000000e+00 : f32
    %183 = vector.broadcast %cst_67 : f32 to vector<64x32xf32>
    %184 = arith.select %9, %180, %183 : vector<64x32xi1>, vector<64x32xf32>
    %cst_68 = arith.constant dense<0.000000e+00> : vector<64x64xf32>
    %185 = tpu.matmul %182, %179, %cst_68 {dimension_numbers = #tpu.dot_dimension_numbers<[1], [1], [0], [0], [0, 0, 1, 0], [], []>} : vector<64x32xf32>, vector<64x32xf32>, vector<64x64xf32> -> vector<64x64xf32>
    %186 = arith.addf %185, %2 : vector<64x64xf32>
    %cst_69 = arith.constant dense<0xFF800000> : vector<64xf32>
    %187 = vector.multi_reduction <maximumf>, %186, %cst_69 [1] : vector<64x64xf32> to vector<64xf32>
    %188 = vector.shape_cast %187 : vector<64xf32> to vector<64x1xf32>
    %189 = vector.broadcast %188 : vector<64x1xf32> to vector<64x64xf32>
    %190 = arith.subf %186, %189 : vector<64x64xf32>
    %191 = math.exp %190 : vector<64x64xf32>
    %cst_70 = arith.constant dense<0.000000e+00> : vector<64xf32>
    %192 = vector.multi_reduction <add>, %191, %cst_70 [1] : vector<64x64xf32> to vector<64xf32>
    %193 = vector.shape_cast %192 : vector<64xf32> to vector<64x1xf32>
    %194 = tpu.reciprocal %193 {approx = true} : vector<64x1xf32> -> vector<64x1xf32>
    %195 = vector.broadcast %194 : vector<64x1xf32> to vector<64x64xf32>
    %196 = arith.mulf %191, %195 : vector<64x64xf32>
    %cst_71 = arith.constant dense<0.000000e+00> : vector<64x32xf32>
    %197 = tpu.matmul %196, %184, %cst_71 {dimension_numbers = #tpu.dot_dimension_numbers<[1], [0], [0], [1], [0, 0, 1, 1], [], []>} : vector<64x64xf32>, vector<64x32xf32>, vector<64x32xf32> -> vector<64x32xf32>
    %cst_72 = arith.constant 0.000000e+00 : f32
    %198 = vector.broadcast %cst_72 : f32 to vector<64x32xf32>
    %199 = arith.select %14, %178, %198 : vector<64x32xi1>, vector<64x32xf32>
    %cst_73 = arith.constant 0.000000e+00 : f32
    %200 = vector.broadcast %cst_73 : f32 to vector<64x32xf32>
    %201 = arith.select %14, %180, %200 : vector<64x32xi1>, vector<64x32xf32>
    %cst_74 = arith.constant dense<0.000000e+00> : vector<64x64xf32>
    %202 = tpu.matmul %199, %179, %cst_74 {dimension_numbers = #tpu.dot_dimension_numbers<[1], [1], [0], [0], [0, 0, 1, 0], [], []>} : vector<64x32xf32>, vector<64x32xf32>, vector<64x64xf32> -> vector<64x64xf32>
    %203 = arith.addf %202, %2 : vector<64x64xf32>
    %cst_75 = arith.constant dense<0xFF800000> : vector<64xf32>
    %204 = vector.multi_reduction <maximumf>, %203, %cst_75 [1] : vector<64x64xf32> to vector<64xf32>
    %205 = vector.shape_cast %204 : vector<64xf32> to vector<64x1xf32>
    %206 = vector.broadcast %205 : vector<64x1xf32> to vector<64x64xf32>
    %207 = arith.subf %203, %206 : vector<64x64xf32>
    %208 = math.exp %207 : vector<64x64xf32>
    %cst_76 = arith.constant dense<0.000000e+00> : vector<64xf32>
    %209 = vector.multi_reduction <add>, %208, %cst_76 [1] : vector<64x64xf32> to vector<64xf32>
    %210 = vector.shape_cast %209 : vector<64xf32> to vector<64x1xf32>
    %211 = tpu.reciprocal %210 {approx = true} : vector<64x1xf32> -> vector<64x1xf32>
    %212 = vector.broadcast %211 : vector<64x1xf32> to vector<64x64xf32>
    %213 = arith.mulf %208, %212 : vector<64x64xf32>
    %cst_77 = arith.constant dense<0.000000e+00> : vector<64x32xf32>
    %214 = tpu.matmul %213, %201, %cst_77 {dimension_numbers = #tpu.dot_dimension_numbers<[1], [0], [0], [1], [0, 0, 1, 1], [], []>} : vector<64x64xf32>, vector<64x32xf32>, vector<64x32xf32> -> vector<64x32xf32>
    %215 = arith.addf %197, %214 : vector<64x32xf32>
    %cst_78 = arith.constant 0.000000e+00 : f32
    %216 = vector.broadcast %cst_78 : f32 to vector<64x32xf32>
    %217 = arith.select %19, %178, %216 : vector<64x32xi1>, vector<64x32xf32>
    %cst_79 = arith.constant 0.000000e+00 : f32
    %218 = vector.broadcast %cst_79 : f32 to vector<64x32xf32>
    %219 = arith.select %19, %180, %218 : vector<64x32xi1>, vector<64x32xf32>
    %cst_80 = arith.constant dense<0.000000e+00> : vector<64x64xf32>
    %220 = tpu.matmul %217, %179, %cst_80 {dimension_numbers = #tpu.dot_dimension_numbers<[1], [1], [0], [0], [0, 0, 1, 0], [], []>} : vector<64x32xf32>, vector<64x32xf32>, vector<64x64xf32> -> vector<64x64xf32>
    %221 = arith.addf %220, %2 : vector<64x64xf32>
    %cst_81 = arith.constant dense<0xFF800000> : vector<64xf32>
    %222 = vector.multi_reduction <maximumf>, %221, %cst_81 [1] : vector<64x64xf32> to vector<64xf32>
    %223 = vector.shape_cast %222 : vector<64xf32> to vector<64x1xf32>
    %224 = vector.broadcast %223 : vector<64x1xf32> to vector<64x64xf32>
    %225 = arith.subf %221, %224 : vector<64x64xf32>
    %226 = math.exp %225 : vector<64x64xf32>
    %cst_82 = arith.constant dense<0.000000e+00> : vector<64xf32>
    %227 = vector.multi_reduction <add>, %226, %cst_82 [1] : vector<64x64xf32> to vector<64xf32>
    %228 = vector.shape_cast %227 : vector<64xf32> to vector<64x1xf32>
    %229 = tpu.reciprocal %228 {approx = true} : vector<64x1xf32> -> vector<64x1xf32>
    %230 = vector.broadcast %229 : vector<64x1xf32> to vector<64x64xf32>
    %231 = arith.mulf %226, %230 : vector<64x64xf32>
    %cst_83 = arith.constant dense<0.000000e+00> : vector<64x32xf32>
    %232 = tpu.matmul %231, %219, %cst_83 {dimension_numbers = #tpu.dot_dimension_numbers<[1], [0], [0], [1], [0, 0, 1, 1], [], []>} : vector<64x64xf32>, vector<64x32xf32>, vector<64x32xf32> -> vector<64x32xf32>
    %233 = arith.addf %215, %232 : vector<64x32xf32>
    %cst_84 = arith.constant 0.000000e+00 : f32
    %234 = vector.broadcast %cst_84 : f32 to vector<64x32xf32>
    %235 = arith.select %24, %178, %234 : vector<64x32xi1>, vector<64x32xf32>
    %cst_85 = arith.constant 0.000000e+00 : f32
    %236 = vector.broadcast %cst_85 : f32 to vector<64x32xf32>
    %237 = arith.select %24, %180, %236 : vector<64x32xi1>, vector<64x32xf32>
    %cst_86 = arith.constant dense<0.000000e+00> : vector<64x64xf32>
    %238 = tpu.matmul %235, %179, %cst_86 {dimension_numbers = #tpu.dot_dimension_numbers<[1], [1], [0], [0], [0, 0, 1, 0], [], []>} : vector<64x32xf32>, vector<64x32xf32>, vector<64x64xf32> -> vector<64x64xf32>
    %239 = arith.addf %238, %2 : vector<64x64xf32>
    %cst_87 = arith.constant dense<0xFF800000> : vector<64xf32>
    %240 = vector.multi_reduction <maximumf>, %239, %cst_87 [1] : vector<64x64xf32> to vector<64xf32>
    %241 = vector.shape_cast %240 : vector<64xf32> to vector<64x1xf32>
    %242 = vector.broadcast %241 : vector<64x1xf32> to vector<64x64xf32>
    %243 = arith.subf %239, %242 : vector<64x64xf32>
    %244 = math.exp %243 : vector<64x64xf32>
    %cst_88 = arith.constant dense<0.000000e+00> : vector<64xf32>
    %245 = vector.multi_reduction <add>, %244, %cst_88 [1] : vector<64x64xf32> to vector<64xf32>
    %246 = vector.shape_cast %245 : vector<64xf32> to vector<64x1xf32>
    %247 = tpu.reciprocal %246 {approx = true} : vector<64x1xf32> -> vector<64x1xf32>
    %248 = vector.broadcast %247 : vector<64x1xf32> to vector<64x64xf32>
    %249 = arith.mulf %244, %248 : vector<64x64xf32>
    %cst_89 = arith.constant dense<0.000000e+00> : vector<64x32xf32>
    %250 = tpu.matmul %249, %237, %cst_89 {dimension_numbers = #tpu.dot_dimension_numbers<[1], [0], [0], [1], [0, 0, 1, 1], [], []>} : vector<64x64xf32>, vector<64x32xf32>, vector<64x32xf32> -> vector<64x32xf32>
    %251 = arith.addf %233, %250 : vector<64x32xf32>
    %cst_90 = arith.constant dense<0.000000e+00> : vector<64x32xf32>
    %252 = tpu.matmul %251, %171, %cst_90 {dimension_numbers = #tpu.dot_dimension_numbers<[1], [0], [0], [1], [0, 0, 1, 1], [], []>} : vector<64x32xf32>, vector<32x32xf32>, vector<64x32xf32> -> vector<64x32xf32>
    %c417 = arith.constant 417 : index
    %c0_91 = arith.constant 0 : index
    %253 = vector.load %arg1[%c417, %c0_91] : memref<432x128xf32, #tpu.memory_space<vmem>>, vector<1x32xf32>
    %254 = vector.broadcast %253 : vector<1x32xf32> to vector<64x32xf32>
    %255 = arith.addf %252, %254 : vector<64x32xf32>
    %256 = arith.addf %169, %255 : vector<64x32xf32>
    %c418 = arith.constant 418 : index
    %c0_92 = arith.constant 0 : index
    %257 = vector.load %arg1[%c418, %c0_92] : memref<432x128xf32, #tpu.memory_space<vmem>>, vector<1x32xf32>
    %c419 = arith.constant 419 : index
    %c0_93 = arith.constant 0 : index
    %258 = vector.load %arg1[%c419, %c0_93] : memref<432x128xf32, #tpu.memory_space<vmem>>, vector<1x32xf32>
    %cst_94 = arith.constant dense<0.000000e+00> : vector<64xf32>
    %259 = vector.multi_reduction <add>, %256, %cst_94 [1] : vector<64x32xf32> to vector<64xf32>
    %260 = vector.shape_cast %259 : vector<64xf32> to vector<64x1xf32>
    %cst_95 = arith.constant 3.200000e+01 : f32
    %261 = vector.broadcast %cst_95 : f32 to vector<64x1xf32>
    %262 = arith.divf %260, %261 : vector<64x1xf32>
    %263 = vector.broadcast %262 : vector<64x1xf32> to vector<64x32xf32>
    %264 = arith.subf %256, %263 : vector<64x32xf32>
    %265 = arith.mulf %264, %264 : vector<64x32xf32>
    %cst_96 = arith.constant dense<0.000000e+00> : vector<64xf32>
    %266 = vector.multi_reduction <add>, %265, %cst_96 [1] : vector<64x32xf32> to vector<64xf32>
    %267 = vector.shape_cast %266 : vector<64xf32> to vector<64x1xf32>
    %cst_97 = arith.constant 3.200000e+01 : f32
    %268 = vector.broadcast %cst_97 : f32 to vector<64x1xf32>
    %269 = arith.divf %267, %268 : vector<64x1xf32>
    %cst_98 = arith.constant 9.99999974E-6 : f32
    %270 = vector.broadcast %cst_98 : f32 to vector<64x1xf32>
    %271 = arith.addf %269, %270 : vector<64x1xf32>
    %272 = math.rsqrt %271 : vector<64x1xf32>
    %273 = vector.broadcast %272 : vector<64x1xf32> to vector<64x32xf32>
    %274 = arith.mulf %264, %273 : vector<64x32xf32>
    %275 = vector.broadcast %257 : vector<1x32xf32> to vector<64x32xf32>
    %276 = arith.mulf %274, %275 : vector<64x32xf32>
    %277 = vector.broadcast %258 : vector<1x32xf32> to vector<64x32xf32>
    %278 = arith.addf %276, %277 : vector<64x32xf32>
    %cst_99 = arith.constant dense<0.000000e+00> : vector<64x32xf32>
    %279 = tpu.matmul %278, %172, %cst_99 {dimension_numbers = #tpu.dot_dimension_numbers<[1], [0], [0], [1], [0, 0, 1, 1], [], []>} : vector<64x32xf32>, vector<32x32xf32>, vector<64x32xf32> -> vector<64x32xf32>
    %c422 = arith.constant 422 : index
    %c0_100 = arith.constant 0 : index
    %280 = vector.load %arg1[%c422, %c0_100] : memref<432x128xf32, #tpu.memory_space<vmem>>, vector<1x32xf32>
    %281 = vector.broadcast %280 : vector<1x32xf32> to vector<64x32xf32>
    %282 = arith.addf %279, %281 : vector<64x32xf32>
    %cst_101 = arith.constant 0.000000e+00 : f32
    %283 = vector.broadcast %cst_101 : f32 to vector<64x32xf32>
    %284 = arith.maximumf %282, %283 : vector<64x32xf32>
    %cst_102 = arith.constant dense<0.000000e+00> : vector<64x32xf32>
    %285 = tpu.matmul %284, %173, %cst_102 {dimension_numbers = #tpu.dot_dimension_numbers<[1], [0], [0], [1], [0, 0, 1, 1], [], []>} : vector<64x32xf32>, vector<32x32xf32>, vector<64x32xf32> -> vector<64x32xf32>
    %c423 = arith.constant 423 : index
    %c0_103 = arith.constant 0 : index
    %286 = vector.load %arg1[%c423, %c0_103] : memref<432x128xf32, #tpu.memory_space<vmem>>, vector<1x32xf32>
    %287 = vector.broadcast %286 : vector<1x32xf32> to vector<64x32xf32>
    %288 = arith.addf %285, %287 : vector<64x32xf32>
    %289 = arith.addf %278, %288 : vector<64x32xf32>
    %c420 = arith.constant 420 : index
    %c0_104 = arith.constant 0 : index
    %290 = vector.load %arg1[%c420, %c0_104] : memref<432x128xf32, #tpu.memory_space<vmem>>, vector<1x32xf32>
    %c421 = arith.constant 421 : index
    %c0_105 = arith.constant 0 : index
    %291 = vector.load %arg1[%c421, %c0_105] : memref<432x128xf32, #tpu.memory_space<vmem>>, vector<1x32xf32>
    %cst_106 = arith.constant dense<0.000000e+00> : vector<64xf32>
    %292 = vector.multi_reduction <add>, %289, %cst_106 [1] : vector<64x32xf32> to vector<64xf32>
    %293 = vector.shape_cast %292 : vector<64xf32> to vector<64x1xf32>
    %cst_107 = arith.constant 3.200000e+01 : f32
    %294 = vector.broadcast %cst_107 : f32 to vector<64x1xf32>
    %295 = arith.divf %293, %294 : vector<64x1xf32>
    %296 = vector.broadcast %295 : vector<64x1xf32> to vector<64x32xf32>
    %297 = arith.subf %289, %296 : vector<64x32xf32>
    %298 = arith.mulf %297, %297 : vector<64x32xf32>
    %cst_108 = arith.constant dense<0.000000e+00> : vector<64xf32>
    %299 = vector.multi_reduction <add>, %298, %cst_108 [1] : vector<64x32xf32> to vector<64xf32>
    %300 = vector.shape_cast %299 : vector<64xf32> to vector<64x1xf32>
    %cst_109 = arith.constant 3.200000e+01 : f32
    %301 = vector.broadcast %cst_109 : f32 to vector<64x1xf32>
    %302 = arith.divf %300, %301 : vector<64x1xf32>
    %cst_110 = arith.constant 9.99999974E-6 : f32
    %303 = vector.broadcast %cst_110 : f32 to vector<64x1xf32>
    %304 = arith.addf %302, %303 : vector<64x1xf32>
    %305 = math.rsqrt %304 : vector<64x1xf32>
    %306 = vector.broadcast %305 : vector<64x1xf32> to vector<64x32xf32>
    %307 = arith.mulf %297, %306 : vector<64x32xf32>
    %308 = vector.broadcast %290 : vector<1x32xf32> to vector<64x32xf32>
    %309 = arith.mulf %307, %308 : vector<64x32xf32>
    %310 = vector.broadcast %291 : vector<1x32xf32> to vector<64x32xf32>
    %311 = arith.addf %309, %310 : vector<64x32xf32>
    %cst_111 = arith.constant dense<0.000000e+00> : vector<8x32xf32>
    %312 = tpu.matmul %3, %311, %cst_111 {dimension_numbers = #tpu.dot_dimension_numbers<[1], [0], [0], [1], [0, 0, 1, 1], [], []>} : vector<8x64xf32>, vector<64x32xf32>, vector<8x32xf32> -> vector<8x32xf32>
    %c424 = arith.constant 424 : index
    %c0_112 = arith.constant 0 : index
    %313 = vector.load %arg1[%c424, %c0_112] : memref<432x128xf32, #tpu.memory_space<vmem>>, vector<1x32xf32>
    %314 = vector.broadcast %313 : vector<1x32xf32> to vector<8x32xf32>
    %315 = arith.addf %312, %314 : vector<8x32xf32>
    %c0_113 = arith.constant 0 : index
    %c0_114 = arith.constant 0 : index
    %316 = vector.load %arg2[%c0_113, %c0_114] : memref<8x32xf32, #tpu.memory_space<vmem>>, vector<8x32xf32>
    tpu.vector_store %arg2[%c0_113, %c0_114], %315 {strides = array<i32>} : memref<8x32xf32, #tpu.memory_space<vmem>>, vector<8x32xf32>,
    return
  }
}

</mosaic_0001>

<llo_original>
// kernel: merging_transformer.1
$region0: #{merging_transformer.1}
  #allocation0 [shape = 'u32[]', space=smem, size = 0x4, offset = 0x4, fixed_abs, tag = 'smem constant byte address 0x4 - core index']
  #allocation1 [shape = 'u32[72,128]{1,0:T(1,128)}', space=vmem, size = 0x9000, scoped, tag = 'internal scratch']
  %s0 = inlined_call_operand.hbm [shape: f32[64,16], index: 0, kind: input, shape index: {}]
  %s1 = inlined_call_operand.hbm [shape: f32[432,128], index: 1, kind: input, shape index: {}]
  %s2 = inlined_call_operand.hbm [shape: f32[8,32], index: 2, kind: output, shape index: {}]
  %s3 = sld [smem:[#allocation0]]
  $region26: #{merging_transformer.1} parent=0
    _
  %s5 = ssub.s32 1, %s3
  %s6 = scalar_select 0, %s5, %s3
  $region1: #{merging_transformer.1} parent=0
    #allocation2 [shape = 'u8[32768]{0}', space=vmem, size = 0x8000, scoped, tag = 'input window, operand 0, single buffered']
    #allocation3 [shape = 's32[1]{0}', space=sflag, size = 0x4, scoped, tag = 'scoped memory for merging_transformer.1']
    #allocation4 [shape = 's32[1]{0}', space=sflag, size = 0x4, scoped, tag = 'scoped memory for merging_transformer.1']
    #allocation5 [shape = 'u8[221184]{0}', space=vmem, size = 0x36000, scoped, tag = 'input window, operand 1, single buffered']
    #allocation6 [shape = 's32[1]{0}', space=sflag, size = 0x4, scoped, tag = 'scoped memory for merging_transformer.1']
    #allocation7 [shape = 'u8[4096]{0}', space=vmem, size = 0x1000, scoped, tag = 'output window, operand 0, single buffered']
    %7 = vsyncpa [#allocation3], 0
    %8 = vsyncpa [#allocation6], 0
    %9 = vsyncpa [#allocation4], 0
    // Predicated region
    $region2: #{merging_transformer.1} parent=1 // pred_check
      _
    $region3: #{merging_transformer.1} parent=1 // pred_check_branch
      %11 = sbr.rel (0) target = $region5
    $region4: #{merging_transformer.1} parent=1 // pred_region
      %13 = vsyncadd [#allocation3], 0
      %s14 = sshll.u32 %s0, 4
      %s15 = int_to_ptr.hbm [resolvable:$true] %s14
      %s16 = sshll.u32 [#allocation2], 4
      %s17 = int_to_ptr.vmem [resolvable:$true] %s16
      %22 = dma.hbm_to_vmem [thread:$0]  %s15, 1024, %s17, [#allocation3], 128, 128, 8
    $region5: #{merging_transformer.1} parent=1 // pred_fallthru
      _
    // Predicated region
    $region6: #{merging_transformer.1} parent=1 // pred_check
      _
    $region7: #{merging_transformer.1} parent=1 // pred_check_branch
      %24 = sbr.rel (0) target = $region9
    $region8: #{merging_transformer.1} parent=1 // pred_region
      %26 = vsyncadd [#allocation6], 0
      %s27 = sshll.u32 %s1, 4
      %s28 = int_to_ptr.hbm [resolvable:$true] %s27
      %s29 = sshll.u32 [#allocation5], 4
      %s30 = int_to_ptr.vmem [resolvable:$true] %s29
      %35 = dma.hbm_to_vmem [thread:$0]  %s28, 6912, %s30, [#allocation6], 128, 128, 8
    $region9: #{merging_transformer.1} parent=1 // pred_fallthru
      _
    // Predicated region
    $region10: #{merging_transformer.1} parent=1 // pred_check
      _
    $region11: #{merging_transformer.1} parent=1 // pred_check_branch
      %37 = sbr.rel (0) target = $region13
    $region12: #{merging_transformer.1} parent=1 // pred_region
      %39 = dma.done [#allocation3], 1024
    $region13: #{merging_transformer.1} parent=1 // pred_fallthru
      _
    // Predicated region
    $region14: #{merging_transformer.1} parent=1 // pred_check
      _
    $region15: #{merging_transformer.1} parent=1 // pred_check_branch
      %41 = sbr.rel (0) target = $region17
    $region16: #{merging_transformer.1} parent=1 // pred_region
      %43 = dma.done [#allocation6], 6912
    $region17: #{merging_transformer.1} parent=1 // pred_fallthru
      _
    %v44 = vld [vmem:[#allocation5] sm:$0xff]
    %v45 = vld [vmem:[#allocation5 + $0x8] sm:$0xff]
    %v46 = vld [vmem:[#allocation5 + $0x10] sm:$0xff]
    %v47 = vld [vmem:[#allocation5 + $0x18] sm:$0xff]
    %v48 = vld [vmem:[#allocation5 + $0x20] sm:$0xff]
    %v49 = vld [vmem:[#allocation5 + $0x28] sm:$0xff]
    %v50 = vld [vmem:[#allocation5 + $0x30] sm:$0xff]
    %v51 = vld [vmem:[#allocation5 + $0x38] sm:$0xff]
    %v52 = vld [vmem:[#allocation5 + $0x40] sm:$0xff]
    %v53 = vld [vmem:[#allocation5 + $0x48] sm:$0xff]
    %v54 = vld [vmem:[#allocation5 + $0x58] sm:$0xff]
    %v55 = vld [vmem:[#allocation5 + $0x60] sm:$0xff]
    %v56 = vld [vmem:[#allocation5 + $0x68] sm:$0xff]
    %v57 = vld [vmem:[#allocation5 + $0x70] sm:$0xff]
    %v58 = vld [vmem:[#allocation5 + $0x78] sm:$0xff]
    %v59 = vld [vmem:[#allocation5 + $0x80] sm:$0xff]
    %v60 = vld [vmem:[#allocation5 + $0x88] sm:$0xff]
    %v61 = vld [vmem:[#allocation5 + $0x90] sm:$0xff]
    %v62 = vld [vmem:[#allocation5 + $0x50] sm:$0xff]
    %v63 = vlaneseq
    %v64 = vand.u32 %v63, 127
    %vm65 = vcmp.ge.s32.totalorder %v64, 0
    %vm66 = vcmp.lt.s32.totalorder %v64, 8
    %vm67 = vmand %vm65, %vm66
    %vm68 = vcmp.ge.s32.totalorder %v64, 8
    %vm69 = vcmp.lt.s32.totalorder %v64, 16
    %vm70 = vmand %vm68, %vm69
    %vm71 = vcmp.ge.s32.totalorder %v64, 16
    %vm72 = vcmp.lt.s32.totalorder %v64, 24
    %vm73 = vmand %vm71, %vm72
    %vm74 = vcmp.ge.s32.totalorder %v64, 24
    %vm75 = vcmp.lt.s32.totalorder %v64, 32
    %vm76 = vmand %vm74, %vm75
    %v77 = vld [vmem:[#allocation2] sm:$0xff]
    %v78 = vld [vmem:[#allocation2 + $0x8] sm:$0xff]
    %v79 = vld [vmem:[#allocation2 + $0x10] sm:$0xff]
    %v80 = vld [vmem:[#allocation2 + $0x18] sm:$0xff]
    %v81 = vld [vmem:[#allocation2 + $0x20] sm:$0xff]
    %v82 = vld [vmem:[#allocation2 + $0x28] sm:$0xff]
    %v83 = vld [vmem:[#allocation2 + $0x30] sm:$0xff]
    %v84 = vld [vmem:[#allocation2 + $0x38] sm:$0xff]
    %vm85 = vcmask 130048
    %v87 = vsel %vm85, %v77, 0
    %v90 = vsel %vm85, %v78, 0
    %v93 = vsel %vm85, %v79, 0
    %v96 = vsel %vm85, %v80, 0
    %v99 = vsel %vm85, %v81, 0
    %v102 = vsel %vm85, %v82, 0
    %v105 = vsel %vm85, %v83, 0
    %v108 = vsel %vm85, %v84, 0
    %110 = vmatpush.msra.mxu0 0.0
    %111 = vmatpush.msra.mxu0 0.0
    %112 = vmatpush.msra.mxu0 0.0
    %113 = vmatpush.msra.mxu0 0.0
    %114 = vmatpush.msra.mxu0 0.0
    %115 = vmatpush.msra.mxu0 0.0
    %116 = vmatpush.msra.mxu0 0.0
    %117 = vmatpush.msra.mxu0 0.0
    %118 = vmatpush.msra.mxu0 0.0
    %119 = vmatpush.msra.mxu0 0.0
    %120 = vmatpush.msra.mxu0 0.0
    %121 = vmatpush.msra.mxu0 0.0
    %122 = vmatpush.msra.mxu0 0.0
    %123 = vmatpush.msra.mxu0 0.0
    %124 = vmatpush.msra.mxu0 %v45
    %125 = vmatpush.msra.mxu0 %v44
    %126 = vmatmul.f32.gmra.mxu0 %v87
    %v127 = vpop.f32.mrf.mxu0
    %v128 = vadd.f32 %v46, %v127
    %129 = vmatmul.f32.gmra.mxu0 %v90
    %v130 = vpop.f32.mrf.mxu0
    %v131 = vadd.f32 %v47, %v130
    %132 = vmatmul.f32.gmra.mxu0 %v93
    %v133 = vpop.f32.mrf.mxu0
    %v134 = vadd.f32 %v48, %v133
    %135 = vmatmul.f32.gmra.mxu0 %v96
    %v136 = vpop.f32.mrf.mxu0
    %v137 = vadd.f32 %v49, %v136
    %138 = vmatmul.f32.gmra.mxu0 %v99
    %v139 = vpop.f32.mrf.mxu0
    %v140 = vadd.f32 %v50, %v139
    %141 = vmatmul.f32.gmra.mxu0 %v102
    %v142 = vpop.f32.mrf.mxu0
    %v143 = vadd.f32 %v51, %v142
    %144 = vmatmul.f32.gmra.mxu0 %v105
    %v145 = vpop.f32.mrf.mxu0
    %v146 = vadd.f32 %v52, %v145
    %147 = vmatmul.f32.gmra.mxu0 %v108
    %v148 = vpop.f32.mrf.mxu0
    %v149 = vadd.f32 %v53, %v148
    %150 = vdwg.mxu0
    %v151 = vld [vmem:[#allocation5 + $0x98] sm:$0xff]
    %v152 = vld [vmem:[#allocation5 + $0xa0] sm:$0xff]
    %v153 = vld [vmem:[#allocation5 + $0xa8] sm:$0xff]
    %v154 = vld [vmem:[#allocation5 + $0xb0] sm:$0xff]
    %v155 = vld [vmem:[#allocation5 + $0xb8] sm:$0xff]
    %v156 = vld [vmem:[#allocation5 + $0xc0] sm:$0xff]
    %v157 = vld [vmem:[#allocation5 + $0xc8] sm:$0xff]
    %v158 = vld [vmem:[#allocation5 + $0xd0] sm:$0xff]
    %v159 = vld [vmem:[#allocation5 + $0xd8] sm:$0xff]
    %v160 = vld [vmem:[#allocation5 + $0xe0] sm:$0xff]
    %v161 = vld [vmem:[#allocation5 + $0xe8] sm:$0xff]
    %v162 = vld [vmem:[#allocation5 + $0xf0] sm:$0xff]
    %v163 = vld [vmem:[#allocation5 + $0xf8] sm:$0xff]
    %v164 = vld [vmem:[#allocation5 + $0x100] sm:$0xff]
    %v165 = vld [vmem:[#allocation5 + $0x108] sm:$0xff]
    %v166 = vld [vmem:[#allocation5 + $0x110] sm:$0xff]
    %v167 = vld [vmem:[#allocation5 + $0x118] sm:$0x1]
    %v168 = vperm.slane %v167, 0
    %vm169 = vcmask 261120
    %v171 = vsel %vm169, %v128, 0
    %v174 = vsel %vm169, %v131, 0
    %v177 = vsel %vm169, %v134, 0
    %v180 = vsel %vm169, %v137, 0
    %v183 = vsel %vm169, %v140, 0
    %v186 = vsel %vm169, %v143, 0
    %v189 = vsel %vm169, %v146, 0
    %v192 = vsel %vm169, %v149, 0
    %194 = vmatpush.msra.mxu0 0.0
    %195 = vmatpush.msra.mxu0 0.0
    %196 = vmatpush.msra.mxu0 0.0
    %197 = vmatpush.msra.mxu0 0.0
    %198 = vmatpush.msra.mxu0 0.0
    %199 = vmatpush.msra.mxu0 0.0
    %200 = vmatpush.msra.mxu0 0.0
    %201 = vmatpush.msra.mxu0 0.0
    %202 = vmatpush.msra.mxu0 0.0
    %203 = vmatpush.msra.mxu0 0.0
    %204 = vmatpush.msra.mxu0 0.0
    %205 = vmatpush.msra.mxu0 0.0
    %206 = vmatpush.msra.mxu0 %v154
    %207 = vmatpush.msra.mxu0 %v153
    %208 = vmatpush.msra.mxu0 %v152
    %209 = vmatpush.msra.mxu0 %v151
    %210 = vmatmul.f32.gmra.mxu0 %v171
    %v211 = vpop.f32.mrf.mxu0
    %v212 = vadd.f32 %v168, %v211
    %213 = vmatmul.f32.gmra.mxu0 %v174
    %v214 = vpop.f32.mrf.mxu0
    %v215 = vadd.f32 %v168, %v214
    %216 = vmatmul.f32.gmra.mxu0 %v177
    %v217 = vpop.f32.mrf.mxu0
    %v218 = vadd.f32 %v168, %v217
    %219 = vmatmul.f32.gmra.mxu0 %v180
    %v220 = vpop.f32.mrf.mxu0
    %v221 = vadd.f32 %v168, %v220
    %222 = vmatmul.f32.gmra.mxu0 %v183
    %v223 = vpop.f32.mrf.mxu0
    %v224 = vadd.f32 %v168, %v223
    %225 = vmatmul.f32.gmra.mxu0 %v186
    %v226 = vpop.f32.mrf.mxu0
    %v227 = vadd.f32 %v168, %v226
    %228 = vmatmul.f32.gmra.mxu0 %v189
    %v229 = vpop.f32.mrf.mxu0
    %v230 = vadd.f32 %v168, %v229
    %231 = vmatmul.f32.gmra.mxu0 %v192
    %v232 = vpop.f32.mrf.mxu0
    %v233 = vadd.f32 %v168, %v232
    %234 = vdwg.mxu0
    %v235 = vsel %vm67, %v212, 0.0
    %v236 = vsel %vm67, %v215, 0.0
    %v237 = vsel %vm67, %v218, 0.0
    %v238 = vsel %vm67, %v221, 0.0
    %v239 = vsel %vm67, %v224, 0.0
    %v240 = vsel %vm67, %v227, 0.0
    %v241 = vsel %vm67, %v230, 0.0
    %v242 = vsel %vm67, %v233, 0.0
    %251 = vrot.lane.b32.xlu0 %v212, 64
    %v252 = vpop.permute.xlu0 %251
    %253 = vrot.lane.b32.xlu0 %v215, 64
    %v254 = vpop.permute.xlu0 %253
    %255 = vrot.lane.b32.xlu0 %v218, 64
    %v256 = vpop.permute.xlu0 %255
    %257 = vrot.lane.b32.xlu0 %v221, 64
    %v258 = vpop.permute.xlu0 %257
    %259 = vrot.lane.b32.xlu0 %v224, 64
    %v260 = vpop.permute.xlu0 %259
    %261 = vrot.lane.b32.xlu0 %v227, 64
    %v262 = vpop.permute.xlu0 %261
    %263 = vrot.lane.b32.xlu0 %v230, 64
    %v264 = vpop.permute.xlu0 %263
    %265 = vrot.lane.b32.xlu0 %v233, 64
    %v266 = vpop.permute.xlu0 %265
    %v275 = vsel %vm67, %v252, 0.0
    %v276 = vsel %vm67, %v254, 0.0
    %v277 = vsel %vm67, %v256, 0.0
    %v278 = vsel %vm67, %v258, 0.0
    %v279 = vsel %vm67, %v260, 0.0
    %v280 = vsel %vm67, %v262, 0.0
    %v281 = vsel %vm67, %v264, 0.0
    %v282 = vsel %vm67, %v266, 0.0
    %283 = vrot.lane.b32.xlu0 %v212, 96
    %v284 = vpop.permute.xlu0 %283
    %285 = vrot.lane.b32.xlu0 %v215, 96
    %v286 = vpop.permute.xlu0 %285
    %287 = vrot.lane.b32.xlu0 %v218, 96
    %v288 = vpop.permute.xlu0 %287
    %289 = vrot.lane.b32.xlu0 %v221, 96
    %v290 = vpop.permute.xlu0 %289
    %291 = vrot.lane.b32.xlu0 %v224, 96
    %v292 = vpop.permute.xlu0 %291
    %293 = vrot.lane.b32.xlu0 %v227, 96
    %v294 = vpop.permute.xlu0 %293
    %295 = vrot.lane.b32.xlu0 %v230, 96
    %v296 = vpop.permute.xlu0 %295
    %297 = vrot.lane.b32.xlu0 %v233, 96
    %v298 = vpop.permute.xlu0 %297
    %v300 = vsel %vm169, %v235, 0
    %v303 = vsel %vm169, %v236, 0
    %v306 = vsel %vm169, %v237, 0
    %v309 = vsel %vm169, %v238, 0
    %v312 = vsel %vm169, %v239, 0
    %v315 = vsel %vm169, %v240, 0
    %v318 = vsel %vm169, %v241, 0
    %v321 = vsel %vm169, %v242, 0
    %v323 = vsel %vm169, %v284, 0
    %v325 = vsel %vm169, %v286, 0
    %v327 = vsel %vm169, %v288, 0
    %v329 = vsel %vm169, %v290, 0
    %v331 = vsel %vm169, %v292, 0
    %v333 = vsel %vm169, %v294, 0
    %v335 = vsel %vm169, %v296, 0
    %v337 = vsel %vm169, %v298, 0
    %339 = vmatpush.xpose.msra.mxu0 0.0
    %340 = vmatpush.xpose.msra.mxu0 0.0
    %341 = vmatpush.xpose.msra.mxu0 0.0
    %342 = vmatpush.xpose.msra.mxu0 0.0
    %343 = vmatpush.xpose.msra.mxu0 0.0
    %344 = vmatpush.xpose.msra.mxu0 0.0
    %345 = vmatpush.xpose.msra.mxu0 0.0
    %346 = vmatpush.xpose.msra.mxu0 0.0
    %347 = vmatpush.xpose.msra.mxu0 %v337
    %348 = vmatpush.xpose.msra.mxu0 %v335
    %349 = vmatpush.xpose.msra.mxu0 %v333
    %350 = vmatpush.xpose.msra.mxu0 %v331
    %351 = vmatpush.xpose.msra.mxu0 %v329
    %352 = vmatpush.xpose.msra.mxu0 %v327
    %353 = vmatpush.xpose.msra.mxu0 %v325
    %354 = vmatpush.xpose.msra.mxu0 %v323
    %355 = vmatmul.f32.gmra.mxu0 %v300
    %v356 = vpop.f32.mrf.mxu0
    %v357 = vadd.f32 %v54, %v356
    %358 = vmatmul.f32.gmra.mxu0 %v303
    %v359 = vpop.f32.mrf.mxu0
    %v360 = vadd.f32 %v55, %v359
    %361 = vmatmul.f32.gmra.mxu0 %v306
    %v362 = vpop.f32.mrf.mxu0
    %v363 = vadd.f32 %v56, %v362
    %364 = vmatmul.f32.gmra.mxu0 %v309
    %v365 = vpop.f32.mrf.mxu0
    %v366 = vadd.f32 %v57, %v365
    %367 = vmatmul.f32.gmra.mxu0 %v312
    %v368 = vpop.f32.mrf.mxu0
    %v369 = vadd.f32 %v58, %v368
    %370 = vmatmul.f32.gmra.mxu0 %v315
    %v371 = vpop.f32.mrf.mxu0
    %v372 = vadd.f32 %v59, %v371
    %373 = vmatmul.f32.gmra.mxu0 %v318
    %v374 = vpop.f32.mrf.mxu0
    %v375 = vadd.f32 %v60, %v374
    %376 = vmatmul.f32.gmra.mxu0 %v321
    %v377 = vpop.f32.mrf.mxu0
    %v378 = vadd.f32 %v61, %v377
    %379 = vdwg.mxu0
    %vm380 = vcmask 523264
    %v381 = vsel %vm380, %v357, -inf
    %382 = vmax.xlane.f32.xlu0 %v381
    %v383 = vpop.xlane.xlu0 %382
    %v384 = vsel %vm380, %v360, -inf
    %385 = vmax.xlane.f32.xlu0 %v384
    %v386 = vpop.xlane.xlu0 %385
    %v387 = vsel %vm380, %v363, -inf
    %388 = vmax.xlane.f32.xlu0 %v387
    %v389 = vpop.xlane.xlu0 %388
    %v390 = vsel %vm380, %v366, -inf
    %391 = vmax.xlane.f32.xlu0 %v390
    %v392 = vpop.xlane.xlu0 %391
    %v393 = vsel %vm380, %v369, -inf
    %394 = vmax.xlane.f32.xlu0 %v393
    %v395 = vpop.xlane.xlu0 %394
    %v396 = vsel %vm380, %v372, -inf
    %397 = vmax.xlane.f32.xlu0 %v396
    %v398 = vpop.xlane.xlu0 %397
    %v399 = vsel %vm380, %v375, -inf
    %400 = vmax.xlane.f32.xlu0 %v399
    %v401 = vpop.xlane.xlu0 %400
    %v402 = vsel %vm380, %v378, -inf
    %403 = vmax.xlane.f32.xlu0 %v402
    %v404 = vpop.xlane.xlu0 %403
    %v405 = vsub.f32 %v357, %v383
    %v406 = vsub.f32 %v360, %v386
    %v407 = vsub.f32 %v363, %v389
    %v408 = vsub.f32 %v366, %v392
    %v409 = vsub.f32 %v369, %v395
    %v410 = vsub.f32 %v372, %v398
    %v411 = vsub.f32 %v375, %v401
    %v412 = vsub.f32 %v378, %v404
    %v413 = vmul.f32 %v405, 1.442695
    %v414 = vpow.pop %v413
    %v415 = vmul.f32 %v406, 1.442695
    %v416 = vpow.pop %v415
    %v417 = vmul.f32 %v407, 1.442695
    %v418 = vpow.pop %v417
    %v419 = vmul.f32 %v408, 1.442695
    %v420 = vpow.pop %v419
    %v421 = vmul.f32 %v409, 1.442695
    %v422 = vpow.pop %v421
    %v423 = vmul.f32 %v410, 1.442695
    %v424 = vpow.pop %v423
    %v425 = vmul.f32 %v411, 1.442695
    %v426 = vpow.pop %v425
    %v427 = vmul.f32 %v412, 1.442695
    %v428 = vpow.pop %v427
    %v429 = vsel %vm380, %v414, 0.0
    %430 = vadd.xlane.f32.xlu0 %v429
    %v431 = vpop.xlane.xlu0 %430
    %v432 = vsel %vm380, %v416, 0.0
    %433 = vadd.xlane.f32.xlu0 %v432
    %v434 = vpop.xlane.xlu0 %433
    %v435 = vsel %vm380, %v418, 0.0
    %436 = vadd.xlane.f32.xlu0 %v435
    %v437 = vpop.xlane.xlu0 %436
    %v438 = vsel %vm380, %v420, 0.0
    %439 = vadd.xlane.f32.xlu0 %v438
    %v440 = vpop.xlane.xlu0 %439
    %v441 = vsel %vm380, %v422, 0.0
    %442 = vadd.xlane.f32.xlu0 %v441
    %v443 = vpop.xlane.xlu0 %442
    %v444 = vsel %vm380, %v424, 0.0
    %445 = vadd.xlane.f32.xlu0 %v444
    %v446 = vpop.xlane.xlu0 %445
    %v447 = vsel %vm380, %v426, 0.0
    %448 = vadd.xlane.f32.xlu0 %v447
    %v449 = vpop.xlane.xlu0 %448
    %v450 = vsel %vm380, %v428, 0.0
    %451 = vadd.xlane.f32.xlu0 %v450
    %v452 = vpop.xlane.xlu0 %451
    %v453 = vrcp.pop %v431
    %v454 = vrcp.pop %v434
    %v455 = vrcp.pop %v437
    %v456 = vrcp.pop %v440
    %v457 = vrcp.pop %v443
    %v458 = vrcp.pop %v446
    %v459 = vrcp.pop %v449
    %v460 = vrcp.pop %v452
    %v461 = vmul.f32 %v414, %v453
    %v462 = vmul.f32 %v416, %v454
    %v463 = vmul.f32 %v418, %v455
    %v464 = vmul.f32 %v420, %v456
    %v465 = vmul.f32 %v422, %v457
    %v466 = vmul.f32 %v424, %v458
    %v467 = vmul.f32 %v426, %v459
    %v468 = vmul.f32 %v428, %v460
    %v469 = vsel %vm70, %v212, 0.0
    %v470 = vsel %vm70, %v215, 0.0
    %v471 = vsel %vm70, %v218, 0.0
    %v472 = vsel %vm70, %v221, 0.0
    %v473 = vsel %vm70, %v224, 0.0
    %v474 = vsel %vm70, %v227, 0.0
    %v475 = vsel %vm70, %v230, 0.0
    %v476 = vsel %vm70, %v233, 0.0
    %v477 = vsel %vm70, %v252, 0.0
    %v478 = vsel %vm70, %v254, 0.0
    %v479 = vsel %vm70, %v256, 0.0
    %v480 = vsel %vm70, %v258, 0.0
    %v481 = vsel %vm70, %v260, 0.0
    %v482 = vsel %vm70, %v262, 0.0
    %v483 = vsel %vm70, %v264, 0.0
    %v484 = vsel %vm70, %v266, 0.0
    %v486 = vsel %vm169, %v469, 0
    %v489 = vsel %vm169, %v470, 0
    %v492 = vsel %vm169, %v471, 0
    %v495 = vsel %vm169, %v472, 0
    %v498 = vsel %vm169, %v473, 0
    %v501 = vsel %vm169, %v474, 0
    %v504 = vsel %vm169, %v475, 0
    %v507 = vsel %vm169, %v476, 0
    %509 = vmatpush.xpose.msra.mxu0 0.0
    %510 = vmatpush.xpose.msra.mxu0 0.0
    %511 = vmatpush.xpose.msra.mxu0 0.0
    %512 = vmatpush.xpose.msra.mxu0 0.0
    %513 = vmatpush.xpose.msra.mxu0 0.0
    %514 = vmatpush.xpose.msra.mxu0 0.0
    %515 = vmatpush.xpose.msra.mxu0 0.0
    %516 = vmatpush.xpose.msra.mxu0 0.0
    %517 = vmatpush.xpose.msra.mxu0 %v337
    %518 = vmatpush.xpose.msra.mxu0 %v335
    %519 = vmatpush.xpose.msra.mxu0 %v333
    %520 = vmatpush.xpose.msra.mxu0 %v331
    %521 = vmatpush.xpose.msra.mxu0 %v329
    %522 = vmatpush.xpose.msra.mxu0 %v327
    %523 = vmatpush.xpose.msra.mxu0 %v325
    %524 = vmatpush.xpose.msra.mxu0 %v323
    %525 = vmatmul.f32.gmra.mxu0 %v486
    %v526 = vpop.f32.mrf.mxu0
    %v527 = vadd.f32 %v54, %v526
    %528 = vmatmul.f32.gmra.mxu0 %v489
    %v529 = vpop.f32.mrf.mxu0
    %v530 = vadd.f32 %v55, %v529
    %531 = vmatmul.f32.gmra.mxu0 %v492
    %v532 = vpop.f32.mrf.mxu0
    %v533 = vadd.f32 %v56, %v532
    %534 = vmatmul.f32.gmra.mxu0 %v495
    %v535 = vpop.f32.mrf.mxu0
    %v536 = vadd.f32 %v57, %v535
    %537 = vmatmul.f32.gmra.mxu0 %v498
    %v538 = vpop.f32.mrf.mxu0
    %v539 = vadd.f32 %v58, %v538
    %540 = vmatmul.f32.gmra.mxu0 %v501
    %v541 = vpop.f32.mrf.mxu0
    %v542 = vadd.f32 %v59, %v541
    %543 = vmatmul.f32.gmra.mxu0 %v504
    %v544 = vpop.f32.mrf.mxu0
    %v545 = vadd.f32 %v60, %v544
    %546 = vmatmul.f32.gmra.mxu0 %v507
    %v547 = vpop.f32.mrf.mxu0
    %v548 = vadd.f32 %v61, %v547
    %549 = vdwg.mxu0
    %v550 = vsel %vm380, %v527, -inf
    %551 = vmax.xlane.f32.xlu0 %v550
    %v552 = vpop.xlane.xlu0 %551
    %v553 = vsel %vm380, %v530, -inf
    %554 = vmax.xlane.f32.xlu0 %v553
    %v555 = vpop.xlane.xlu0 %554
    %v556 = vsel %vm380, %v533, -inf
    %557 = vmax.xlane.f32.xlu0 %v556
    %v558 = vpop.xlane.xlu0 %557
    %v559 = vsel %vm380, %v536, -inf
    %560 = vmax.xlane.f32.xlu0 %v559
    %v561 = vpop.xlane.xlu0 %560
    %v562 = vsel %vm380, %v539, -inf
    %563 = vmax.xlane.f32.xlu0 %v562
    %v564 = vpop.xlane.xlu0 %563
    %v565 = vsel %vm380, %v542, -inf
    %566 = vmax.xlane.f32.xlu0 %v565
    %v567 = vpop.xlane.xlu0 %566
    %v568 = vsel %vm380, %v545, -inf
    %569 = vmax.xlane.f32.xlu0 %v568
    %v570 = vpop.xlane.xlu0 %569
    %v571 = vsel %vm380, %v548, -inf
    %572 = vmax.xlane.f32.xlu0 %v571
    %v573 = vpop.xlane.xlu0 %572
    %v574 = vsub.f32 %v527, %v552
    %v575 = vsub.f32 %v530, %v555
    %v576 = vsub.f32 %v533, %v558
    %v577 = vsub.f32 %v536, %v561
    %v578 = vsub.f32 %v539, %v564
    %v579 = vsub.f32 %v542, %v567
    %v580 = vsub.f32 %v545, %v570
    %v581 = vsub.f32 %v548, %v573
    %v582 = vmul.f32 %v574, 1.442695
    %v583 = vpow.pop %v582
    %v584 = vmul.f32 %v575, 1.442695
    %v585 = vpow.pop %v584
    %v586 = vmul.f32 %v576, 1.442695
    %v587 = vpow.pop %v586
    %v588 = vmul.f32 %v577, 1.442695
    %v589 = vpow.pop %v588
    %v590 = vmul.f32 %v578, 1.442695
    %v591 = vpow.pop %v590
    %v592 = vmul.f32 %v579, 1.442695
    %v593 = vpow.pop %v592
    %v594 = vmul.f32 %v580, 1.442695
    %v595 = vpow.pop %v594
    %v596 = vmul.f32 %v581, 1.442695
    %v597 = vpow.pop %v596
    %v598 = vsel %vm380, %v583, 0.0
    %599 = vadd.xlane.f32.xlu0 %v598
    %v600 = vpop.xlane.xlu0 %599
    %v601 = vsel %vm380, %v585, 0.0
    %602 = vadd.xlane.f32.xlu0 %v601
    %v603 = vpop.xlane.xlu0 %602
    %v604 = vsel %vm380, %v587, 0.0
    %605 = vadd.xlane.f32.xlu0 %v604
    %v606 = vpop.xlane.xlu0 %605
    %v607 = vsel %vm380, %v589, 0.0
    %608 = vadd.xlane.f32.xlu0 %v607
    %v609 = vpop.xlane.xlu0 %608
    %v610 = vsel %vm380, %v591, 0.0
    %611 = vadd.xlane.f32.xlu0 %v610
    %v612 = vpop.xlane.xlu0 %611
    %v613 = vsel %vm380, %v593, 0.0
    %614 = vadd.xlane.f32.xlu0 %v613
    %v615 = vpop.xlane.xlu0 %614
    %v616 = vsel %vm380, %v595, 0.0
    %617 = vadd.xlane.f32.xlu0 %v616
    %v618 = vpop.xlane.xlu0 %617
    %v619 = vsel %vm380, %v597, 0.0
    %620 = vadd.xlane.f32.xlu0 %v619
    %v621 = vpop.xlane.xlu0 %620
    %v622 = vrcp.pop %v600
    %v623 = vrcp.pop %v603
    %v624 = vrcp.pop %v606
    %v625 = vrcp.pop %v609
    %v626 = vrcp.pop %v612
    %v627 = vrcp.pop %v615
    %v628 = vrcp.pop %v618
    %v629 = vrcp.pop %v621
    %v630 = vmul.f32 %v583, %v622
    %v631 = vmul.f32 %v585, %v623
    %v632 = vmul.f32 %v587, %v624
    %v633 = vmul.f32 %v589, %v625
    %v634 = vmul.f32 %v591, %v626
    %v635 = vmul.f32 %v593, %v627
    %v636 = vmul.f32 %v595, %v628
    %v637 = vmul.f32 %v597, %v629
    %v639 = vsel %vm380, %v630, 0
    %v642 = vsel %vm380, %v631, 0
    %v645 = vsel %vm380, %v632, 0
    %v648 = vsel %vm380, %v633, 0
    %v651 = vsel %vm380, %v634, 0
    %v654 = vsel %vm380, %v635, 0
    %v657 = vsel %vm380, %v636, 0
    %v660 = vsel %vm380, %v637, 0
    %662 = vmatpush.msra.mxu0 0.0
    %663 = vmatpush.msra.mxu0 0.0
    %664 = vmatpush.msra.mxu0 0.0
    %665 = vmatpush.msra.mxu0 0.0
    %666 = vmatpush.msra.mxu0 0.0
    %667 = vmatpush.msra.mxu0 0.0
    %668 = vmatpush.msra.mxu0 0.0
    %669 = vmatpush.msra.mxu0 0.0
    %670 = vmatpush.msra.mxu0 %v484
    %671 = vmatpush.msra.mxu0 %v483
    %672 = vmatpush.msra.mxu0 %v482
    %673 = vmatpush.msra.mxu0 %v481
    %674 = vmatpush.msra.mxu0 %v480
    %675 = vmatpush.msra.mxu0 %v479
    %676 = vmatpush.msra.mxu0 %v478
    %677 = vmatpush.msra.mxu0 %v477
    %678 = vmatmul.f32.gmra.mxu0 %v639
    %v679 = vpop.f32.mrf.mxu0
    %v680 = vadd.f32 0.0, %v679
    %681 = vmatmul.f32.gmra.mxu0 %v642
    %v682 = vpop.f32.mrf.mxu0
    %v683 = vadd.f32 0.0, %v682
    %684 = vmatmul.f32.gmra.mxu0 %v645
    %v685 = vpop.f32.mrf.mxu0
    %v686 = vadd.f32 0.0, %v685
    %687 = vmatmul.f32.gmra.mxu0 %v648
    %v688 = vpop.f32.mrf.mxu0
    %v689 = vadd.f32 0.0, %v688
    %690 = vmatmul.f32.gmra.mxu0 %v651
    %v691 = vpop.f32.mrf.mxu0
    %v692 = vadd.f32 0.0, %v691
    %693 = vmatmul.f32.gmra.mxu0 %v654
    %v694 = vpop.f32.mrf.mxu0
    %v695 = vadd.f32 0.0, %v694
    %696 = vmatmul.f32.gmra.mxu0 %v657
    %v697 = vpop.f32.mrf.mxu0
    %v698 = vadd.f32 0.0, %v697
    %699 = vmatmul.f32.gmra.mxu0 %v660
    %v700 = vpop.f32.mrf.mxu0
    %v701 = vadd.f32 0.0, %v700
    %702 = vdwg.mxu0
    %v704 = vsel %vm380, %v461, 0
    %v707 = vsel %vm380, %v462, 0
    %v710 = vsel %vm380, %v463, 0
    %v713 = vsel %vm380, %v464, 0
    %v716 = vsel %vm380, %v465, 0
    %v719 = vsel %vm380, %v466, 0
    %v722 = vsel %vm380, %v467, 0
    %v725 = vsel %vm380, %v468, 0
    %727 = vmatpush.msra.mxu0 0.0
    %728 = vmatpush.msra.mxu0 0.0
    %729 = vmatpush.msra.mxu0 0.0
    %730 = vmatpush.msra.mxu0 0.0
    %731 = vmatpush.msra.mxu0 0.0
    %732 = vmatpush.msra.mxu0 0.0
    %733 = vmatpush.msra.mxu0 0.0
    %734 = vmatpush.msra.mxu0 0.0
    %735 = vmatpush.msra.mxu0 %v282
    %736 = vmatpush.msra.mxu0 %v281
    %737 = vmatpush.msra.mxu0 %v280
    %738 = vmatpush.msra.mxu0 %v279
    %739 = vmatpush.msra.mxu0 %v278
    %740 = vmatpush.msra.mxu0 %v277
    %741 = vmatpush.msra.mxu0 %v276
    %742 = vmatpush.msra.mxu0 %v275
    %743 = vmatmul.f32.gmra.mxu0 %v704
    %v744 = vpop.f32.mrf.mxu0
    %v745 = vadd.f32 %v680, %v744
    %746 = vmatmul.f32.gmra.mxu0 %v707
    %v747 = vpop.f32.mrf.mxu0
    %v748 = vadd.f32 %v683, %v747
    %749 = vmatmul.f32.gmra.mxu0 %v710
    %v750 = vpop.f32.mrf.mxu0
    %v751 = vadd.f32 %v686, %v750
    %752 = vmatmul.f32.gmra.mxu0 %v713
    %v753 = vpop.f32.mrf.mxu0
    %v754 = vadd.f32 %v689, %v753
    %755 = vmatmul.f32.gmra.mxu0 %v716
    %v756 = vpop.f32.mrf.mxu0
    %v757 = vadd.f32 %v692, %v756
    %758 = vmatmul.f32.gmra.mxu0 %v719
    %v759 = vpop.f32.mrf.mxu0
    %v760 = vadd.f32 %v695, %v759
    %761 = vmatmul.f32.gmra.mxu0 %v722
    %v762 = vpop.f32.mrf.mxu0
    %v763 = vadd.f32 %v698, %v762
    %764 = vmatmul.f32.gmra.mxu0 %v725
    %v765 = vpop.f32.mrf.mxu0
    %v766 = vadd.f32 %v701, %v765
    %767 = vdwg.mxu0
    %v768 = vsel %vm73, %v212, 0.0
    %v769 = vsel %vm73, %v215, 0.0
    %v770 = vsel %vm73, %v218, 0.0
    %v771 = vsel %vm73, %v221, 0.0
    %v772 = vsel %vm73, %v224, 0.0
    %v773 = vsel %vm73, %v227, 0.0
    %v774 = vsel %vm73, %v230, 0.0
    %v775 = vsel %vm73, %v233, 0.0
    %v776 = vsel %vm73, %v252, 0.0
    %v777 = vsel %vm73, %v254, 0.0
    %v778 = vsel %vm73, %v256, 0.0
    %v779 = vsel %vm73, %v258, 0.0
    %v780 = vsel %vm73, %v260, 0.0
    %v781 = vsel %vm73, %v262, 0.0
    %v782 = vsel %vm73, %v264, 0.0
    %v783 = vsel %vm73, %v266, 0.0
    %v785 = vsel %vm169, %v768, 0
    %v788 = vsel %vm169, %v769, 0
    %v791 = vsel %vm169, %v770, 0
    %v794 = vsel %vm169, %v771, 0
    %v797 = vsel %vm169, %v772, 0
    %v800 = vsel %vm169, %v773, 0
    %v803 = vsel %vm169, %v774, 0
    %v806 = vsel %vm169, %v775, 0
    %808 = vmatpush.xpose.msra.mxu0 0.0
    %809 = vmatpush.xpose.msra.mxu0 0.0
    %810 = vmatpush.xpose.msra.mxu0 0.0
    %811 = vmatpush.xpose.msra.mxu0 0.0
    %812 = vmatpush.xpose.msra.mxu0 0.0
    %813 = vmatpush.xpose.msra.mxu0 0.0
    %814 = vmatpush.xpose.msra.mxu0 0.0
    %815 = vmatpush.xpose.msra.mxu0 0.0
    %816 = vmatpush.xpose.msra.mxu0 %v337
    %817 = vmatpush.xpose.msra.mxu0 %v335
    %818 = vmatpush.xpose.msra.mxu0 %v333
    %819 = vmatpush.xpose.msra.mxu0 %v331
    %820 = vmatpush.xpose.msra.mxu0 %v329
    %821 = vmatpush.xpose.msra.mxu0 %v327
    %822 = vmatpush.xpose.msra.mxu0 %v325
    %823 = vmatpush.xpose.msra.mxu0 %v323
    %824 = vmatmul.f32.gmra.mxu0 %v785
    %v825 = vpop.f32.mrf.mxu0
    %v826 = vadd.f32 %v54, %v825
    %827 = vmatmul.f32.gmra.mxu0 %v788
    %v828 = vpop.f32.mrf.mxu0
    %v829 = vadd.f32 %v55, %v828
    %830 = vmatmul.f32.gmra.mxu0 %v791
    %v831 = vpop.f32.mrf.mxu0
    %v832 = vadd.f32 %v56, %v831
    %833 = vmatmul.f32.gmra.mxu0 %v794
    %v834 = vpop.f32.mrf.mxu0
    %v835 = vadd.f32 %v57, %v834
    %836 = vmatmul.f32.gmra.mxu0 %v797
    %v837 = vpop.f32.mrf.mxu0
    %v838 = vadd.f32 %v58, %v837
    %839 = vmatmul.f32.gmra.mxu0 %v800
    %v840 = vpop.f32.mrf.mxu0
    %v841 = vadd.f32 %v59, %v840
    %842 = vmatmul.f32.gmra.mxu0 %v803
    %v843 = vpop.f32.mrf.mxu0
    %v844 = vadd.f32 %v60, %v843
    %845 = vmatmul.f32.gmra.mxu0 %v806
    %v846 = vpop.f32.mrf.mxu0
    %v847 = vadd.f32 %v61, %v846
    %848 = vdwg.mxu0
    %v849 = vsel %vm380, %v826, -inf
    %850 = vmax.xlane.f32.xlu0 %v849
    %v851 = vpop.xlane.xlu0 %850
    %v852 = vsel %vm380, %v829, -inf
    %853 = vmax.xlane.f32.xlu0 %v852
    %v854 = vpop.xlane.xlu0 %853
    %v855 = vsel %vm380, %v832, -inf
    %856 = vmax.xlane.f32.xlu0 %v855
    %v857 = vpop.xlane.xlu0 %856
    %v858 = vsel %vm380, %v835, -inf
    %859 = vmax.xlane.f32.xlu0 %v858
    %v860 = vpop.xlane.xlu0 %859
    %v861 = vsel %vm380, %v838, -inf
    %862 = vmax.xlane.f32.xlu0 %v861
    %v863 = vpop.xlane.xlu0 %862
    %v864 = vsel %vm380, %v841, -inf
    %865 = vmax.xlane.f32.xlu0 %v864
    %v866 = vpop.xlane.xlu0 %865
    %v867 = vsel %vm380, %v844, -inf
    %868 = vmax.xlane.f32.xlu0 %v867
    %v869 = vpop.xlane.xlu0 %868
    %v870 = vsel %vm380, %v847, -inf
    %871 = vmax.xlane.f32.xlu0 %v870
    %v872 = vpop.xlane.xlu0 %871
    %v873 = vsub.f32 %v826, %v851
    %v874 = vsub.f32 %v829, %v854
    %v875 = vsub.f32 %v832, %v857
    %v876 = vsub.f32 %v835, %v860
    %v877 = vsub.f32 %v838, %v863
    %v878 = vsub.f32 %v841, %v866
    %v879 = vsub.f32 %v844, %v869
    %v880 = vsub.f32 %v847, %v872
    %v881 = vmul.f32 %v873, 1.442695
    %v882 = vpow.pop %v881
    %v883 = vmul.f32 %v874, 1.442695
    %v884 = vpow.pop %v883
    %v885 = vmul.f32 %v875, 1.442695
    %v886 = vpow.pop %v885
    %v887 = vmul.f32 %v876, 1.442695
    %v888 = vpow.pop %v887
    %v889 = vmul.f32 %v877, 1.442695
    %v890 = vpow.pop %v889
    %v891 = vmul.f32 %v878, 1.442695
    %v892 = vpow.pop %v891
    %v893 = vmul.f32 %v879, 1.442695
    %v894 = vpow.pop %v893
    %v895 = vmul.f32 %v880, 1.442695
    %v896 = vpow.pop %v895
    %v897 = vsel %vm380, %v882, 0.0
    %898 = vadd.xlane.f32.xlu0 %v897
    %v899 = vpop.xlane.xlu0 %898
    %v900 = vsel %vm380, %v884, 0.0
    %901 = vadd.xlane.f32.xlu0 %v900
    %v902 = vpop.xlane.xlu0 %901
    %v903 = vsel %vm380, %v886, 0.0
    %904 = vadd.xlane.f32.xlu0 %v903
    %v905 = vpop.xlane.xlu0 %904
    %v906 = vsel %vm380, %v888, 0.0
    %907 = vadd.xlane.f32.xlu0 %v906
    %v908 = vpop.xlane.xlu0 %907
    %v909 = vsel %vm380, %v890, 0.0
    %910 = vadd.xlane.f32.xlu0 %v909
    %v911 = vpop.xlane.xlu0 %910
    %v912 = vsel %vm380, %v892, 0.0
    %913 = vadd.xlane.f32.xlu0 %v912
    %v914 = vpop.xlane.xlu0 %913
    %v915 = vsel %vm380, %v894, 0.0
    %916 = vadd.xlane.f32.xlu0 %v915
    %v917 = vpop.xlane.xlu0 %916
    %v918 = vsel %vm380, %v896, 0.0
    %919 = vadd.xlane.f32.xlu0 %v918
    %v920 = vpop.xlane.xlu0 %919
    %v921 = vrcp.pop %v899
    %v922 = vrcp.pop %v902
    %v923 = vrcp.pop %v905
    %v924 = vrcp.pop %v908
    %v925 = vrcp.pop %v911
    %v926 = vrcp.pop %v914
    %v927 = vrcp.pop %v917
    %v928 = vrcp.pop %v920
    %v929 = vmul.f32 %v882, %v921
    %v930 = vmul.f32 %v884, %v922
    %v931 = vmul.f32 %v886, %v923
    %v932 = vmul.f32 %v888, %v924
    %v933 = vmul.f32 %v890, %v925
    %v934 = vmul.f32 %v892, %v926
    %v935 = vmul.f32 %v894, %v927
    %v936 = vmul.f32 %v896, %v928
    %v938 = vsel %vm380, %v929, 0
    %v941 = vsel %vm380, %v930, 0
    %v944 = vsel %vm380, %v931, 0
    %v947 = vsel %vm380, %v932, 0
    %v950 = vsel %vm380, %v933, 0
    %v953 = vsel %vm380, %v934, 0
    %v956 = vsel %vm380, %v935, 0
    %v959 = vsel %vm380, %v936, 0
    %961 = vmatpush.msra.mxu0 0.0
    %962 = vmatpush.msra.mxu0 0.0
    %963 = vmatpush.msra.mxu0 0.0
    %964 = vmatpush.msra.mxu0 0.0
    %965 = vmatpush.msra.mxu0 0.0
    %966 = vmatpush.msra.mxu0 0.0
    %967 = vmatpush.msra.mxu0 0.0
    %968 = vmatpush.msra.mxu0 0.0
    %969 = vmatpush.msra.mxu0 %v783
    %970 = vmatpush.msra.mxu0 %v782
    %971 = vmatpush.msra.mxu0 %v781
    %972 = vmatpush.msra.mxu0 %v780
    %973 = vmatpush.msra.mxu0 %v779
    %974 = vmatpush.msra.mxu0 %v778
    %975 = vmatpush.msra.mxu0 %v777
    %976 = vmatpush.msra.mxu0 %v776
    %977 = vmatmul.f32.gmra.mxu0 %v938
    %v978 = vpop.f32.mrf.mxu0
    %v979 = vadd.f32 0.0, %v978
    %980 = vmatmul.f32.gmra.mxu0 %v941
    %v981 = vpop.f32.mrf.mxu0
    %v982 = vadd.f32 0.0, %v981
    %983 = vmatmul.f32.gmra.mxu0 %v944
    %v984 = vpop.f32.mrf.mxu0
    %v985 = vadd.f32 0.0, %v984
    %986 = vmatmul.f32.gmra.mxu0 %v947
    %v987 = vpop.f32.mrf.mxu0
    %v988 = vadd.f32 0.0, %v987
    %989 = vmatmul.f32.gmra.mxu0 %v950
    %v990 = vpop.f32.mrf.mxu0
    %v991 = vadd.f32 0.0, %v990
    %992 = vmatmul.f32.gmra.mxu0 %v953
    %v993 = vpop.f32.mrf.mxu0
    %v994 = vadd.f32 0.0, %v993
    %995 = vmatmul.f32.gmra.mxu0 %v956
    %v996 = vpop.f32.mrf.mxu0
    %v997 = vadd.f32 0.0, %v996
    %998 = vmatmul.f32.gmra.mxu0 %v959
    %v999 = vpop.f32.mrf.mxu0
    %v1000 = vadd.f32 0.0, %v999
    %1001 = vdwg.mxu0
    %v1002 = vadd.f32 %v745, %v979
    %v1003 = vadd.f32 %v748, %v982
    %v1004 = vadd.f32 %v751, %v985
    %v1005 = vadd.f32 %v754, %v988
    %v1006 = vadd.f32 %v757, %v991
    %v1007 = vadd.f32 %v760, %v994
    %v1008 = vadd.f32 %v763, %v997
    %v1009 = vadd.f32 %v766, %v1000
    %v1010 = vsel %vm76, %v212, 0.0
    %v1011 = vsel %vm76, %v215, 0.0
    %v1012 = vsel %vm76, %v218, 0.0
    %v1013 = vsel %vm76, %v221, 0.0
    %v1014 = vsel %vm76, %v224, 0.0
    %v1015 = vsel %vm76, %v227, 0.0
    %v1016 = vsel %vm76, %v230, 0.0
    %v1017 = vsel %vm76, %v233, 0.0
    %v1018 = vsel %vm76, %v252, 0.0
    %v1019 = vsel %vm76, %v254, 0.0
    %v1020 = vsel %vm76, %v256, 0.0
    %v1021 = vsel %vm76, %v258, 0.0
    %v1022 = vsel %vm76, %v260, 0.0
    %v1023 = vsel %vm76, %v262, 0.0
    %v1024 = vsel %vm76, %v264, 0.0
    %v1025 = vsel %vm76, %v266, 0.0
    %v1027 = vsel %vm169, %v1010, 0
    %v1030 = vsel %vm169, %v1011, 0
    %v1033 = vsel %vm169, %v1012, 0
    %v1036 = vsel %vm169, %v1013, 0
    %v1039 = vsel %vm169, %v1014, 0
    %v1042 = vsel %vm169, %v1015, 0
    %v1045 = vsel %vm169, %v1016, 0
    %v1048 = vsel %vm169, %v1017, 0
    %1050 = vmatpush.xpose.msra.mxu0 0.0
    %1051 = vmatpush.xpose.msra.mxu0 0.0
    %1052 = vmatpush.xpose.msra.mxu0 0.0
    %1053 = vmatpush.xpose.msra.mxu0 0.0
    %1054 = vmatpush.xpose.msra.mxu0 0.0
    %1055 = vmatpush.xpose.msra.mxu0 0.0
    %1056 = vmatpush.xpose.msra.mxu0 0.0
    %1057 = vmatpush.xpose.msra.mxu0 0.0
    %1058 = vmatpush.xpose.msra.mxu0 %v337
    %1059 = vmatpush.xpose.msra.mxu0 %v335
    %1060 = vmatpush.xpose.msra.mxu0 %v333
    %1061 = vmatpush.xpose.msra.mxu0 %v331
    %1062 = vmatpush.xpose.msra.mxu0 %v329
    %1063 = vmatpush.xpose.msra.mxu0 %v327
    %1064 = vmatpush.xpose.msra.mxu0 %v325
    %1065 = vmatpush.xpose.msra.mxu0 %v323
    %1066 = vmatmul.f32.gmra.mxu0 %v1027
    %v1067 = vpop.f32.mrf.mxu0
    %v1068 = vadd.f32 %v54, %v1067
    %1069 = vmatmul.f32.gmra.mxu0 %v1030
    %v1070 = vpop.f32.mrf.mxu0
    %v1071 = vadd.f32 %v55, %v1070
    %1072 = vmatmul.f32.gmra.mxu0 %v1033
    %v1073 = vpop.f32.mrf.mxu0
    %v1074 = vadd.f32 %v56, %v1073
    %1075 = vmatmul.f32.gmra.mxu0 %v1036
    %v1076 = vpop.f32.mrf.mxu0
    %v1077 = vadd.f32 %v57, %v1076
    %1078 = vmatmul.f32.gmra.mxu0 %v1039
    %v1079 = vpop.f32.mrf.mxu0
    %v1080 = vadd.f32 %v58, %v1079
    %1081 = vmatmul.f32.gmra.mxu0 %v1042
    %v1082 = vpop.f32.mrf.mxu0
    %v1083 = vadd.f32 %v59, %v1082
    %1084 = vmatmul.f32.gmra.mxu0 %v1045
    %v1085 = vpop.f32.mrf.mxu0
    %v1086 = vadd.f32 %v60, %v1085
    %1087 = vmatmul.f32.gmra.mxu0 %v1048
    %v1088 = vpop.f32.mrf.mxu0
    %v1089 = vadd.f32 %v61, %v1088
    %1090 = vdwg.mxu0
    %v1091 = vsel %vm380, %v1068, -inf
    %1092 = vmax.xlane.f32.xlu0 %v1091
    %v1093 = vpop.xlane.xlu0 %1092
    %v1094 = vsel %vm380, %v1071, -inf
    %1095 = vmax.xlane.f32.xlu0 %v1094
    %v1096 = vpop.xlane.xlu0 %1095
    %v1097 = vsel %vm380, %v1074, -inf
    %1098 = vmax.xlane.f32.xlu0 %v1097
    %v1099 = vpop.xlane.xlu0 %1098
    %v1100 = vsel %vm380, %v1077, -inf
    %1101 = vmax.xlane.f32.xlu0 %v1100
    %v1102 = vpop.xlane.xlu0 %1101
    %v1103 = vsel %vm380, %v1080, -inf
    %1104 = vmax.xlane.f32.xlu0 %v1103
    %v1105 = vpop.xlane.xlu0 %1104
    %v1106 = vsel %vm380, %v1083, -inf
    %1107 = vmax.xlane.f32.xlu0 %v1106
    %v1108 = vpop.xlane.xlu0 %1107
    %v1109 = vsel %vm380, %v1086, -inf
    %1110 = vmax.xlane.f32.xlu0 %v1109
    %v1111 = vpop.xlane.xlu0 %1110
    %v1112 = vsel %vm380, %v1089, -inf
    %1113 = vmax.xlane.f32.xlu0 %v1112
    %v1114 = vpop.xlane.xlu0 %1113
    %v1115 = vsub.f32 %v1068, %v1093
    %v1116 = vsub.f32 %v1071, %v1096
    %v1117 = vsub.f32 %v1074, %v1099
    %v1118 = vsub.f32 %v1077, %v1102
    %v1119 = vsub.f32 %v1080, %v1105
    %v1120 = vsub.f32 %v1083, %v1108
    %v1121 = vsub.f32 %v1086, %v1111
    %v1122 = vsub.f32 %v1089, %v1114
    %v1123 = vmul.f32 %v1115, 1.442695
    %v1124 = vpow.pop %v1123
    %v1125 = vmul.f32 %v1116, 1.442695
    %v1126 = vpow.pop %v1125
    %v1127 = vmul.f32 %v1117, 1.442695
    %v1128 = vpow.pop %v1127
    %v1129 = vmul.f32 %v1118, 1.442695
    %v1130 = vpow.pop %v1129
    %v1131 = vmul.f32 %v1119, 1.442695
    %v1132 = vpow.pop %v1131
    %v1133 = vmul.f32 %v1120, 1.442695
    %v1134 = vpow.pop %v1133
    %v1135 = vmul.f32 %v1121, 1.442695
    %v1136 = vpow.pop %v1135
    %v1137 = vmul.f32 %v1122, 1.442695
    %v1138 = vpow.pop %v1137
    %v1139 = vsel %vm380, %v1124, 0.0
    %1140 = vadd.xlane.f32.xlu0 %v1139
    %v1141 = vpop.xlane.xlu0 %1140
    %v1142 = vsel %vm380, %v1126, 0.0
    %1143 = vadd.xlane.f32.xlu0 %v1142
    %v1144 = vpop.xlane.xlu0 %1143
    %v1145 = vsel %vm380, %v1128, 0.0
    %1146 = vadd.xlane.f32.xlu0 %v1145
    %v1147 = vpop.xlane.xlu0 %1146
    %v1148 = vsel %vm380, %v1130, 0.0
    %1149 = vadd.xlane.f32.xlu0 %v1148
    %v1150 = vpop.xlane.xlu0 %1149
    %v1151 = vsel %vm380, %v1132, 0.0
    %1152 = vadd.xlane.f32.xlu0 %v1151
    %v1153 = vpop.xlane.xlu0 %1152
    %v1154 = vsel %vm380, %v1134, 0.0
    %1155 = vadd.xlane.f32.xlu0 %v1154
    %v1156 = vpop.xlane.xlu0 %1155
    %v1157 = vsel %vm380, %v1136, 0.0
    %1158 = vadd.xlane.f32.xlu0 %v1157
    %v1159 = vpop.xlane.xlu0 %1158
    %v1160 = vsel %vm380, %v1138, 0.0
    %1161 = vadd.xlane.f32.xlu0 %v1160
    %v1162 = vpop.xlane.xlu0 %1161
    %v1163 = vrcp.pop %v1141
    %v1164 = vrcp.pop %v1144
    %v1165 = vrcp.pop %v1147
    %v1166 = vrcp.pop %v1150
    %v1167 = vrcp.pop %v1153
    %v1168 = vrcp.pop %v1156
    %v1169 = vrcp.pop %v1159
    %v1170 = vrcp.pop %v1162
    %v1171 = vmul.f32 %v1124, %v1163
    %v1172 = vmul.f32 %v1126, %v1164
    %v1173 = vmul.f32 %v1128, %v1165
    %v1174 = vmul.f32 %v1130, %v1166
    %v1175 = vmul.f32 %v1132, %v1167
    %v1176 = vmul.f32 %v1134, %v1168
    %v1177 = vmul.f32 %v1136, %v1169
    %v1178 = vmul.f32 %v1138, %v1170
    %v1180 = vsel %vm380, %v1171, 0
    %v1183 = vsel %vm380, %v1172, 0
    %v1186 = vsel %vm380, %v1173, 0
    %v1189 = vsel %vm380, %v1174, 0
    %v1192 = vsel %vm380, %v1175, 0
    %v1195 = vsel %vm380, %v1176, 0
    %v1198 = vsel %vm380, %v1177, 0
    %v1201 = vsel %vm380, %v1178, 0
    %1203 = vmatpush.msra.mxu0 0.0
    %1204 = vmatpush.msra.mxu0 0.0
    %1205 = vmatpush.msra.mxu0 0.0
    %1206 = vmatpush.msra.mxu0 0.0
    %1207 = vmatpush.msra.mxu0 0.0
    %1208 = vmatpush.msra.mxu0 0.0
    %1209 = vmatpush.msra.mxu0 0.0
    %1210 = vmatpush.msra.mxu0 0.0
    %1211 = vmatpush.msra.mxu0 %v1025
    %1212 = vmatpush.msra.mxu0 %v1024
    %1213 = vmatpush.msra.mxu0 %v1023
    %1214 = vmatpush.msra.mxu0 %v1022
    %1215 = vmatpush.msra.mxu0 %v1021
    %1216 = vmatpush.msra.mxu0 %v1020
    %1217 = vmatpush.msra.mxu0 %v1019
    %1218 = vmatpush.msra.mxu0 %v1018
    %1219 = vmatmul.f32.gmra.mxu0 %v1180
    %v1220 = vpop.f32.mrf.mxu0
    %v1221 = vadd.f32 0.0, %v1220
    %1222 = vmatmul.f32.gmra.mxu0 %v1183
    %v1223 = vpop.f32.mrf.mxu0
    %v1224 = vadd.f32 0.0, %v1223
    %1225 = vmatmul.f32.gmra.mxu0 %v1186
    %v1226 = vpop.f32.mrf.mxu0
    %v1227 = vadd.f32 0.0, %v1226
    %1228 = vmatmul.f32.gmra.mxu0 %v1189
    %v1229 = vpop.f32.mrf.mxu0
    %v1230 = vadd.f32 0.0, %v1229
    %1231 = vmatmul.f32.gmra.mxu0 %v1192
    %v1232 = vpop.f32.mrf.mxu0
    %v1233 = vadd.f32 0.0, %v1232
    %1234 = vmatmul.f32.gmra.mxu0 %v1195
    %v1235 = vpop.f32.mrf.mxu0
    %v1236 = vadd.f32 0.0, %v1235
    %1237 = vmatmul.f32.gmra.mxu0 %v1198
    %v1238 = vpop.f32.mrf.mxu0
    %v1239 = vadd.f32 0.0, %v1238
    %1240 = vmatmul.f32.gmra.mxu0 %v1201
    %v1241 = vpop.f32.mrf.mxu0
    %v1242 = vadd.f32 0.0, %v1241
    %1243 = vdwg.mxu0
    %v1244 = vadd.f32 %v1002, %v1221
    %v1245 = vadd.f32 %v1003, %v1224
    %v1246 = vadd.f32 %v1004, %v1227
    %v1247 = vadd.f32 %v1005, %v1230
    %v1248 = vadd.f32 %v1006, %v1233
    %v1249 = vadd.f32 %v1007, %v1236
    %v1250 = vadd.f32 %v1008, %v1239
    %v1251 = vadd.f32 %v1009, %v1242
    %v1252 = vld [vmem:[#allocation5 + $0x119] sm:$0x1]
    %v1253 = vperm.slane %v1252, 0
    %v1255 = vsel %vm169, %v1244, 0
    %v1258 = vsel %vm169, %v1245, 0
    %v1261 = vsel %vm169, %v1246, 0
    %v1264 = vsel %vm169, %v1247, 0
    %v1267 = vsel %vm169, %v1248, 0
    %v1270 = vsel %vm169, %v1249, 0
    %v1273 = vsel %vm169, %v1250, 0
    %v1276 = vsel %vm169, %v1251, 0
    %1278 = vmatpush.msra.mxu0 0.0
    %1279 = vmatpush.msra.mxu0 0.0
    %1280 = vmatpush.msra.mxu0 0.0
    %1281 = vmatpush.msra.mxu0 0.0
    %1282 = vmatpush.msra.mxu0 0.0
    %1283 = vmatpush.msra.mxu0 0.0
    %1284 = vmatpush.msra.mxu0 0.0
    %1285 = vmatpush.msra.mxu0 0.0
    %1286 = vmatpush.msra.mxu0 0.0
    %1287 = vmatpush.msra.mxu0 0.0
    %1288 = vmatpush.msra.mxu0 0.0
    %1289 = vmatpush.msra.mxu0 0.0
    %1290 = vmatpush.msra.mxu0 %v158
    %1291 = vmatpush.msra.mxu0 %v157
    %1292 = vmatpush.msra.mxu0 %v156
    %1293 = vmatpush.msra.mxu0 %v155
    %1294 = vmatmul.f32.gmra.mxu0 %v1255
    %v1295 = vpop.f32.mrf.mxu0
    %v1296 = vadd.f32 %v1253, %v1295
    %1297 = vmatmul.f32.gmra.mxu0 %v1258
    %v1298 = vpop.f32.mrf.mxu0
    %v1299 = vadd.f32 %v1253, %v1298
    %1300 = vmatmul.f32.gmra.mxu0 %v1261
    %v1301 = vpop.f32.mrf.mxu0
    %v1302 = vadd.f32 %v1253, %v1301
    %1303 = vmatmul.f32.gmra.mxu0 %v1264
    %v1304 = vpop.f32.mrf.mxu0
    %v1305 = vadd.f32 %v1253, %v1304
    %1306 = vmatmul.f32.gmra.mxu0 %v1267
    %v1307 = vpop.f32.mrf.mxu0
    %v1308 = vadd.f32 %v1253, %v1307
    %1309 = vmatmul.f32.gmra.mxu0 %v1270
    %v1310 = vpop.f32.mrf.mxu0
    %v1311 = vadd.f32 %v1253, %v1310
    %1312 = vmatmul.f32.gmra.mxu0 %v1273
    %v1313 = vpop.f32.mrf.mxu0
    %v1314 = vadd.f32 %v1253, %v1313
    %1315 = vmatmul.f32.gmra.mxu0 %v1276
    %v1316 = vpop.f32.mrf.mxu0
    %v1317 = vadd.f32 %v1253, %v1316
    %1318 = vdwg.mxu0
    %v1319 = vadd.f32 %v128, %v1296
    %v1320 = vadd.f32 %v131, %v1299
    %v1321 = vadd.f32 %v134, %v1302
    %v1322 = vadd.f32 %v137, %v1305
    %v1323 = vadd.f32 %v140, %v1308
    %v1324 = vadd.f32 %v143, %v1311
    %v1325 = vadd.f32 %v146, %v1314
    %v1326 = vadd.f32 %v149, %v1317
    %v1327 = vld [vmem:[#allocation5 + $0x11a] sm:$0x1]
    %v1328 = vld [vmem:[#allocation5 + $0x11b] sm:$0x1]
    %v1329 = vsel %vm169, %v1319, 0.0
    %1330 = vadd.xlane.f32.xlu0 %v1329
    %v1331 = vpop.xlane.xlu0 %1330
    %v1332 = vsel %vm169, %v1320, 0.0
    %1333 = vadd.xlane.f32.xlu0 %v1332
    %v1334 = vpop.xlane.xlu0 %1333
    %v1335 = vsel %vm169, %v1321, 0.0
    %1336 = vadd.xlane.f32.xlu0 %v1335
    %v1337 = vpop.xlane.xlu0 %1336
    %v1338 = vsel %vm169, %v1322, 0.0
    %1339 = vadd.xlane.f32.xlu0 %v1338
    %v1340 = vpop.xlane.xlu0 %1339
    %v1341 = vsel %vm169, %v1323, 0.0
    %1342 = vadd.xlane.f32.xlu0 %v1341
    %v1343 = vpop.xlane.xlu0 %1342
    %v1344 = vsel %vm169, %v1324, 0.0
    %1345 = vadd.xlane.f32.xlu0 %v1344
    %v1346 = vpop.xlane.xlu0 %1345
    %v1347 = vsel %vm169, %v1325, 0.0
    %1348 = vadd.xlane.f32.xlu0 %v1347
    %v1349 = vpop.xlane.xlu0 %1348
    %v1350 = vsel %vm169, %v1326, 0.0
    %1351 = vadd.xlane.f32.xlu0 %v1350
    %v1352 = vpop.xlane.xlu0 %1351
    %v1353 = vrcp.pop 32.0
    %v1354 = vmul.f32 32.0, %v1353
    %v1355 = vsub.f32 1.0, %v1354
    %v1356 = vmul.f32 %v1353, %v1355
    %v1357 = vadd.f32 %v1353, %v1356
    %vm1358 = vweird.f32 %v1353
    %v1359 = vsel %vm1358, %v1353, %v1357
    %v1360 = vmul.f32 %v1331, %v1359
    %v1361 = vmul.f32 %v1334, %v1359
    %v1362 = vmul.f32 %v1337, %v1359
    %v1363 = vmul.f32 %v1340, %v1359
    %v1364 = vmul.f32 %v1343, %v1359
    %v1365 = vmul.f32 %v1346, %v1359
    %v1366 = vmul.f32 %v1349, %v1359
    %v1367 = vmul.f32 %v1352, %v1359
    %v1368 = vsub.f32 %v1319, %v1360
    %v1369 = vsub.f32 %v1320, %v1361
    %v1370 = vsub.f32 %v1321, %v1362
    %v1371 = vsub.f32 %v1322, %v1363
    %v1372 = vsub.f32 %v1323, %v1364
    %v1373 = vsub.f32 %v1324, %v1365
    %v1374 = vsub.f32 %v1325, %v1366
    %v1375 = vsub.f32 %v1326, %v1367
    %v1376 = vmul.f32 %v1368, %v1368
    %v1377 = vmul.f32 %v1369, %v1369
    %v1378 = vmul.f32 %v1370, %v1370
    %v1379 = vmul.f32 %v1371, %v1371
    %v1380 = vmul.f32 %v1372, %v1372
    %v1381 = vmul.f32 %v1373, %v1373
    %v1382 = vmul.f32 %v1374, %v1374
    %v1383 = vmul.f32 %v1375, %v1375
    %v1384 = vsel %vm169, %v1376, 0.0
    %1385 = vadd.xlane.f32.xlu0 %v1384
    %v1386 = vpop.xlane.xlu0 %1385
    %v1387 = vsel %vm169, %v1377, 0.0
    %1388 = vadd.xlane.f32.xlu0 %v1387
    %v1389 = vpop.xlane.xlu0 %1388
    %v1390 = vsel %vm169, %v1378, 0.0
    %1391 = vadd.xlane.f32.xlu0 %v1390
    %v1392 = vpop.xlane.xlu0 %1391
    %v1393 = vsel %vm169, %v1379, 0.0
    %1394 = vadd.xlane.f32.xlu0 %v1393
    %v1395 = vpop.xlane.xlu0 %1394
    %v1396 = vsel %vm169, %v1380, 0.0
    %1397 = vadd.xlane.f32.xlu0 %v1396
    %v1398 = vpop.xlane.xlu0 %1397
    %v1399 = vsel %vm169, %v1381, 0.0
    %1400 = vadd.xlane.f32.xlu0 %v1399
    %v1401 = vpop.xlane.xlu0 %1400
    %v1402 = vsel %vm169, %v1382, 0.0
    %1403 = vadd.xlane.f32.xlu0 %v1402
    %v1404 = vpop.xlane.xlu0 %1403
    %v1405 = vsel %vm169, %v1383, 0.0
    %1406 = vadd.xlane.f32.xlu0 %v1405
    %v1407 = vpop.xlane.xlu0 %1406
    %v1408 = vmul.f32 %v1386, %v1359
    %v1409 = vmul.f32 %v1389, %v1359
    %v1410 = vmul.f32 %v1392, %v1359
    %v1411 = vmul.f32 %v1395, %v1359
    %v1412 = vmul.f32 %v1398, %v1359
    %v1413 = vmul.f32 %v1401, %v1359
    %v1414 = vmul.f32 %v1404, %v1359
    %v1415 = vmul.f32 %v1407, %v1359
    %v1416 = vadd.f32 %v1408, 1e-05
    %v1417 = vadd.f32 %v1409, 1e-05
    %v1418 = vadd.f32 %v1410, 1e-05
    %v1419 = vadd.f32 %v1411, 1e-05
    %v1420 = vadd.f32 %v1412, 1e-05
    %v1421 = vadd.f32 %v1413, 1e-05
    %v1422 = vadd.f32 %v1414, 1e-05
    %v1423 = vadd.f32 %v1415, 1e-05
    %v1424 = vrsqrt.pop %v1416
    %v1425 = vmul.f32 %v1424, %v1416
    %v1426 = vmul.f32 %v1425, %v1424
    %v1427 = vmul.f32 0.5, %v1426
    %v1428 = vsub.f32 1.5, %v1427
    %v1429 = vmul.f32 %v1424, %v1428
    %vm1430 = vweird.f32 %v1416
    %vm1431 = vweird.f32 %v1424
    %vm1432 = vmor %vm1430, %vm1431
    %v1433 = vsel %vm1432, %v1424, %v1429
    %v1434 = vrsqrt.pop %v1417
    %v1435 = vmul.f32 %v1434, %v1417
    %v1436 = vmul.f32 %v1435, %v1434
    %v1437 = vmul.f32 0.5, %v1436
    %v1438 = vsub.f32 1.5, %v1437
    %v1439 = vmul.f32 %v1434, %v1438
    %vm1440 = vweird.f32 %v1417
    %vm1441 = vweird.f32 %v1434
    %vm1442 = vmor %vm1440, %vm1441
    %v1443 = vsel %vm1442, %v1434, %v1439
    %v1444 = vrsqrt.pop %v1418
    %v1445 = vmul.f32 %v1444, %v1418
    %v1446 = vmul.f32 %v1445, %v1444
    %v1447 = vmul.f32 0.5, %v1446
    %v1448 = vsub.f32 1.5, %v1447
    %v1449 = vmul.f32 %v1444, %v1448
    %vm1450 = vweird.f32 %v1418
    %vm1451 = vweird.f32 %v1444
    %vm1452 = vmor %vm1450, %vm1451
    %v1453 = vsel %vm1452, %v1444, %v1449
    %v1454 = vrsqrt.pop %v1419
    %v1455 = vmul.f32 %v1454, %v1419
    %v1456 = vmul.f32 %v1455, %v1454
    %v1457 = vmul.f32 0.5, %v1456
    %v1458 = vsub.f32 1.5, %v1457
    %v1459 = vmul.f32 %v1454, %v1458
    %vm1460 = vweird.f32 %v1419
    %vm1461 = vweird.f32 %v1454
    %vm1462 = vmor %vm1460, %vm1461
    %v1463 = vsel %vm1462, %v1454, %v1459
    %v1464 = vrsqrt.pop %v1420
    %v1465 = vmul.f32 %v1464, %v1420
    %v1466 = vmul.f32 %v1465, %v1464
    %v1467 = vmul.f32 0.5, %v1466
    %v1468 = vsub.f32 1.5, %v1467
    %v1469 = vmul.f32 %v1464, %v1468
    %vm1470 = vweird.f32 %v1420
    %vm1471 = vweird.f32 %v1464
    %vm1472 = vmor %vm1470, %vm1471
    %v1473 = vsel %vm1472, %v1464, %v1469
    %v1474 = vrsqrt.pop %v1421
    %v1475 = vmul.f32 %v1474, %v1421
    %v1476 = vmul.f32 %v1475, %v1474
    %v1477 = vmul.f32 0.5, %v1476
    %v1478 = vsub.f32 1.5, %v1477
    %v1479 = vmul.f32 %v1474, %v1478
    %vm1480 = vweird.f32 %v1421
    %vm1481 = vweird.f32 %v1474
    %vm1482 = vmor %vm1480, %vm1481
    %v1483 = vsel %vm1482, %v1474, %v1479
    %v1484 = vrsqrt.pop %v1422
    %v1485 = vmul.f32 %v1484, %v1422
    %v1486 = vmul.f32 %v1485, %v1484
    %v1487 = vmul.f32 0.5, %v1486
    %v1488 = vsub.f32 1.5, %v1487
    %v1489 = vmul.f32 %v1484, %v1488
    %vm1490 = vweird.f32 %v1422
    %vm1491 = vweird.f32 %v1484
    %vm1492 = vmor %vm1490, %vm1491
    %v1493 = vsel %vm1492, %v1484, %v1489
    %v1494 = vrsqrt.pop %v1423
    %v1495 = vmul.f32 %v1494, %v1423
    %v1496 = vmul.f32 %v1495, %v1494
    %v1497 = vmul.f32 0.5, %v1496
    %v1498 = vsub.f32 1.5, %v1497
    %v1499 = vmul.f32 %v1494, %v1498
    %vm1500 = vweird.f32 %v1423
    %vm1501 = vweird.f32 %v1494
    %vm1502 = vmor %vm1500, %vm1501
    %v1503 = vsel %vm1502, %v1494, %v1499
    %v1504 = vmul.f32 %v1368, %v1433
    %v1505 = vmul.f32 %v1369, %v1443
    %v1506 = vmul.f32 %v1370, %v1453
    %v1507 = vmul.f32 %v1371, %v1463
    %v1508 = vmul.f32 %v1372, %v1473
    %v1509 = vmul.f32 %v1373, %v1483
    %v1510 = vmul.f32 %v1374, %v1493
    %v1511 = vmul.f32 %v1375, %v1503
    %v1512 = vperm.slane %v1327, 0
    %v1513 = vmul.f32 %v1504, %v1512
    %v1514 = vmul.f32 %v1505, %v1512
    %v1515 = vmul.f32 %v1506, %v1512
    %v1516 = vmul.f32 %v1507, %v1512
    %v1517 = vmul.f32 %v1508, %v1512
    %v1518 = vmul.f32 %v1509, %v1512
    %v1519 = vmul.f32 %v1510, %v1512
    %v1520 = vmul.f32 %v1511, %v1512
    %v1521 = vperm.slane %v1328, 0
    %v1522 = vadd.f32 %v1513, %v1521
    %v1523 = vadd.f32 %v1514, %v1521
    %v1524 = vadd.f32 %v1515, %v1521
    %v1525 = vadd.f32 %v1516, %v1521
    %v1526 = vadd.f32 %v1517, %v1521
    %v1527 = vadd.f32 %v1518, %v1521
    %v1528 = vadd.f32 %v1519, %v1521
    %v1529 = vadd.f32 %v1520, %v1521
    %v1530 = vld [vmem:[#allocation5 + $0x11e] sm:$0x1]
    %v1531 = vperm.slane %v1530, 0
    %v1533 = vsel %vm169, %v1522, 0
    %v1536 = vsel %vm169, %v1523, 0
    %v1539 = vsel %vm169, %v1524, 0
    %v1542 = vsel %vm169, %v1525, 0
    %v1545 = vsel %vm169, %v1526, 0
    %v1548 = vsel %vm169, %v1527, 0
    %v1551 = vsel %vm169, %v1528, 0
    %v1554 = vsel %vm169, %v1529, 0
    %1556 = vmatpush.msra.mxu0 0.0
    %1557 = vmatpush.msra.mxu0 0.0
    %1558 = vmatpush.msra.mxu0 0.0
    %1559 = vmatpush.msra.mxu0 0.0
    %1560 = vmatpush.msra.mxu0 0.0
    %1561 = vmatpush.msra.mxu0 0.0
    %1562 = vmatpush.msra.mxu0 0.0
    %1563 = vmatpush.msra.mxu0 0.0
    %1564 = vmatpush.msra.mxu0 0.0
    %1565 = vmatpush.msra.mxu0 0.0
    %1566 = vmatpush.msra.mxu0 0.0
    %1567 = vmatpush.msra.mxu0 0.0
    %1568 = vmatpush.msra.mxu0 %v162
    %1569 = vmatpush.msra.mxu0 %v161
    %1570 = vmatpush.msra.mxu0 %v160
    %1571 = vmatpush.msra.mxu0 %v159
    %1572 = vmatmul.f32.gmra.mxu0 %v1533
    %v1573 = vpop.f32.mrf.mxu0
    %v1574 = vadd.f32 %v1531, %v1573
    %1575 = vmatmul.f32.gmra.mxu0 %v1536
    %v1576 = vpop.f32.mrf.mxu0
    %v1577 = vadd.f32 %v1531, %v1576
    %1578 = vmatmul.f32.gmra.mxu0 %v1539
    %v1579 = vpop.f32.mrf.mxu0
    %v1580 = vadd.f32 %v1531, %v1579
    %1581 = vmatmul.f32.gmra.mxu0 %v1542
    %v1582 = vpop.f32.mrf.mxu0
    %v1583 = vadd.f32 %v1531, %v1582
    %1584 = vmatmul.f32.gmra.mxu0 %v1545
    %v1585 = vpop.f32.mrf.mxu0
    %v1586 = vadd.f32 %v1531, %v1585
    %1587 = vmatmul.f32.gmra.mxu0 %v1548
    %v1588 = vpop.f32.mrf.mxu0
    %v1589 = vadd.f32 %v1531, %v1588
    %1590 = vmatmul.f32.gmra.mxu0 %v1551
    %v1591 = vpop.f32.mrf.mxu0
    %v1592 = vadd.f32 %v1531, %v1591
    %1593 = vmatmul.f32.gmra.mxu0 %v1554
    %v1594 = vpop.f32.mrf.mxu0
    %v1595 = vadd.f32 %v1531, %v1594
    %1596 = vdwg.mxu0
    %v1597 = vmax.f32 %v1574, 0.0
    %v1598 = vmax.f32 %v1577, 0.0
    %v1599 = vmax.f32 %v1580, 0.0
    %v1600 = vmax.f32 %v1583, 0.0
    %v1601 = vmax.f32 %v1586, 0.0
    %v1602 = vmax.f32 %v1589, 0.0
    %v1603 = vmax.f32 %v1592, 0.0
    %v1604 = vmax.f32 %v1595, 0.0
    %v1605 = vld [vmem:[#allocation5 + $0x11f] sm:$0x1]
    %v1606 = vperm.slane %v1605, 0
    %v1608 = vsel %vm169, %v1597, 0
    %v1611 = vsel %vm169, %v1598, 0
    %v1614 = vsel %vm169, %v1599, 0
    %v1617 = vsel %vm169, %v1600, 0
    %v1620 = vsel %vm169, %v1601, 0
    %v1623 = vsel %vm169, %v1602, 0
    %v1626 = vsel %vm169, %v1603, 0
    %v1629 = vsel %vm169, %v1604, 0
    %1631 = vmatpush.msra.mxu0 0.0
    %1632 = vmatpush.msra.mxu0 0.0
    %1633 = vmatpush.msra.mxu0 0.0
    %1634 = vmatpush.msra.mxu0 0.0
    %1635 = vmatpush.msra.mxu0 0.0
    %1636 = vmatpush.msra.mxu0 0.0
    %1637 = vmatpush.msra.mxu0 0.0
    %1638 = vmatpush.msra.mxu0 0.0
    %1639 = vmatpush.msra.mxu0 0.0
    %1640 = vmatpush.msra.mxu0 0.0
    %1641 = vmatpush.msra.mxu0 0.0
    %1642 = vmatpush.msra.mxu0 0.0
    %1643 = vmatpush.msra.mxu0 %v166
    %1644 = vmatpush.msra.mxu0 %v165
    %1645 = vmatpush.msra.mxu0 %v164
    %1646 = vmatpush.msra.mxu0 %v163
    %1647 = vmatmul.f32.gmra.mxu0 %v1608
    %v1648 = vpop.f32.mrf.mxu0
    %v1649 = vadd.f32 %v1606, %v1648
    %1650 = vmatmul.f32.gmra.mxu0 %v1611
    %v1651 = vpop.f32.mrf.mxu0
    %v1652 = vadd.f32 %v1606, %v1651
    %1653 = vmatmul.f32.gmra.mxu0 %v1614
    %v1654 = vpop.f32.mrf.mxu0
    %v1655 = vadd.f32 %v1606, %v1654
    %1656 = vmatmul.f32.gmra.mxu0 %v1617
    %v1657 = vpop.f32.mrf.mxu0
    %v1658 = vadd.f32 %v1606, %v1657
    %1659 = vmatmul.f32.gmra.mxu0 %v1620
    %v1660 = vpop.f32.mrf.mxu0
    %v1661 = vadd.f32 %v1606, %v1660
    %1662 = vmatmul.f32.gmra.mxu0 %v1623
    %v1663 = vpop.f32.mrf.mxu0
    %v1664 = vadd.f32 %v1606, %v1663
    %1665 = vmatmul.f32.gmra.mxu0 %v1626
    %v1666 = vpop.f32.mrf.mxu0
    %v1667 = vadd.f32 %v1606, %v1666
    %1668 = vmatmul.f32.gmra.mxu0 %v1629
    %v1669 = vpop.f32.mrf.mxu0
    %v1670 = vadd.f32 %v1606, %v1669
    %1671 = vdwg.mxu0
    %v1672 = vadd.f32 %v1522, %v1649
    %v1673 = vadd.f32 %v1523, %v1652
    %v1674 = vadd.f32 %v1524, %v1655
    %v1675 = vadd.f32 %v1525, %v1658
    %v1676 = vadd.f32 %v1526, %v1661
    %v1677 = vadd.f32 %v1527, %v1664
    %v1678 = vadd.f32 %v1528, %v1667
    %v1679 = vadd.f32 %v1529, %v1670
    %v1680 = vld [vmem:[#allocation5 + $0x11c] sm:$0x1]
    %v1681 = vld [vmem:[#allocation5 + $0x11d] sm:$0x1]
    %v1682 = vsel %vm169, %v1672, 0.0
    %1683 = vadd.xlane.f32.xlu0 %v1682
    %v1684 = vpop.xlane.xlu0 %1683
    %v1685 = vsel %vm169, %v1673, 0.0
    %1686 = vadd.xlane.f32.xlu0 %v1685
    %v1687 = vpop.xlane.xlu0 %1686
    %v1688 = vsel %vm169, %v1674, 0.0
    %1689 = vadd.xlane.f32.xlu0 %v1688
    %v1690 = vpop.xlane.xlu0 %1689
    %v1691 = vsel %vm169, %v1675, 0.0
    %1692 = vadd.xlane.f32.xlu0 %v1691
    %v1693 = vpop.xlane.xlu0 %1692
    %v1694 = vsel %vm169, %v1676, 0.0
    %1695 = vadd.xlane.f32.xlu0 %v1694
    %v1696 = vpop.xlane.xlu0 %1695
    %v1697 = vsel %vm169, %v1677, 0.0
    %1698 = vadd.xlane.f32.xlu0 %v1697
    %v1699 = vpop.xlane.xlu0 %1698
    %v1700 = vsel %vm169, %v1678, 0.0
    %1701 = vadd.xlane.f32.xlu0 %v1700
    %v1702 = vpop.xlane.xlu0 %1701
    %v1703 = vsel %vm169, %v1679, 0.0
    %1704 = vadd.xlane.f32.xlu0 %v1703
    %v1705 = vpop.xlane.xlu0 %1704
    %v1706 = vmul.f32 %v1684, %v1359
    %v1707 = vmul.f32 %v1687, %v1359
    %v1708 = vmul.f32 %v1690, %v1359
    %v1709 = vmul.f32 %v1693, %v1359
    %v1710 = vmul.f32 %v1696, %v1359
    %v1711 = vmul.f32 %v1699, %v1359
    %v1712 = vmul.f32 %v1702, %v1359
    %v1713 = vmul.f32 %v1705, %v1359
    %v1714 = vsub.f32 %v1672, %v1706
    %v1715 = vsub.f32 %v1673, %v1707
    %v1716 = vsub.f32 %v1674, %v1708
    %v1717 = vsub.f32 %v1675, %v1709
    %v1718 = vsub.f32 %v1676, %v1710
    %v1719 = vsub.f32 %v1677, %v1711
    %v1720 = vsub.f32 %v1678, %v1712
    %v1721 = vsub.f32 %v1679, %v1713
    %v1722 = vmul.f32 %v1714, %v1714
    %v1723 = vmul.f32 %v1715, %v1715
    %v1724 = vmul.f32 %v1716, %v1716
    %v1725 = vmul.f32 %v1717, %v1717
    %v1726 = vmul.f32 %v1718, %v1718
    %v1727 = vmul.f32 %v1719, %v1719
    %v1728 = vmul.f32 %v1720, %v1720
    %v1729 = vmul.f32 %v1721, %v1721
    %v1730 = vsel %vm169, %v1722, 0.0
    %1731 = vadd.xlane.f32.xlu0 %v1730
    %v1732 = vpop.xlane.xlu0 %1731
    %v1733 = vsel %vm169, %v1723, 0.0
    %1734 = vadd.xlane.f32.xlu0 %v1733
    %v1735 = vpop.xlane.xlu0 %1734
    %v1736 = vsel %vm169, %v1724, 0.0
    %1737 = vadd.xlane.f32.xlu0 %v1736
    %v1738 = vpop.xlane.xlu0 %1737
    %v1739 = vsel %vm169, %v1725, 0.0
    %1740 = vadd.xlane.f32.xlu0 %v1739
    %v1741 = vpop.xlane.xlu0 %1740
    %v1742 = vsel %vm169, %v1726, 0.0
    %1743 = vadd.xlane.f32.xlu0 %v1742
    %v1744 = vpop.xlane.xlu0 %1743
    %v1745 = vsel %vm169, %v1727, 0.0
    %1746 = vadd.xlane.f32.xlu0 %v1745
    %v1747 = vpop.xlane.xlu0 %1746
    %v1748 = vsel %vm169, %v1728, 0.0
    %1749 = vadd.xlane.f32.xlu0 %v1748
    %v1750 = vpop.xlane.xlu0 %1749
    %v1751 = vsel %vm169, %v1729, 0.0
    %1752 = vadd.xlane.f32.xlu0 %v1751
    %v1753 = vpop.xlane.xlu0 %1752
    %v1754 = vmul.f32 %v1732, %v1359
    %v1755 = vmul.f32 %v1735, %v1359
    %v1756 = vmul.f32 %v1738, %v1359
    %v1757 = vmul.f32 %v1741, %v1359
    %v1758 = vmul.f32 %v1744, %v1359
    %v1759 = vmul.f32 %v1747, %v1359
    %v1760 = vmul.f32 %v1750, %v1359
    %v1761 = vmul.f32 %v1753, %v1359
    %v1762 = vadd.f32 %v1754, 1e-05
    %v1763 = vadd.f32 %v1755, 1e-05
    %v1764 = vadd.f32 %v1756, 1e-05
    %v1765 = vadd.f32 %v1757, 1e-05
    %v1766 = vadd.f32 %v1758, 1e-05
    %v1767 = vadd.f32 %v1759, 1e-05
    %v1768 = vadd.f32 %v1760, 1e-05
    %v1769 = vadd.f32 %v1761, 1e-05
    %v1770 = vrsqrt.pop %v1762
    %v1771 = vmul.f32 %v1770, %v1762
    %v1772 = vmul.f32 %v1771, %v1770
    %v1773 = vmul.f32 0.5, %v1772
    %v1774 = vsub.f32 1.5, %v1773
    %v1775 = vmul.f32 %v1770, %v1774
    %vm1776 = vweird.f32 %v1762
    %vm1777 = vweird.f32 %v1770
    %vm1778 = vmor %vm1776, %vm1777
    %v1779 = vsel %vm1778, %v1770, %v1775
    %v1780 = vrsqrt.pop %v1763
    %v1781 = vmul.f32 %v1780, %v1763
    %v1782 = vmul.f32 %v1781, %v1780
    %v1783 = vmul.f32 0.5, %v1782
    %v1784 = vsub.f32 1.5, %v1783
    %v1785 = vmul.f32 %v1780, %v1784
    %vm1786 = vweird.f32 %v1763
    %vm1787 = vweird.f32 %v1780
    %vm1788 = vmor %vm1786, %vm1787
    %v1789 = vsel %vm1788, %v1780, %v1785
    %v1790 = vrsqrt.pop %v1764
    %v1791 = vmul.f32 %v1790, %v1764
    %v1792 = vmul.f32 %v1791, %v1790
    %v1793 = vmul.f32 0.5, %v1792
    %v1794 = vsub.f32 1.5, %v1793
    %v1795 = vmul.f32 %v1790, %v1794
    %vm1796 = vweird.f32 %v1764
    %vm1797 = vweird.f32 %v1790
    %vm1798 = vmor %vm1796, %vm1797
    %v1799 = vsel %vm1798, %v1790, %v1795
    %v1800 = vrsqrt.pop %v1765
    %v1801 = vmul.f32 %v1800, %v1765
    %v1802 = vmul.f32 %v1801, %v1800
    %v1803 = vmul.f32 0.5, %v1802
    %v1804 = vsub.f32 1.5, %v1803
    %v1805 = vmul.f32 %v1800, %v1804
    %vm1806 = vweird.f32 %v1765
    %vm1807 = vweird.f32 %v1800
    %vm1808 = vmor %vm1806, %vm1807
    %v1809 = vsel %vm1808, %v1800, %v1805
    %v1810 = vrsqrt.pop %v1766
    %v1811 = vmul.f32 %v1810, %v1766
    %v1812 = vmul.f32 %v1811, %v1810
    %v1813 = vmul.f32 0.5, %v1812
    %v1814 = vsub.f32 1.5, %v1813
    %v1815 = vmul.f32 %v1810, %v1814
    %vm1816 = vweird.f32 %v1766
    %vm1817 = vweird.f32 %v1810
    %vm1818 = vmor %vm1816, %vm1817
    %v1819 = vsel %vm1818, %v1810, %v1815
    %v1820 = vrsqrt.pop %v1767
    %v1821 = vmul.f32 %v1820, %v1767
    %v1822 = vmul.f32 %v1821, %v1820
    %v1823 = vmul.f32 0.5, %v1822
    %v1824 = vsub.f32 1.5, %v1823
    %v1825 = vmul.f32 %v1820, %v1824
    %vm1826 = vweird.f32 %v1767
    %vm1827 = vweird.f32 %v1820
    %vm1828 = vmor %vm1826, %vm1827
    %v1829 = vsel %vm1828, %v1820, %v1825
    %v1830 = vrsqrt.pop %v1768
    %v1831 = vmul.f32 %v1830, %v1768
    %v1832 = vmul.f32 %v1831, %v1830
    %v1833 = vmul.f32 0.5, %v1832
    %v1834 = vsub.f32 1.5, %v1833
    %v1835 = vmul.f32 %v1830, %v1834
    %vm1836 = vweird.f32 %v1768
    %vm1837 = vweird.f32 %v1830
    %vm1838 = vmor %vm1836, %vm1837
    %v1839 = vsel %vm1838, %v1830, %v1835
    %v1840 = vrsqrt.pop %v1769
    %v1841 = vmul.f32 %v1840, %v1769
    %v1842 = vmul.f32 %v1841, %v1840
    %v1843 = vmul.f32 0.5, %v1842
    %v1844 = vsub.f32 1.5, %v1843
    %v1845 = vmul.f32 %v1840, %v1844
    %vm1846 = vweird.f32 %v1769
    %vm1847 = vweird.f32 %v1840
    %vm1848 = vmor %vm1846, %vm1847
    %v1849 = vsel %vm1848, %v1840, %v1845
    %v1850 = vmul.f32 %v1714, %v1779
    %v1851 = vmul.f32 %v1715, %v1789
    %v1852 = vmul.f32 %v1716, %v1799
    %v1853 = vmul.f32 %v1717, %v1809
    %v1854 = vmul.f32 %v1718, %v1819
    %v1855 = vmul.f32 %v1719, %v1829
    %v1856 = vmul.f32 %v1720, %v1839
    %v1857 = vmul.f32 %v1721, %v1849
    %v1858 = vperm.slane %v1680, 0
    %v1859 = vmul.f32 %v1850, %v1858
    %v1860 = vmul.f32 %v1851, %v1858
    %v1861 = vmul.f32 %v1852, %v1858
    %v1862 = vmul.f32 %v1853, %v1858
    %v1863 = vmul.f32 %v1854, %v1858
    %v1864 = vmul.f32 %v1855, %v1858
    %v1865 = vmul.f32 %v1856, %v1858
    %v1866 = vmul.f32 %v1857, %v1858
    %v1867 = vperm.slane %v1681, 0
    %v1868 = vadd.f32 %v1859, %v1867
    %v1869 = vadd.f32 %v1860, %v1867
    %v1870 = vadd.f32 %v1861, %v1867
    %v1871 = vadd.f32 %v1862, %v1867
    %v1872 = vadd.f32 %v1863, %v1867
    %v1873 = vadd.f32 %v1864, %v1867
    %v1874 = vadd.f32 %v1865, %v1867
    %v1875 = vadd.f32 %v1866, %v1867
    %v1876 = vld [vmem:[#allocation5 + $0x120] sm:$0xff]
    %v1877 = vld [vmem:[#allocation5 + $0x128] sm:$0xff]
    %v1878 = vld [vmem:[#allocation5 + $0x130] sm:$0xff]
    %v1879 = vld [vmem:[#allocation5 + $0x138] sm:$0xff]
    %v1880 = vld [vmem:[#allocation5 + $0x140] sm:$0xff]
    %v1881 = vld [vmem:[#allocation5 + $0x148] sm:$0xff]
    %v1882 = vld [vmem:[#allocation5 + $0x150] sm:$0xff]
    %v1883 = vld [vmem:[#allocation5 + $0x158] sm:$0xff]
    %v1884 = vld [vmem:[#allocation5 + $0x160] sm:$0xff]
    %v1885 = vld [vmem:[#allocation5 + $0x168] sm:$0xff]
    %v1886 = vld [vmem:[#allocation5 + $0x170] sm:$0xff]
    %v1887 = vld [vmem:[#allocation5 + $0x178] sm:$0xff]
    %v1888 = vld [vmem:[#allocation5 + $0x180] sm:$0xff]
    %v1889 = vld [vmem:[#allocation5 + $0x188] sm:$0xff]
    %v1890 = vld [vmem:[#allocation5 + $0x190] sm:$0xff]
    %v1891 = vld [vmem:[#allocation5 + $0x198] sm:$0xff]
    %v1892 = vld [vmem:[#allocation5 + $0x1a0] sm:$0x1]
    %v1893 = vperm.slane %v1892, 0
    %v1895 = vsel %vm169, %v1868, 0
    %v1898 = vsel %vm169, %v1869, 0
    %v1901 = vsel %vm169, %v1870, 0
    %v1904 = vsel %vm169, %v1871, 0
    %v1907 = vsel %vm169, %v1872, 0
    %v1910 = vsel %vm169, %v1873, 0
    %v1913 = vsel %vm169, %v1874, 0
    %v1916 = vsel %vm169, %v1875, 0
    %1918 = vmatpush.msra.mxu0 0.0
    %1919 = vmatpush.msra.mxu0 0.0
    %1920 = vmatpush.msra.mxu0 0.0
    %1921 = vmatpush.msra.mxu0 0.0
    %1922 = vmatpush.msra.mxu0 0.0
    %1923 = vmatpush.msra.mxu0 0.0
    %1924 = vmatpush.msra.mxu0 0.0
    %1925 = vmatpush.msra.mxu0 0.0
    %1926 = vmatpush.msra.mxu0 0.0
    %1927 = vmatpush.msra.mxu0 0.0
    %1928 = vmatpush.msra.mxu0 0.0
    %1929 = vmatpush.msra.mxu0 0.0
    %1930 = vmatpush.msra.mxu0 %v1879
    %1931 = vmatpush.msra.mxu0 %v1878
    %1932 = vmatpush.msra.mxu0 %v1877
    %1933 = vmatpush.msra.mxu0 %v1876
    %1934 = vmatmul.f32.gmra.mxu0 %v1895
    %v1935 = vpop.f32.mrf.mxu0
    %v1936 = vadd.f32 %v1893, %v1935
    %1937 = vmatmul.f32.gmra.mxu0 %v1898
    %v1938 = vpop.f32.mrf.mxu0
    %v1939 = vadd.f32 %v1893, %v1938
    %1940 = vmatmul.f32.gmra.mxu0 %v1901
    %v1941 = vpop.f32.mrf.mxu0
    %v1942 = vadd.f32 %v1893, %v1941
    %1943 = vmatmul.f32.gmra.mxu0 %v1904
    %v1944 = vpop.f32.mrf.mxu0
    %v1945 = vadd.f32 %v1893, %v1944
    %1946 = vmatmul.f32.gmra.mxu0 %v1907
    %v1947 = vpop.f32.mrf.mxu0
    %v1948 = vadd.f32 %v1893, %v1947
    %1949 = vmatmul.f32.gmra.mxu0 %v1910
    %v1950 = vpop.f32.mrf.mxu0
    %v1951 = vadd.f32 %v1893, %v1950
    %1952 = vmatmul.f32.gmra.mxu0 %v1913
    %v1953 = vpop.f32.mrf.mxu0
    %v1954 = vadd.f32 %v1893, %v1953
    %1955 = vmatmul.f32.gmra.mxu0 %v1916
    %v1956 = vpop.f32.mrf.mxu0
    %v1957 = vadd.f32 %v1893, %v1956
    %1958 = vdwg.mxu0
    %v1959 = vsel %vm67, %v1936, 0.0
    %v1960 = vsel %vm67, %v1939, 0.0
    %v1961 = vsel %vm67, %v1942, 0.0
    %v1962 = vsel %vm67, %v1945, 0.0
    %v1963 = vsel %vm67, %v1948, 0.0
    %v1964 = vsel %vm67, %v1951, 0.0
    %v1965 = vsel %vm67, %v1954, 0.0
    %v1966 = vsel %vm67, %v1957, 0.0
    %1975 = vrot.lane.b32.xlu0 %v1936, 64
    %v1976 = vpop.permute.xlu0 %1975
    %1977 = vrot.lane.b32.xlu0 %v1939, 64
    %v1978 = vpop.permute.xlu0 %1977
    %1979 = vrot.lane.b32.xlu0 %v1942, 64
    %v1980 = vpop.permute.xlu0 %1979
    %1981 = vrot.lane.b32.xlu0 %v1945, 64
    %v1982 = vpop.permute.xlu0 %1981
    %1983 = vrot.lane.b32.xlu0 %v1948, 64
    %v1984 = vpop.permute.xlu0 %1983
    %1985 = vrot.lane.b32.xlu0 %v1951, 64
    %v1986 = vpop.permute.xlu0 %1985
    %1987 = vrot.lane.b32.xlu0 %v1954, 64
    %v1988 = vpop.permute.xlu0 %1987
    %1989 = vrot.lane.b32.xlu0 %v1957, 64
    %v1990 = vpop.permute.xlu0 %1989
    %v1999 = vsel %vm67, %v1976, 0.0
    %v2000 = vsel %vm67, %v1978, 0.0
    %v2001 = vsel %vm67, %v1980, 0.0
    %v2002 = vsel %vm67, %v1982, 0.0
    %v2003 = vsel %vm67, %v1984, 0.0
    %v2004 = vsel %vm67, %v1986, 0.0
    %v2005 = vsel %vm67, %v1988, 0.0
    %v2006 = vsel %vm67, %v1990, 0.0
    %2007 = vrot.lane.b32.xlu0 %v1936, 96
    %v2008 = vpop.permute.xlu0 %2007
    %2009 = vrot.lane.b32.xlu0 %v1939, 96
    %v2010 = vpop.permute.xlu0 %2009
    %2011 = vrot.lane.b32.xlu0 %v1942, 96
    %v2012 = vpop.permute.xlu0 %2011
    %2013 = vrot.lane.b32.xlu0 %v1945, 96
    %v2014 = vpop.permute.xlu0 %2013
    %2015 = vrot.lane.b32.xlu0 %v1948, 96
    %v2016 = vpop.permute.xlu0 %2015
    %2017 = vrot.lane.b32.xlu0 %v1951, 96
    %v2018 = vpop.permute.xlu0 %2017
    %2019 = vrot.lane.b32.xlu0 %v1954, 96
    %v2020 = vpop.permute.xlu0 %2019
    %2021 = vrot.lane.b32.xlu0 %v1957, 96
    %v2022 = vpop.permute.xlu0 %2021
    %v2024 = vsel %vm169, %v1959, 0
    %v2027 = vsel %vm169, %v1960, 0
    %v2030 = vsel %vm169, %v1961, 0
    %v2033 = vsel %vm169, %v1962, 0
    %v2036 = vsel %vm169, %v1963, 0
    %v2039 = vsel %vm169, %v1964, 0
    %v2042 = vsel %vm169, %v1965, 0
    %v2045 = vsel %vm169, %v1966, 0
    %v2047 = vsel %vm169, %v2008, 0
    %v2049 = vsel %vm169, %v2010, 0
    %v2051 = vsel %vm169, %v2012, 0
    %v2053 = vsel %vm169, %v2014, 0
    %v2055 = vsel %vm169, %v2016, 0
    %v2057 = vsel %vm169, %v2018, 0
    %v2059 = vsel %vm169, %v2020, 0
    %v2061 = vsel %vm169, %v2022, 0
    %2063 = vmatpush.xpose.msra.mxu0 0.0
    %2064 = vmatpush.xpose.msra.mxu0 0.0
    %2065 = vmatpush.xpose.msra.mxu0 0.0
    %2066 = vmatpush.xpose.msra.mxu0 0.0
    %2067 = vmatpush.xpose.msra.mxu0 0.0
    %2068 = vmatpush.xpose.msra.mxu0 0.0
    %2069 = vmatpush.xpose.msra.mxu0 0.0
    %2070 = vmatpush.xpose.msra.mxu0 0.0
    %2071 = vmatpush.xpose.msra.mxu0 %v2061
    %2072 = vmatpush.xpose.msra.mxu0 %v2059
    %2073 = vmatpush.xpose.msra.mxu0 %v2057
    %2074 = vmatpush.xpose.msra.mxu0 %v2055
    %2075 = vmatpush.xpose.msra.mxu0 %v2053
    %2076 = vmatpush.xpose.msra.mxu0 %v2051
    %2077 = vmatpush.xpose.msra.mxu0 %v2049
    %2078 = vmatpush.xpose.msra.mxu0 %v2047
    %2079 = vmatmul.f32.gmra.mxu0 %v2024
    %v2080 = vpop.f32.mrf.mxu0
    %v2081 = vadd.f32 %v54, %v2080
    %2082 = vmatmul.f32.gmra.mxu0 %v2027
    %v2083 = vpop.f32.mrf.mxu0
    %v2084 = vadd.f32 %v55, %v2083
    %2085 = vmatmul.f32.gmra.mxu0 %v2030
    %v2086 = vpop.f32.mrf.mxu0
    %v2087 = vadd.f32 %v56, %v2086
    %2088 = vmatmul.f32.gmra.mxu0 %v2033
    %v2089 = vpop.f32.mrf.mxu0
    %v2090 = vadd.f32 %v57, %v2089
    %2091 = vmatmul.f32.gmra.mxu0 %v2036
    %v2092 = vpop.f32.mrf.mxu0
    %v2093 = vadd.f32 %v58, %v2092
    %2094 = vmatmul.f32.gmra.mxu0 %v2039
    %v2095 = vpop.f32.mrf.mxu0
    %v2096 = vadd.f32 %v59, %v2095
    %2097 = vmatmul.f32.gmra.mxu0 %v2042
    %v2098 = vpop.f32.mrf.mxu0
    %v2099 = vadd.f32 %v60, %v2098
    %2100 = vmatmul.f32.gmra.mxu0 %v2045
    %v2101 = vpop.f32.mrf.mxu0
    %v2102 = vadd.f32 %v61, %v2101
    %2103 = vdwg.mxu0
    %v2104 = vsel %vm380, %v2081, -inf
    %2105 = vmax.xlane.f32.xlu0 %v2104
    %v2106 = vpop.xlane.xlu0 %2105
    %v2107 = vsel %vm380, %v2084, -inf
    %2108 = vmax.xlane.f32.xlu0 %v2107
    %v2109 = vpop.xlane.xlu0 %2108
    %v2110 = vsel %vm380, %v2087, -inf
    %2111 = vmax.xlane.f32.xlu0 %v2110
    %v2112 = vpop.xlane.xlu0 %2111
    %v2113 = vsel %vm380, %v2090, -inf
    %2114 = vmax.xlane.f32.xlu0 %v2113
    %v2115 = vpop.xlane.xlu0 %2114
    %v2116 = vsel %vm380, %v2093, -inf
    %2117 = vmax.xlane.f32.xlu0 %v2116
    %v2118 = vpop.xlane.xlu0 %2117
    %v2119 = vsel %vm380, %v2096, -inf
    %2120 = vmax.xlane.f32.xlu0 %v2119
    %v2121 = vpop.xlane.xlu0 %2120
    %v2122 = vsel %vm380, %v2099, -inf
    %2123 = vmax.xlane.f32.xlu0 %v2122
    %v2124 = vpop.xlane.xlu0 %2123
    %v2125 = vsel %vm380, %v2102, -inf
    %2126 = vmax.xlane.f32.xlu0 %v2125
    %v2127 = vpop.xlane.xlu0 %2126
    %v2128 = vsub.f32 %v2081, %v2106
    %v2129 = vsub.f32 %v2084, %v2109
    %v2130 = vsub.f32 %v2087, %v2112
    %v2131 = vsub.f32 %v2090, %v2115
    %v2132 = vsub.f32 %v2093, %v2118
    %v2133 = vsub.f32 %v2096, %v2121
    %v2134 = vsub.f32 %v2099, %v2124
    %v2135 = vsub.f32 %v2102, %v2127
    %v2136 = vmul.f32 %v2128, 1.442695
    %v2137 = vpow.pop %v2136
    %v2138 = vmul.f32 %v2129, 1.442695
    %v2139 = vpow.pop %v2138
    %v2140 = vmul.f32 %v2130, 1.442695
    %v2141 = vpow.pop %v2140
    %v2142 = vmul.f32 %v2131, 1.442695
    %v2143 = vpow.pop %v2142
    %v2144 = vmul.f32 %v2132, 1.442695
    %v2145 = vpow.pop %v2144
    %v2146 = vmul.f32 %v2133, 1.442695
    %v2147 = vpow.pop %v2146
    %v2148 = vmul.f32 %v2134, 1.442695
    %v2149 = vpow.pop %v2148
    %v2150 = vmul.f32 %v2135, 1.442695
    %v2151 = vpow.pop %v2150
    %v2152 = vsel %vm380, %v2137, 0.0
    %2153 = vadd.xlane.f32.xlu0 %v2152
    %v2154 = vpop.xlane.xlu0 %2153
    %v2155 = vsel %vm380, %v2139, 0.0
    %2156 = vadd.xlane.f32.xlu0 %v2155
    %v2157 = vpop.xlane.xlu0 %2156
    %v2158 = vsel %vm380, %v2141, 0.0
    %2159 = vadd.xlane.f32.xlu0 %v2158
    %v2160 = vpop.xlane.xlu0 %2159
    %v2161 = vsel %vm380, %v2143, 0.0
    %2162 = vadd.xlane.f32.xlu0 %v2161
    %v2163 = vpop.xlane.xlu0 %2162
    %v2164 = vsel %vm380, %v2145, 0.0
    %2165 = vadd.xlane.f32.xlu0 %v2164
    %v2166 = vpop.xlane.xlu0 %2165
    %v2167 = vsel %vm380, %v2147, 0.0
    %2168 = vadd.xlane.f32.xlu0 %v2167
    %v2169 = vpop.xlane.xlu0 %2168
    %v2170 = vsel %vm380, %v2149, 0.0
    %2171 = vadd.xlane.f32.xlu0 %v2170
    %v2172 = vpop.xlane.xlu0 %2171
    %v2173 = vsel %vm380, %v2151, 0.0
    %2174 = vadd.xlane.f32.xlu0 %v2173
    %v2175 = vpop.xlane.xlu0 %2174
    %v2176 = vrcp.pop %v2154
    %v2177 = vrcp.pop %v2157
    %v2178 = vrcp.pop %v2160
    %v2179 = vrcp.pop %v2163
    %v2180 = vrcp.pop %v2166
    %v2181 = vrcp.pop %v2169
    %v2182 = vrcp.pop %v2172
    %v2183 = vrcp.pop %v2175
    %v2184 = vmul.f32 %v2137, %v2176
    %v2185 = vmul.f32 %v2139, %v2177
    %v2186 = vmul.f32 %v2141, %v2178
    %v2187 = vmul.f32 %v2143, %v2179
    %v2188 = vmul.f32 %v2145, %v2180
    %v2189 = vmul.f32 %v2147, %v2181
    %v2190 = vmul.f32 %v2149, %v2182
    %v2191 = vmul.f32 %v2151, %v2183
    %v2192 = vsel %vm70, %v1936, 0.0
    %v2193 = vsel %vm70, %v1939, 0.0
    %v2194 = vsel %vm70, %v1942, 0.0
    %v2195 = vsel %vm70, %v1945, 0.0
    %v2196 = vsel %vm70, %v1948, 0.0
    %v2197 = vsel %vm70, %v1951, 0.0
    %v2198 = vsel %vm70, %v1954, 0.0
    %v2199 = vsel %vm70, %v1957, 0.0
    %v2200 = vsel %vm70, %v1976, 0.0
    %v2201 = vsel %vm70, %v1978, 0.0
    %v2202 = vsel %vm70, %v1980, 0.0
    %v2203 = vsel %vm70, %v1982, 0.0
    %v2204 = vsel %vm70, %v1984, 0.0
    %v2205 = vsel %vm70, %v1986, 0.0
    %v2206 = vsel %vm70, %v1988, 0.0
    %v2207 = vsel %vm70, %v1990, 0.0
    %v2209 = vsel %vm169, %v2192, 0
    %v2212 = vsel %vm169, %v2193, 0
    %v2215 = vsel %vm169, %v2194, 0
    %v2218 = vsel %vm169, %v2195, 0
    %v2221 = vsel %vm169, %v2196, 0
    %v2224 = vsel %vm169, %v2197, 0
    %v2227 = vsel %vm169, %v2198, 0
    %v2230 = vsel %vm169, %v2199, 0
    %2232 = vmatpush.xpose.msra.mxu0 0.0
    %2233 = vmatpush.xpose.msra.mxu0 0.0
    %2234 = vmatpush.xpose.msra.mxu0 0.0
    %2235 = vmatpush.xpose.msra.mxu0 0.0
    %2236 = vmatpush.xpose.msra.mxu0 0.0
    %2237 = vmatpush.xpose.msra.mxu0 0.0
    %2238 = vmatpush.xpose.msra.mxu0 0.0
    %2239 = vmatpush.xpose.msra.mxu0 0.0
    %2240 = vmatpush.xpose.msra.mxu0 %v2061
    %2241 = vmatpush.xpose.msra.mxu0 %v2059
    %2242 = vmatpush.xpose.msra.mxu0 %v2057
    %2243 = vmatpush.xpose.msra.mxu0 %v2055
    %2244 = vmatpush.xpose.msra.mxu0 %v2053
    %2245 = vmatpush.xpose.msra.mxu0 %v2051
    %2246 = vmatpush.xpose.msra.mxu0 %v2049
    %2247 = vmatpush.xpose.msra.mxu0 %v2047
    %2248 = vmatmul.f32.gmra.mxu0 %v2209
    %v2249 = vpop.f32.mrf.mxu0
    %v2250 = vadd.f32 %v54, %v2249
    %2251 = vmatmul.f32.gmra.mxu0 %v2212
    %v2252 = vpop.f32.mrf.mxu0
    %v2253 = vadd.f32 %v55, %v2252
    %2254 = vmatmul.f32.gmra.mxu0 %v2215
    %v2255 = vpop.f32.mrf.mxu0
    %v2256 = vadd.f32 %v56, %v2255
    %2257 = vmatmul.f32.gmra.mxu0 %v2218
    %v2258 = vpop.f32.mrf.mxu0
    %v2259 = vadd.f32 %v57, %v2258
    %2260 = vmatmul.f32.gmra.mxu0 %v2221
    %v2261 = vpop.f32.mrf.mxu0
    %v2262 = vadd.f32 %v58, %v2261
    %2263 = vmatmul.f32.gmra.mxu0 %v2224
    %v2264 = vpop.f32.mrf.mxu0
    %v2265 = vadd.f32 %v59, %v2264
    %2266 = vmatmul.f32.gmra.mxu0 %v2227
    %v2267 = vpop.f32.mrf.mxu0
    %v2268 = vadd.f32 %v60, %v2267
    %2269 = vmatmul.f32.gmra.mxu0 %v2230
    %v2270 = vpop.f32.mrf.mxu0
    %v2271 = vadd.f32 %v61, %v2270
    %2272 = vdwg.mxu0
    %v2273 = vsel %vm380, %v2250, -inf
    %2274 = vmax.xlane.f32.xlu0 %v2273
    %v2275 = vpop.xlane.xlu0 %2274
    %v2276 = vsel %vm380, %v2253, -inf
    %2277 = vmax.xlane.f32.xlu0 %v2276
    %v2278 = vpop.xlane.xlu0 %2277
    %v2279 = vsel %vm380, %v2256, -inf
    %2280 = vmax.xlane.f32.xlu0 %v2279
    %v2281 = vpop.xlane.xlu0 %2280
    %v2282 = vsel %vm380, %v2259, -inf
    %2283 = vmax.xlane.f32.xlu0 %v2282
    %v2284 = vpop.xlane.xlu0 %2283
    %v2285 = vsel %vm380, %v2262, -inf
    %2286 = vmax.xlane.f32.xlu0 %v2285
    %v2287 = vpop.xlane.xlu0 %2286
    %v2288 = vsel %vm380, %v2265, -inf
    %2289 = vmax.xlane.f32.xlu0 %v2288
    %v2290 = vpop.xlane.xlu0 %2289
    %v2291 = vsel %vm380, %v2268, -inf
    %2292 = vmax.xlane.f32.xlu0 %v2291
    %v2293 = vpop.xlane.xlu0 %2292
    %v2294 = vsel %vm380, %v2271, -inf
    %2295 = vmax.xlane.f32.xlu0 %v2294
    %v2296 = vpop.xlane.xlu0 %2295
    %v2297 = vsub.f32 %v2250, %v2275
    %v2298 = vsub.f32 %v2253, %v2278
    %v2299 = vsub.f32 %v2256, %v2281
    %v2300 = vsub.f32 %v2259, %v2284
    %v2301 = vsub.f32 %v2262, %v2287
    %v2302 = vsub.f32 %v2265, %v2290
    %v2303 = vsub.f32 %v2268, %v2293
    %v2304 = vsub.f32 %v2271, %v2296
    %v2305 = vmul.f32 %v2297, 1.442695
    %v2306 = vpow.pop %v2305
    %v2307 = vmul.f32 %v2298, 1.442695
    %v2308 = vpow.pop %v2307
    %v2309 = vmul.f32 %v2299, 1.442695
    %v2310 = vpow.pop %v2309
    %v2311 = vmul.f32 %v2300, 1.442695
    %v2312 = vpow.pop %v2311
    %v2313 = vmul.f32 %v2301, 1.442695
    %v2314 = vpow.pop %v2313
    %v2315 = vmul.f32 %v2302, 1.442695
    %v2316 = vpow.pop %v2315
    %v2317 = vmul.f32 %v2303, 1.442695
    %v2318 = vpow.pop %v2317
    %v2319 = vmul.f32 %v2304, 1.442695
    %v2320 = vpow.pop %v2319
    %v2321 = vsel %vm380, %v2306, 0.0
    %2322 = vadd.xlane.f32.xlu0 %v2321
    %v2323 = vpop.xlane.xlu0 %2322
    %v2324 = vsel %vm380, %v2308, 0.0
    %2325 = vadd.xlane.f32.xlu0 %v2324
    %v2326 = vpop.xlane.xlu0 %2325
    %v2327 = vsel %vm380, %v2310, 0.0
    %2328 = vadd.xlane.f32.xlu0 %v2327
    %v2329 = vpop.xlane.xlu0 %2328
    %v2330 = vsel %vm380, %v2312, 0.0
    %2331 = vadd.xlane.f32.xlu0 %v2330
    %v2332 = vpop.xlane.xlu0 %2331
    %v2333 = vsel %vm380, %v2314, 0.0
    %2334 = vadd.xlane.f32.xlu0 %v2333
    %v2335 = vpop.xlane.xlu0 %2334
    %v2336 = vsel %vm380, %v2316, 0.0
    %2337 = vadd.xlane.f32.xlu0 %v2336
    %v2338 = vpop.xlane.xlu0 %2337
    %v2339 = vsel %vm380, %v2318, 0.0
    %2340 = vadd.xlane.f32.xlu0 %v2339
    %v2341 = vpop.xlane.xlu0 %2340
    %v2342 = vsel %vm380, %v2320, 0.0
    %2343 = vadd.xlane.f32.xlu0 %v2342
    %v2344 = vpop.xlane.xlu0 %2343
    %v2345 = vrcp.pop %v2323
    %v2346 = vrcp.pop %v2326
    %v2347 = vrcp.pop %v2329
    %v2348 = vrcp.pop %v2332
    %v2349 = vrcp.pop %v2335
    %v2350 = vrcp.pop %v2338
    %v2351 = vrcp.pop %v2341
    %v2352 = vrcp.pop %v2344
    %v2353 = vmul.f32 %v2306, %v2345
    %v2354 = vmul.f32 %v2308, %v2346
    %v2355 = vmul.f32 %v2310, %v2347
    %v2356 = vmul.f32 %v2312, %v2348
    %v2357 = vmul.f32 %v2314, %v2349
    %v2358 = vmul.f32 %v2316, %v2350
    %v2359 = vmul.f32 %v2318, %v2351
    %v2360 = vmul.f32 %v2320, %v2352
    %v2362 = vsel %vm380, %v2353, 0
    %v2365 = vsel %vm380, %v2354, 0
    %v2368 = vsel %vm380, %v2355, 0
    %v2371 = vsel %vm380, %v2356, 0
    %v2374 = vsel %vm380, %v2357, 0
    %v2377 = vsel %vm380, %v2358, 0
    %v2380 = vsel %vm380, %v2359, 0
    %v2383 = vsel %vm380, %v2360, 0
    %2385 = vmatpush.msra.mxu0 0.0
    %2386 = vmatpush.msra.mxu0 0.0
    %2387 = vmatpush.msra.mxu0 0.0
    %2388 = vmatpush.msra.mxu0 0.0
    %2389 = vmatpush.msra.mxu0 0.0
    %2390 = vmatpush.msra.mxu0 0.0
    %2391 = vmatpush.msra.mxu0 0.0
    %2392 = vmatpush.msra.mxu0 0.0
    %2393 = vmatpush.msra.mxu0 %v2207
    %2394 = vmatpush.msra.mxu0 %v2206
    %2395 = vmatpush.msra.mxu0 %v2205
    %2396 = vmatpush.msra.mxu0 %v2204
    %2397 = vmatpush.msra.mxu0 %v2203
    %2398 = vmatpush.msra.mxu0 %v2202
    %2399 = vmatpush.msra.mxu0 %v2201
    %2400 = vmatpush.msra.mxu0 %v2200
    %2401 = vmatmul.f32.gmra.mxu0 %v2362
    %v2402 = vpop.f32.mrf.mxu0
    %v2403 = vadd.f32 0.0, %v2402
    %2404 = vmatmul.f32.gmra.mxu0 %v2365
    %v2405 = vpop.f32.mrf.mxu0
    %v2406 = vadd.f32 0.0, %v2405
    %2407 = vmatmul.f32.gmra.mxu0 %v2368
    %v2408 = vpop.f32.mrf.mxu0
    %v2409 = vadd.f32 0.0, %v2408
    %2410 = vmatmul.f32.gmra.mxu0 %v2371
    %v2411 = vpop.f32.mrf.mxu0
    %v2412 = vadd.f32 0.0, %v2411
    %2413 = vmatmul.f32.gmra.mxu0 %v2374
    %v2414 = vpop.f32.mrf.mxu0
    %v2415 = vadd.f32 0.0, %v2414
    %2416 = vmatmul.f32.gmra.mxu0 %v2377
    %v2417 = vpop.f32.mrf.mxu0
    %v2418 = vadd.f32 0.0, %v2417
    %2419 = vmatmul.f32.gmra.mxu0 %v2380
    %v2420 = vpop.f32.mrf.mxu0
    %v2421 = vadd.f32 0.0, %v2420
    %2422 = vmatmul.f32.gmra.mxu0 %v2383
    %v2423 = vpop.f32.mrf.mxu0
    %v2424 = vadd.f32 0.0, %v2423
    %2425 = vdwg.mxu0
    %v2427 = vsel %vm380, %v2184, 0
    %v2430 = vsel %vm380, %v2185, 0
    %v2433 = vsel %vm380, %v2186, 0
    %v2436 = vsel %vm380, %v2187, 0
    %v2439 = vsel %vm380, %v2188, 0
    %v2442 = vsel %vm380, %v2189, 0
    %v2445 = vsel %vm380, %v2190, 0
    %v2448 = vsel %vm380, %v2191, 0
    %2450 = vmatpush.msra.mxu0 0.0
    %2451 = vmatpush.msra.mxu0 0.0
    %2452 = vmatpush.msra.mxu0 0.0
    %2453 = vmatpush.msra.mxu0 0.0
    %2454 = vmatpush.msra.mxu0 0.0
    %2455 = vmatpush.msra.mxu0 0.0
    %2456 = vmatpush.msra.mxu0 0.0
    %2457 = vmatpush.msra.mxu0 0.0
    %2458 = vmatpush.msra.mxu0 %v2006
    %2459 = vmatpush.msra.mxu0 %v2005
    %2460 = vmatpush.msra.mxu0 %v2004
    %2461 = vmatpush.msra.mxu0 %v2003
    %2462 = vmatpush.msra.mxu0 %v2002
    %2463 = vmatpush.msra.mxu0 %v2001
    %2464 = vmatpush.msra.mxu0 %v2000
    %2465 = vmatpush.msra.mxu0 %v1999
    %2466 = vmatmul.f32.gmra.mxu0 %v2427
    %v2467 = vpop.f32.mrf.mxu0
    %v2468 = vadd.f32 %v2403, %v2467
    %2469 = vmatmul.f32.gmra.mxu0 %v2430
    %v2470 = vpop.f32.mrf.mxu0
    %v2471 = vadd.f32 %v2406, %v2470
    %2472 = vmatmul.f32.gmra.mxu0 %v2433
    %v2473 = vpop.f32.mrf.mxu0
    %v2474 = vadd.f32 %v2409, %v2473
    %2475 = vmatmul.f32.gmra.mxu0 %v2436
    %v2476 = vpop.f32.mrf.mxu0
    %v2477 = vadd.f32 %v2412, %v2476
    %2478 = vmatmul.f32.gmra.mxu0 %v2439
    %v2479 = vpop.f32.mrf.mxu0
    %v2480 = vadd.f32 %v2415, %v2479
    %2481 = vmatmul.f32.gmra.mxu0 %v2442
    %v2482 = vpop.f32.mrf.mxu0
    %v2483 = vadd.f32 %v2418, %v2482
    %2484 = vmatmul.f32.gmra.mxu0 %v2445
    %v2485 = vpop.f32.mrf.mxu0
    %v2486 = vadd.f32 %v2421, %v2485
    %2487 = vmatmul.f32.gmra.mxu0 %v2448
    %v2488 = vpop.f32.mrf.mxu0
    %v2489 = vadd.f32 %v2424, %v2488
    %2490 = vdwg.mxu0
    %v2491 = vsel %vm73, %v1936, 0.0
    %v2492 = vsel %vm73, %v1939, 0.0
    %v2493 = vsel %vm73, %v1942, 0.0
    %v2494 = vsel %vm73, %v1945, 0.0
    %v2495 = vsel %vm73, %v1948, 0.0
    %v2496 = vsel %vm73, %v1951, 0.0
    %v2497 = vsel %vm73, %v1954, 0.0
    %v2498 = vsel %vm73, %v1957, 0.0
    %v2499 = vsel %vm73, %v1976, 0.0
    %v2500 = vsel %vm73, %v1978, 0.0
    %v2501 = vsel %vm73, %v1980, 0.0
    %v2502 = vsel %vm73, %v1982, 0.0
    %v2503 = vsel %vm73, %v1984, 0.0
    %v2504 = vsel %vm73, %v1986, 0.0
    %v2505 = vsel %vm73, %v1988, 0.0
    %v2506 = vsel %vm73, %v1990, 0.0
    %v2508 = vsel %vm169, %v2491, 0
    %v2511 = vsel %vm169, %v2492, 0
    %v2514 = vsel %vm169, %v2493, 0
    %v2517 = vsel %vm169, %v2494, 0
    %v2520 = vsel %vm169, %v2495, 0
    %v2523 = vsel %vm169, %v2496, 0
    %v2526 = vsel %vm169, %v2497, 0
    %v2529 = vsel %vm169, %v2498, 0
    %2531 = vmatpush.xpose.msra.mxu0 0.0
    %2532 = vmatpush.xpose.msra.mxu0 0.0
    %2533 = vmatpush.xpose.msra.mxu0 0.0
    %2534 = vmatpush.xpose.msra.mxu0 0.0
    %2535 = vmatpush.xpose.msra.mxu0 0.0
    %2536 = vmatpush.xpose.msra.mxu0 0.0
    %2537 = vmatpush.xpose.msra.mxu0 0.0
    %2538 = vmatpush.xpose.msra.mxu0 0.0
    %2539 = vmatpush.xpose.msra.mxu0 %v2061
    %2540 = vmatpush.xpose.msra.mxu0 %v2059
    %2541 = vmatpush.xpose.msra.mxu0 %v2057
    %2542 = vmatpush.xpose.msra.mxu0 %v2055
    %2543 = vmatpush.xpose.msra.mxu0 %v2053
    %2544 = vmatpush.xpose.msra.mxu0 %v2051
    %2545 = vmatpush.xpose.msra.mxu0 %v2049
    %2546 = vmatpush.xpose.msra.mxu0 %v2047
    %2547 = vmatmul.f32.gmra.mxu0 %v2508
    %v2548 = vpop.f32.mrf.mxu0
    %v2549 = vadd.f32 %v54, %v2548
    %2550 = vmatmul.f32.gmra.mxu0 %v2511
    %v2551 = vpop.f32.mrf.mxu0
    %v2552 = vadd.f32 %v55, %v2551
    %2553 = vmatmul.f32.gmra.mxu0 %v2514
    %v2554 = vpop.f32.mrf.mxu0
    %v2555 = vadd.f32 %v56, %v2554
    %2556 = vmatmul.f32.gmra.mxu0 %v2517
    %v2557 = vpop.f32.mrf.mxu0
    %v2558 = vadd.f32 %v57, %v2557
    %2559 = vmatmul.f32.gmra.mxu0 %v2520
    %v2560 = vpop.f32.mrf.mxu0
    %v2561 = vadd.f32 %v58, %v2560
    %2562 = vmatmul.f32.gmra.mxu0 %v2523
    %v2563 = vpop.f32.mrf.mxu0
    %v2564 = vadd.f32 %v59, %v2563
    %2565 = vmatmul.f32.gmra.mxu0 %v2526
    %v2566 = vpop.f32.mrf.mxu0
    %v2567 = vadd.f32 %v60, %v2566
    %2568 = vmatmul.f32.gmra.mxu0 %v2529
    %v2569 = vpop.f32.mrf.mxu0
    %v2570 = vadd.f32 %v61, %v2569
    %2571 = vdwg.mxu0
    %v2572 = vsel %vm380, %v2549, -inf
    %2573 = vmax.xlane.f32.xlu0 %v2572
    %v2574 = vpop.xlane.xlu0 %2573
    %v2575 = vsel %vm380, %v2552, -inf
    %2576 = vmax.xlane.f32.xlu0 %v2575
    %v2577 = vpop.xlane.xlu0 %2576
    %v2578 = vsel %vm380, %v2555, -inf
    %2579 = vmax.xlane.f32.xlu0 %v2578
    %v2580 = vpop.xlane.xlu0 %2579
    %v2581 = vsel %vm380, %v2558, -inf
    %2582 = vmax.xlane.f32.xlu0 %v2581
    %v2583 = vpop.xlane.xlu0 %2582
    %v2584 = vsel %vm380, %v2561, -inf
    %2585 = vmax.xlane.f32.xlu0 %v2584
    %v2586 = vpop.xlane.xlu0 %2585
    %v2587 = vsel %vm380, %v2564, -inf
    %2588 = vmax.xlane.f32.xlu0 %v2587
    %v2589 = vpop.xlane.xlu0 %2588
    %v2590 = vsel %vm380, %v2567, -inf
    %2591 = vmax.xlane.f32.xlu0 %v2590
    %v2592 = vpop.xlane.xlu0 %2591
    %v2593 = vsel %vm380, %v2570, -inf
    %2594 = vmax.xlane.f32.xlu0 %v2593
    %v2595 = vpop.xlane.xlu0 %2594
    %v2596 = vsub.f32 %v2549, %v2574
    %v2597 = vsub.f32 %v2552, %v2577
    %v2598 = vsub.f32 %v2555, %v2580
    %v2599 = vsub.f32 %v2558, %v2583
    %v2600 = vsub.f32 %v2561, %v2586
    %v2601 = vsub.f32 %v2564, %v2589
    %v2602 = vsub.f32 %v2567, %v2592
    %v2603 = vsub.f32 %v2570, %v2595
    %v2604 = vmul.f32 %v2596, 1.442695
    %v2605 = vpow.pop %v2604
    %v2606 = vmul.f32 %v2597, 1.442695
    %v2607 = vpow.pop %v2606
    %v2608 = vmul.f32 %v2598, 1.442695
    %v2609 = vpow.pop %v2608
    %v2610 = vmul.f32 %v2599, 1.442695
    %v2611 = vpow.pop %v2610
    %v2612 = vmul.f32 %v2600, 1.442695
    %v2613 = vpow.pop %v2612
    %v2614 = vmul.f32 %v2601, 1.442695
    %v2615 = vpow.pop %v2614
    %v2616 = vmul.f32 %v2602, 1.442695
    %v2617 = vpow.pop %v2616
    %v2618 = vmul.f32 %v2603, 1.442695
    %v2619 = vpow.pop %v2618
    %v2620 = vsel %vm380, %v2605, 0.0
    %2621 = vadd.xlane.f32.xlu0 %v2620
    %v2622 = vpop.xlane.xlu0 %2621
    %v2623 = vsel %vm380, %v2607, 0.0
    %2624 = vadd.xlane.f32.xlu0 %v2623
    %v2625 = vpop.xlane.xlu0 %2624
    %v2626 = vsel %vm380, %v2609, 0.0
    %2627 = vadd.xlane.f32.xlu0 %v2626
    %v2628 = vpop.xlane.xlu0 %2627
    %v2629 = vsel %vm380, %v2611, 0.0
    %2630 = vadd.xlane.f32.xlu0 %v2629
    %v2631 = vpop.xlane.xlu0 %2630
    %v2632 = vsel %vm380, %v2613, 0.0
    %2633 = vadd.xlane.f32.xlu0 %v2632
    %v2634 = vpop.xlane.xlu0 %2633
    %v2635 = vsel %vm380, %v2615, 0.0
    %2636 = vadd.xlane.f32.xlu0 %v2635
    %v2637 = vpop.xlane.xlu0 %2636
    %v2638 = vsel %vm380, %v2617, 0.0
    %2639 = vadd.xlane.f32.xlu0 %v2638
    %v2640 = vpop.xlane.xlu0 %2639
    %v2641 = vsel %vm380, %v2619, 0.0
    %2642 = vadd.xlane.f32.xlu0 %v2641
    %v2643 = vpop.xlane.xlu0 %2642
    %v2644 = vrcp.pop %v2622
    %v2645 = vrcp.pop %v2625
    %v2646 = vrcp.pop %v2628
    %v2647 = vrcp.pop %v2631
    %v2648 = vrcp.pop %v2634
    %v2649 = vrcp.pop %v2637
    %v2650 = vrcp.pop %v2640
    %v2651 = vrcp.pop %v2643
    %v2652 = vmul.f32 %v2605, %v2644
    %v2653 = vmul.f32 %v2607, %v2645
    %v2654 = vmul.f32 %v2609, %v2646
    %v2655 = vmul.f32 %v2611, %v2647
    %v2656 = vmul.f32 %v2613, %v2648
    %v2657 = vmul.f32 %v2615, %v2649
    %v2658 = vmul.f32 %v2617, %v2650
    %v2659 = vmul.f32 %v2619, %v2651
    %v2661 = vsel %vm380, %v2652, 0
    %v2664 = vsel %vm380, %v2653, 0
    %v2667 = vsel %vm380, %v2654, 0
    %v2670 = vsel %vm380, %v2655, 0
    %v2673 = vsel %vm380, %v2656, 0
    %v2676 = vsel %vm380, %v2657, 0
    %v2679 = vsel %vm380, %v2658, 0
    %v2682 = vsel %vm380, %v2659, 0
    %2684 = vmatpush.msra.mxu0 0.0
    %2685 = vmatpush.msra.mxu0 0.0
    %2686 = vmatpush.msra.mxu0 0.0
    %2687 = vmatpush.msra.mxu0 0.0
    %2688 = vmatpush.msra.mxu0 0.0
    %2689 = vmatpush.msra.mxu0 0.0
    %2690 = vmatpush.msra.mxu0 0.0
    %2691 = vmatpush.msra.mxu0 0.0
    %2692 = vmatpush.msra.mxu0 %v2506
    %2693 = vmatpush.msra.mxu0 %v2505
    %2694 = vmatpush.msra.mxu0 %v2504
    %2695 = vmatpush.msra.mxu0 %v2503
    %2696 = vmatpush.msra.mxu0 %v2502
    %2697 = vmatpush.msra.mxu0 %v2501
    %2698 = vmatpush.msra.mxu0 %v2500
    %2699 = vmatpush.msra.mxu0 %v2499
    %2700 = vmatmul.f32.gmra.mxu0 %v2661
    %v2701 = vpop.f32.mrf.mxu0
    %v2702 = vadd.f32 0.0, %v2701
    %2703 = vmatmul.f32.gmra.mxu0 %v2664
    %v2704 = vpop.f32.mrf.mxu0
    %v2705 = vadd.f32 0.0, %v2704
    %2706 = vmatmul.f32.gmra.mxu0 %v2667
    %v2707 = vpop.f32.mrf.mxu0
    %v2708 = vadd.f32 0.0, %v2707
    %2709 = vmatmul.f32.gmra.mxu0 %v2670
    %v2710 = vpop.f32.mrf.mxu0
    %v2711 = vadd.f32 0.0, %v2710
    %2712 = vmatmul.f32.gmra.mxu0 %v2673
    %v2713 = vpop.f32.mrf.mxu0
    %v2714 = vadd.f32 0.0, %v2713
    %2715 = vmatmul.f32.gmra.mxu0 %v2676
    %v2716 = vpop.f32.mrf.mxu0
    %v2717 = vadd.f32 0.0, %v2716
    %2718 = vmatmul.f32.gmra.mxu0 %v2679
    %v2719 = vpop.f32.mrf.mxu0
    %v2720 = vadd.f32 0.0, %v2719
    %2721 = vmatmul.f32.gmra.mxu0 %v2682
    %v2722 = vpop.f32.mrf.mxu0
    %v2723 = vadd.f32 0.0, %v2722
    %2724 = vdwg.mxu0
    %v2725 = vadd.f32 %v2468, %v2702
    %v2726 = vadd.f32 %v2471, %v2705
    %v2727 = vadd.f32 %v2474, %v2708
    %v2728 = vadd.f32 %v2477, %v2711
    %v2729 = vadd.f32 %v2480, %v2714
    %v2730 = vadd.f32 %v2483, %v2717
    %v2731 = vadd.f32 %v2486, %v2720
    %v2732 = vadd.f32 %v2489, %v2723
    %v2733 = vsel %vm76, %v1936, 0.0
    %v2734 = vsel %vm76, %v1939, 0.0
    %v2735 = vsel %vm76, %v1942, 0.0
    %v2736 = vsel %vm76, %v1945, 0.0
    %v2737 = vsel %vm76, %v1948, 0.0
    %v2738 = vsel %vm76, %v1951, 0.0
    %v2739 = vsel %vm76, %v1954, 0.0
    %v2740 = vsel %vm76, %v1957, 0.0
    %v2741 = vsel %vm76, %v1976, 0.0
    %v2742 = vsel %vm76, %v1978, 0.0
    %v2743 = vsel %vm76, %v1980, 0.0
    %v2744 = vsel %vm76, %v1982, 0.0
    %v2745 = vsel %vm76, %v1984, 0.0
    %v2746 = vsel %vm76, %v1986, 0.0
    %v2747 = vsel %vm76, %v1988, 0.0
    %v2748 = vsel %vm76, %v1990, 0.0
    %v2750 = vsel %vm169, %v2733, 0
    %v2753 = vsel %vm169, %v2734, 0
    %v2756 = vsel %vm169, %v2735, 0
    %v2759 = vsel %vm169, %v2736, 0
    %v2762 = vsel %vm169, %v2737, 0
    %v2765 = vsel %vm169, %v2738, 0
    %v2768 = vsel %vm169, %v2739, 0
    %v2771 = vsel %vm169, %v2740, 0
    %2773 = vmatpush.xpose.msra.mxu0 0.0
    %2774 = vmatpush.xpose.msra.mxu0 0.0
    %2775 = vmatpush.xpose.msra.mxu0 0.0
    %2776 = vmatpush.xpose.msra.mxu0 0.0
    %2777 = vmatpush.xpose.msra.mxu0 0.0
    %2778 = vmatpush.xpose.msra.mxu0 0.0
    %2779 = vmatpush.xpose.msra.mxu0 0.0
    %2780 = vmatpush.xpose.msra.mxu0 0.0
    %2781 = vmatpush.xpose.msra.mxu0 %v2061
    %2782 = vmatpush.xpose.msra.mxu0 %v2059
    %2783 = vmatpush.xpose.msra.mxu0 %v2057
    %2784 = vmatpush.xpose.msra.mxu0 %v2055
    %2785 = vmatpush.xpose.msra.mxu0 %v2053
    %2786 = vmatpush.xpose.msra.mxu0 %v2051
    %2787 = vmatpush.xpose.msra.mxu0 %v2049
    %2788 = vmatpush.xpose.msra.mxu0 %v2047
    %2789 = vmatmul.f32.gmra.mxu0 %v2750
    %v2790 = vpop.f32.mrf.mxu0
    %v2791 = vadd.f32 %v54, %v2790
    %2792 = vmatmul.f32.gmra.mxu0 %v2753
    %v2793 = vpop.f32.mrf.mxu0
    %v2794 = vadd.f32 %v55, %v2793
    %2795 = vmatmul.f32.gmra.mxu0 %v2756
    %v2796 = vpop.f32.mrf.mxu0
    %v2797 = vadd.f32 %v56, %v2796
    %2798 = vmatmul.f32.gmra.mxu0 %v2759
    %v2799 = vpop.f32.mrf.mxu0
    %v2800 = vadd.f32 %v57, %v2799
    %2801 = vmatmul.f32.gmra.mxu0 %v2762
    %v2802 = vpop.f32.mrf.mxu0
    %v2803 = vadd.f32 %v58, %v2802
    %2804 = vmatmul.f32.gmra.mxu0 %v2765
    %v2805 = vpop.f32.mrf.mxu0
    %v2806 = vadd.f32 %v59, %v2805
    %2807 = vmatmul.f32.gmra.mxu0 %v2768
    %v2808 = vpop.f32.mrf.mxu0
    %v2809 = vadd.f32 %v60, %v2808
    %2810 = vmatmul.f32.gmra.mxu0 %v2771
    %v2811 = vpop.f32.mrf.mxu0
    %v2812 = vadd.f32 %v61, %v2811
    %2813 = vdwg.mxu0
    %v2814 = vsel %vm380, %v2791, -inf
    %2815 = vmax.xlane.f32.xlu0 %v2814
    %v2816 = vpop.xlane.xlu0 %2815
    %v2817 = vsel %vm380, %v2794, -inf
    %2818 = vmax.xlane.f32.xlu0 %v2817
    %v2819 = vpop.xlane.xlu0 %2818
    %v2820 = vsel %vm380, %v2797, -inf
    %2821 = vmax.xlane.f32.xlu0 %v2820
    %v2822 = vpop.xlane.xlu0 %2821
    %v2823 = vsel %vm380, %v2800, -inf
    %2824 = vmax.xlane.f32.xlu0 %v2823
    %v2825 = vpop.xlane.xlu0 %2824
    %v2826 = vsel %vm380, %v2803, -inf
    %2827 = vmax.xlane.f32.xlu0 %v2826
    %v2828 = vpop.xlane.xlu0 %2827
    %v2829 = vsel %vm380, %v2806, -inf
    %2830 = vmax.xlane.f32.xlu0 %v2829
    %v2831 = vpop.xlane.xlu0 %2830
    %v2832 = vsel %vm380, %v2809, -inf
    %2833 = vmax.xlane.f32.xlu0 %v2832
    %v2834 = vpop.xlane.xlu0 %2833
    %v2835 = vsel %vm380, %v2812, -inf
    %2836 = vmax.xlane.f32.xlu0 %v2835
    %v2837 = vpop.xlane.xlu0 %2836
    %v2838 = vsub.f32 %v2791, %v2816
    %v2839 = vsub.f32 %v2794, %v2819
    %v2840 = vsub.f32 %v2797, %v2822
    %v2841 = vsub.f32 %v2800, %v2825
    %v2842 = vsub.f32 %v2803, %v2828
    %v2843 = vsub.f32 %v2806, %v2831
    %v2844 = vsub.f32 %v2809, %v2834
    %v2845 = vsub.f32 %v2812, %v2837
    %v2846 = vmul.f32 %v2838, 1.442695
    %v2847 = vpow.pop %v2846
    %v2848 = vmul.f32 %v2839, 1.442695
    %v2849 = vpow.pop %v2848
    %v2850 = vmul.f32 %v2840, 1.442695
    %v2851 = vpow.pop %v2850
    %v2852 = vmul.f32 %v2841, 1.442695
    %v2853 = vpow.pop %v2852
    %v2854 = vmul.f32 %v2842, 1.442695
    %v2855 = vpow.pop %v2854
    %v2856 = vmul.f32 %v2843, 1.442695
    %v2857 = vpow.pop %v2856
    %v2858 = vmul.f32 %v2844, 1.442695
    %v2859 = vpow.pop %v2858
    %v2860 = vmul.f32 %v2845, 1.442695
    %v2861 = vpow.pop %v2860
    %v2862 = vsel %vm380, %v2847, 0.0
    %2863 = vadd.xlane.f32.xlu0 %v2862
    %v2864 = vpop.xlane.xlu0 %2863
    %v2865 = vsel %vm380, %v2849, 0.0
    %2866 = vadd.xlane.f32.xlu0 %v2865
    %v2867 = vpop.xlane.xlu0 %2866
    %v2868 = vsel %vm380, %v2851, 0.0
    %2869 = vadd.xlane.f32.xlu0 %v2868
    %v2870 = vpop.xlane.xlu0 %2869
    %v2871 = vsel %vm380, %v2853, 0.0
    %2872 = vadd.xlane.f32.xlu0 %v2871
    %v2873 = vpop.xlane.xlu0 %2872
    %v2874 = vsel %vm380, %v2855, 0.0
    %2875 = vadd.xlane.f32.xlu0 %v2874
    %v2876 = vpop.xlane.xlu0 %2875
    %v2877 = vsel %vm380, %v2857, 0.0
    %2878 = vadd.xlane.f32.xlu0 %v2877
    %v2879 = vpop.xlane.xlu0 %2878
    %v2880 = vsel %vm380, %v2859, 0.0
    %2881 = vadd.xlane.f32.xlu0 %v2880
    %v2882 = vpop.xlane.xlu0 %2881
    %v2883 = vsel %vm380, %v2861, 0.0
    %2884 = vadd.xlane.f32.xlu0 %v2883
    %v2885 = vpop.xlane.xlu0 %2884
    %v2886 = vrcp.pop %v2864
    %v2887 = vrcp.pop %v2867
    %v2888 = vrcp.pop %v2870
    %v2889 = vrcp.pop %v2873
    %v2890 = vrcp.pop %v2876
    %v2891 = vrcp.pop %v2879
    %v2892 = vrcp.pop %v2882
    %v2893 = vrcp.pop %v2885
    %v2894 = vmul.f32 %v2847, %v2886
    %v2895 = vmul.f32 %v2849, %v2887
    %v2896 = vmul.f32 %v2851, %v2888
    %v2897 = vmul.f32 %v2853, %v2889
    %v2898 = vmul.f32 %v2855, %v2890
    %v2899 = vmul.f32 %v2857, %v2891
    %v2900 = vmul.f32 %v2859, %v2892
    %v2901 = vmul.f32 %v2861, %v2893
    %v2903 = vsel %vm380, %v2894, 0
    %v2906 = vsel %vm380, %v2895, 0
    %v2909 = vsel %vm380, %v2896, 0
    %v2912 = vsel %vm380, %v2897, 0
    %v2915 = vsel %vm380, %v2898, 0
    %v2918 = vsel %vm380, %v2899, 0
    %v2921 = vsel %vm380, %v2900, 0
    %v2924 = vsel %vm380, %v2901, 0
    %2926 = vmatpush.msra.mxu0 0.0
    %2927 = vmatpush.msra.mxu0 0.0
    %2928 = vmatpush.msra.mxu0 0.0
    %2929 = vmatpush.msra.mxu0 0.0
    %2930 = vmatpush.msra.mxu0 0.0
    %2931 = vmatpush.msra.mxu0 0.0
    %2932 = vmatpush.msra.mxu0 0.0
    %2933 = vmatpush.msra.mxu0 0.0
    %2934 = vmatpush.msra.mxu0 %v2748
    %2935 = vmatpush.msra.mxu0 %v2747
    %2936 = vmatpush.msra.mxu0 %v2746
    %2937 = vmatpush.msra.mxu0 %v2745
    %2938 = vmatpush.msra.mxu0 %v2744
    %2939 = vmatpush.msra.mxu0 %v2743
    %2940 = vmatpush.msra.mxu0 %v2742
    %2941 = vmatpush.msra.mxu0 %v2741
    %2942 = vmatmul.f32.gmra.mxu0 %v2903
    %v2943 = vpop.f32.mrf.mxu0
    %v2944 = vadd.f32 0.0, %v2943
    %2945 = vmatmul.f32.gmra.mxu0 %v2906
    %v2946 = vpop.f32.mrf.mxu0
    %v2947 = vadd.f32 0.0, %v2946
    %2948 = vmatmul.f32.gmra.mxu0 %v2909
    %v2949 = vpop.f32.mrf.mxu0
    %v2950 = vadd.f32 0.0, %v2949
    %2951 = vmatmul.f32.gmra.mxu0 %v2912
    %v2952 = vpop.f32.mrf.mxu0
    %v2953 = vadd.f32 0.0, %v2952
    %2954 = vmatmul.f32.gmra.mxu0 %v2915
    %v2955 = vpop.f32.mrf.mxu0
    %v2956 = vadd.f32 0.0, %v2955
    %2957 = vmatmul.f32.gmra.mxu0 %v2918
    %v2958 = vpop.f32.mrf.mxu0
    %v2959 = vadd.f32 0.0, %v2958
    %2960 = vmatmul.f32.gmra.mxu0 %v2921
    %v2961 = vpop.f32.mrf.mxu0
    %v2962 = vadd.f32 0.0, %v2961
    %2963 = vmatmul.f32.gmra.mxu0 %v2924
    %v2964 = vpop.f32.mrf.mxu0
    %v2965 = vadd.f32 0.0, %v2964
    %2966 = vdwg.mxu0
    %v2967 = vadd.f32 %v2725, %v2944
    %v2968 = vadd.f32 %v2726, %v2947
    %v2969 = vadd.f32 %v2727, %v2950
    %v2970 = vadd.f32 %v2728, %v2953
    %v2971 = vadd.f32 %v2729, %v2956
    %v2972 = vadd.f32 %v2730, %v2959
    %v2973 = vadd.f32 %v2731, %v2962
    %v2974 = vadd.f32 %v2732, %v2965
    %v2975 = vld [vmem:[#allocation5 + $0x1a1] sm:$0x1]
    %v2976 = vperm.slane %v2975, 0
    %v2978 = vsel %vm169, %v2967, 0
    %v2981 = vsel %vm169, %v2968, 0
    %v2984 = vsel %vm169, %v2969, 0
    %v2987 = vsel %vm169, %v2970, 0
    %v2990 = vsel %vm169, %v2971, 0
    %v2993 = vsel %vm169, %v2972, 0
    %v2996 = vsel %vm169, %v2973, 0
    %v2999 = vsel %vm169, %v2974, 0
    %3001 = vmatpush.msra.mxu0 0.0
    %3002 = vmatpush.msra.mxu0 0.0
    %3003 = vmatpush.msra.mxu0 0.0
    %3004 = vmatpush.msra.mxu0 0.0
    %3005 = vmatpush.msra.mxu0 0.0
    %3006 = vmatpush.msra.mxu0 0.0
    %3007 = vmatpush.msra.mxu0 0.0
    %3008 = vmatpush.msra.mxu0 0.0
    %3009 = vmatpush.msra.mxu0 0.0
    %3010 = vmatpush.msra.mxu0 0.0
    %3011 = vmatpush.msra.mxu0 0.0
    %3012 = vmatpush.msra.mxu0 0.0
    %3013 = vmatpush.msra.mxu0 %v1883
    %3014 = vmatpush.msra.mxu0 %v1882
    %3015 = vmatpush.msra.mxu0 %v1881
    %3016 = vmatpush.msra.mxu0 %v1880
    %3017 = vmatmul.f32.gmra.mxu0 %v2978
    %v3018 = vpop.f32.mrf.mxu0
    %v3019 = vadd.f32 %v2976, %v3018
    %3020 = vmatmul.f32.gmra.mxu0 %v2981
    %v3021 = vpop.f32.mrf.mxu0
    %v3022 = vadd.f32 %v2976, %v3021
    %3023 = vmatmul.f32.gmra.mxu0 %v2984
    %v3024 = vpop.f32.mrf.mxu0
    %v3025 = vadd.f32 %v2976, %v3024
    %3026 = vmatmul.f32.gmra.mxu0 %v2987
    %v3027 = vpop.f32.mrf.mxu0
    %v3028 = vadd.f32 %v2976, %v3027
    %3029 = vmatmul.f32.gmra.mxu0 %v2990
    %v3030 = vpop.f32.mrf.mxu0
    %v3031 = vadd.f32 %v2976, %v3030
    %3032 = vmatmul.f32.gmra.mxu0 %v2993
    %v3033 = vpop.f32.mrf.mxu0
    %v3034 = vadd.f32 %v2976, %v3033
    %3035 = vmatmul.f32.gmra.mxu0 %v2996
    %v3036 = vpop.f32.mrf.mxu0
    %v3037 = vadd.f32 %v2976, %v3036
    %3038 = vmatmul.f32.gmra.mxu0 %v2999
    %v3039 = vpop.f32.mrf.mxu0
    %v3040 = vadd.f32 %v2976, %v3039
    %3041 = vdwg.mxu0
    %v3042 = vadd.f32 %v1868, %v3019
    %v3043 = vadd.f32 %v1869, %v3022
    %v3044 = vadd.f32 %v1870, %v3025
    %v3045 = vadd.f32 %v1871, %v3028
    %v3046 = vadd.f32 %v1872, %v3031
    %v3047 = vadd.f32 %v1873, %v3034
    %v3048 = vadd.f32 %v1874, %v3037
    %v3049 = vadd.f32 %v1875, %v3040
    %v3050 = vld [vmem:[#allocation5 + $0x1a2] sm:$0x1]
    %v3051 = vld [vmem:[#allocation5 + $0x1a3] sm:$0x1]
    %v3052 = vsel %vm169, %v3042, 0.0
    %3053 = vadd.xlane.f32.xlu0 %v3052
    %v3054 = vpop.xlane.xlu0 %3053
    %v3055 = vsel %vm169, %v3043, 0.0
    %3056 = vadd.xlane.f32.xlu0 %v3055
    %v3057 = vpop.xlane.xlu0 %3056
    %v3058 = vsel %vm169, %v3044, 0.0
    %3059 = vadd.xlane.f32.xlu0 %v3058
    %v3060 = vpop.xlane.xlu0 %3059
    %v3061 = vsel %vm169, %v3045, 0.0
    %3062 = vadd.xlane.f32.xlu0 %v3061
    %v3063 = vpop.xlane.xlu0 %3062
    %v3064 = vsel %vm169, %v3046, 0.0
    %3065 = vadd.xlane.f32.xlu0 %v3064
    %v3066 = vpop.xlane.xlu0 %3065
    %v3067 = vsel %vm169, %v3047, 0.0
    %3068 = vadd.xlane.f32.xlu0 %v3067
    %v3069 = vpop.xlane.xlu0 %3068
    %v3070 = vsel %vm169, %v3048, 0.0
    %3071 = vadd.xlane.f32.xlu0 %v3070
    %v3072 = vpop.xlane.xlu0 %3071
    %v3073 = vsel %vm169, %v3049, 0.0
    %3074 = vadd.xlane.f32.xlu0 %v3073
    %v3075 = vpop.xlane.xlu0 %3074
    %v3076 = vmul.f32 %v3054, %v1359
    %v3077 = vmul.f32 %v3057, %v1359
    %v3078 = vmul.f32 %v3060, %v1359
    %v3079 = vmul.f32 %v3063, %v1359
    %v3080 = vmul.f32 %v3066, %v1359
    %v3081 = vmul.f32 %v3069, %v1359
    %v3082 = vmul.f32 %v3072, %v1359
    %v3083 = vmul.f32 %v3075, %v1359
    %v3084 = vsub.f32 %v3042, %v3076
    %v3085 = vsub.f32 %v3043, %v3077
    %v3086 = vsub.f32 %v3044, %v3078
    %v3087 = vsub.f32 %v3045, %v3079
    %v3088 = vsub.f32 %v3046, %v3080
    %v3089 = vsub.f32 %v3047, %v3081
    %v3090 = vsub.f32 %v3048, %v3082
    %v3091 = vsub.f32 %v3049, %v3083
    %v3092 = vmul.f32 %v3084, %v3084
    %v3093 = vmul.f32 %v3085, %v3085
    %v3094 = vmul.f32 %v3086, %v3086
    %v3095 = vmul.f32 %v3087, %v3087
    %v3096 = vmul.f32 %v3088, %v3088
    %v3097 = vmul.f32 %v3089, %v3089
    %v3098 = vmul.f32 %v3090, %v3090
    %v3099 = vmul.f32 %v3091, %v3091
    %v3100 = vsel %vm169, %v3092, 0.0
    %3101 = vadd.xlane.f32.xlu0 %v3100
    %v3102 = vpop.xlane.xlu0 %3101
    %v3103 = vsel %vm169, %v3093, 0.0
    %3104 = vadd.xlane.f32.xlu0 %v3103
    %v3105 = vpop.xlane.xlu0 %3104
    %v3106 = vsel %vm169, %v3094, 0.0
    %3107 = vadd.xlane.f32.xlu0 %v3106
    %v3108 = vpop.xlane.xlu0 %3107
    %v3109 = vsel %vm169, %v3095, 0.0
    %3110 = vadd.xlane.f32.xlu0 %v3109
    %v3111 = vpop.xlane.xlu0 %3110
    %v3112 = vsel %vm169, %v3096, 0.0
    %3113 = vadd.xlane.f32.xlu0 %v3112
    %v3114 = vpop.xlane.xlu0 %3113
    %v3115 = vsel %vm169, %v3097, 0.0
    %3116 = vadd.xlane.f32.xlu0 %v3115
    %v3117 = vpop.xlane.xlu0 %3116
    %v3118 = vsel %vm169, %v3098, 0.0
    %3119 = vadd.xlane.f32.xlu0 %v3118
    %v3120 = vpop.xlane.xlu0 %3119
    %v3121 = vsel %vm169, %v3099, 0.0
    %3122 = vadd.xlane.f32.xlu0 %v3121
    %v3123 = vpop.xlane.xlu0 %3122
    %v3124 = vmul.f32 %v3102, %v1359
    %v3125 = vmul.f32 %v3105, %v1359
    %v3126 = vmul.f32 %v3108, %v1359
    %v3127 = vmul.f32 %v3111, %v1359
    %v3128 = vmul.f32 %v3114, %v1359
    %v3129 = vmul.f32 %v3117, %v1359
    %v3130 = vmul.f32 %v3120, %v1359
    %v3131 = vmul.f32 %v3123, %v1359
    %v3132 = vadd.f32 %v3124, 1e-05
    %v3133 = vadd.f32 %v3125, 1e-05
    %v3134 = vadd.f32 %v3126, 1e-05
    %v3135 = vadd.f32 %v3127, 1e-05
    %v3136 = vadd.f32 %v3128, 1e-05
    %v3137 = vadd.f32 %v3129, 1e-05
    %v3138 = vadd.f32 %v3130, 1e-05
    %v3139 = vadd.f32 %v3131, 1e-05
    %v3140 = vrsqrt.pop %v3132
    %v3141 = vmul.f32 %v3140, %v3132
    %v3142 = vmul.f32 %v3141, %v3140
    %v3143 = vmul.f32 0.5, %v3142
    %v3144 = vsub.f32 1.5, %v3143
    %v3145 = vmul.f32 %v3140, %v3144
    %vm3146 = vweird.f32 %v3132
    %vm3147 = vweird.f32 %v3140
    %vm3148 = vmor %vm3146, %vm3147
    %v3149 = vsel %vm3148, %v3140, %v3145
    %v3150 = vrsqrt.pop %v3133
    %v3151 = vmul.f32 %v3150, %v3133
    %v3152 = vmul.f32 %v3151, %v3150
    %v3153 = vmul.f32 0.5, %v3152
    %v3154 = vsub.f32 1.5, %v3153
    %v3155 = vmul.f32 %v3150, %v3154
    %vm3156 = vweird.f32 %v3133
    %vm3157 = vweird.f32 %v3150
    %vm3158 = vmor %vm3156, %vm3157
    %v3159 = vsel %vm3158, %v3150, %v3155
    %v3160 = vrsqrt.pop %v3134
    %v3161 = vmul.f32 %v3160, %v3134
    %v3162 = vmul.f32 %v3161, %v3160
    %v3163 = vmul.f32 0.5, %v3162
    %v3164 = vsub.f32 1.5, %v3163
    %v3165 = vmul.f32 %v3160, %v3164
    %vm3166 = vweird.f32 %v3134
    %vm3167 = vweird.f32 %v3160
    %vm3168 = vmor %vm3166, %vm3167
    %v3169 = vsel %vm3168, %v3160, %v3165
    %v3170 = vrsqrt.pop %v3135
    %v3171 = vmul.f32 %v3170, %v3135
    %v3172 = vmul.f32 %v3171, %v3170
    %v3173 = vmul.f32 0.5, %v3172
    %v3174 = vsub.f32 1.5, %v3173
    %v3175 = vmul.f32 %v3170, %v3174
    %vm3176 = vweird.f32 %v3135
    %vm3177 = vweird.f32 %v3170
    %vm3178 = vmor %vm3176, %vm3177
    %v3179 = vsel %vm3178, %v3170, %v3175
    %v3180 = vrsqrt.pop %v3136
    %v3181 = vmul.f32 %v3180, %v3136
    %v3182 = vmul.f32 %v3181, %v3180
    %v3183 = vmul.f32 0.5, %v3182
    %v3184 = vsub.f32 1.5, %v3183
    %v3185 = vmul.f32 %v3180, %v3184
    %vm3186 = vweird.f32 %v3136
    %vm3187 = vweird.f32 %v3180
    %vm3188 = vmor %vm3186, %vm3187
    %v3189 = vsel %vm3188, %v3180, %v3185
    %v3190 = vrsqrt.pop %v3137
    %v3191 = vmul.f32 %v3190, %v3137
    %v3192 = vmul.f32 %v3191, %v3190
    %v3193 = vmul.f32 0.5, %v3192
    %v3194 = vsub.f32 1.5, %v3193
    %v3195 = vmul.f32 %v3190, %v3194
    %vm3196 = vweird.f32 %v3137
    %vm3197 = vweird.f32 %v3190
    %vm3198 = vmor %vm3196, %vm3197
    %v3199 = vsel %vm3198, %v3190, %v3195
    %v3200 = vrsqrt.pop %v3138
    %v3201 = vmul.f32 %v3200, %v3138
    %v3202 = vmul.f32 %v3201, %v3200
    %v3203 = vmul.f32 0.5, %v3202
    %v3204 = vsub.f32 1.5, %v3203
    %v3205 = vmul.f32 %v3200, %v3204
    %vm3206 = vweird.f32 %v3138
    %vm3207 = vweird.f32 %v3200
    %vm3208 = vmor %vm3206, %vm3207
    %v3209 = vsel %vm3208, %v3200, %v3205
    %v3210 = vrsqrt.pop %v3139
    %v3211 = vmul.f32 %v3210, %v3139
    %v3212 = vmul.f32 %v3211, %v3210
    %v3213 = vmul.f32 0.5, %v3212
    %v3214 = vsub.f32 1.5, %v3213
    %v3215 = vmul.f32 %v3210, %v3214
    %vm3216 = vweird.f32 %v3139
    %vm3217 = vweird.f32 %v3210
    %vm3218 = vmor %vm3216, %vm3217
    %v3219 = vsel %vm3218, %v3210, %v3215
    %v3220 = vmul.f32 %v3084, %v3149
    %v3221 = vmul.f32 %v3085, %v3159
    %v3222 = vmul.f32 %v3086, %v3169
    %v3223 = vmul.f32 %v3087, %v3179
    %v3224 = vmul.f32 %v3088, %v3189
    %v3225 = vmul.f32 %v3089, %v3199
    %v3226 = vmul.f32 %v3090, %v3209
    %v3227 = vmul.f32 %v3091, %v3219
    %v3228 = vperm.slane %v3050, 0
    %v3229 = vmul.f32 %v3220, %v3228
    %v3230 = vmul.f32 %v3221, %v3228
    %v3231 = vmul.f32 %v3222, %v3228
    %v3232 = vmul.f32 %v3223, %v3228
    %v3233 = vmul.f32 %v3224, %v3228
    %v3234 = vmul.f32 %v3225, %v3228
    %v3235 = vmul.f32 %v3226, %v3228
    %v3236 = vmul.f32 %v3227, %v3228
    %v3237 = vperm.slane %v3051, 0
    %v3238 = vadd.f32 %v3229, %v3237
    %v3239 = vadd.f32 %v3230, %v3237
    %v3240 = vadd.f32 %v3231, %v3237
    %v3241 = vadd.f32 %v3232, %v3237
    %v3242 = vadd.f32 %v3233, %v3237
    %v3243 = vadd.f32 %v3234, %v3237
    %v3244 = vadd.f32 %v3235, %v3237
    %v3245 = vadd.f32 %v3236, %v3237
    %v3246 = vld [vmem:[#allocation5 + $0x1a6] sm:$0x1]
    %v3247 = vperm.slane %v3246, 0
    %v3249 = vsel %vm169, %v3238, 0
    %v3252 = vsel %vm169, %v3239, 0
    %v3255 = vsel %vm169, %v3240, 0
    %v3258 = vsel %vm169, %v3241, 0
    %v3261 = vsel %vm169, %v3242, 0
    %v3264 = vsel %vm169, %v3243, 0
    %v3267 = vsel %vm169, %v3244, 0
    %v3270 = vsel %vm169, %v3245, 0
    %3272 = vmatpush.msra.mxu0 0.0
    %3273 = vmatpush.msra.mxu0 0.0
    %3274 = vmatpush.msra.mxu0 0.0
    %3275 = vmatpush.msra.mxu0 0.0
    %3276 = vmatpush.msra.mxu0 0.0
    %3277 = vmatpush.msra.mxu0 0.0
    %3278 = vmatpush.msra.mxu0 0.0
    %3279 = vmatpush.msra.mxu0 0.0
    %3280 = vmatpush.msra.mxu0 0.0
    %3281 = vmatpush.msra.mxu0 0.0
    %3282 = vmatpush.msra.mxu0 0.0
    %3283 = vmatpush.msra.mxu0 0.0
    %3284 = vmatpush.msra.mxu0 %v1887
    %3285 = vmatpush.msra.mxu0 %v1886
    %3286 = vmatpush.msra.mxu0 %v1885
    %3287 = vmatpush.msra.mxu0 %v1884
    %3288 = vmatmul.f32.gmra.mxu0 %v3249
    %v3289 = vpop.f32.mrf.mxu0
    %v3290 = vadd.f32 %v3247, %v3289
    %3291 = vmatmul.f32.gmra.mxu0 %v3252
    %v3292 = vpop.f32.mrf.mxu0
    %v3293 = vadd.f32 %v3247, %v3292
    %3294 = vmatmul.f32.gmra.mxu0 %v3255
    %v3295 = vpop.f32.mrf.mxu0
    %v3296 = vadd.f32 %v3247, %v3295
    %3297 = vmatmul.f32.gmra.mxu0 %v3258
    %v3298 = vpop.f32.mrf.mxu0
    %v3299 = vadd.f32 %v3247, %v3298
    %3300 = vmatmul.f32.gmra.mxu0 %v3261
    %v3301 = vpop.f32.mrf.mxu0
    %v3302 = vadd.f32 %v3247, %v3301
    %3303 = vmatmul.f32.gmra.mxu0 %v3264
    %v3304 = vpop.f32.mrf.mxu0
    %v3305 = vadd.f32 %v3247, %v3304
    %3306 = vmatmul.f32.gmra.mxu0 %v3267
    %v3307 = vpop.f32.mrf.mxu0
    %v3308 = vadd.f32 %v3247, %v3307
    %3309 = vmatmul.f32.gmra.mxu0 %v3270
    %v3310 = vpop.f32.mrf.mxu0
    %v3311 = vadd.f32 %v3247, %v3310
    %3312 = vdwg.mxu0
    %v3313 = vmax.f32 %v3290, 0.0
    %v3314 = vmax.f32 %v3293, 0.0
    %v3315 = vmax.f32 %v3296, 0.0
    %v3316 = vmax.f32 %v3299, 0.0
    %v3317 = vmax.f32 %v3302, 0.0
    %v3318 = vmax.f32 %v3305, 0.0
    %v3319 = vmax.f32 %v3308, 0.0
    %v3320 = vmax.f32 %v3311, 0.0
    %v3321 = vld [vmem:[#allocation5 + $0x1a7] sm:$0x1]
    %v3322 = vperm.slane %v3321, 0
    %v3324 = vsel %vm169, %v3313, 0
    %v3327 = vsel %vm169, %v3314, 0
    %v3330 = vsel %vm169, %v3315, 0
    %v3333 = vsel %vm169, %v3316, 0
    %v3336 = vsel %vm169, %v3317, 0
    %v3339 = vsel %vm169, %v3318, 0
    %v3342 = vsel %vm169, %v3319, 0
    %v3345 = vsel %vm169, %v3320, 0
    %3347 = vmatpush.msra.mxu0 0.0
    %3348 = vmatpush.msra.mxu0 0.0
    %3349 = vmatpush.msra.mxu0 0.0
    %3350 = vmatpush.msra.mxu0 0.0
    %3351 = vmatpush.msra.mxu0 0.0
    %3352 = vmatpush.msra.mxu0 0.0
    %3353 = vmatpush.msra.mxu0 0.0
    %3354 = vmatpush.msra.mxu0 0.0
    %3355 = vmatpush.msra.mxu0 0.0
    %3356 = vmatpush.msra.mxu0 0.0
    %3357 = vmatpush.msra.mxu0 0.0
    %3358 = vmatpush.msra.mxu0 0.0
    %3359 = vmatpush.msra.mxu0 %v1891
    %3360 = vmatpush.msra.mxu0 %v1890
    %3361 = vmatpush.msra.mxu0 %v1889
    %3362 = vmatpush.msra.mxu0 %v1888
    %3363 = vmatmul.f32.gmra.mxu0 %v3324
    %v3364 = vpop.f32.mrf.mxu0
    %v3365 = vadd.f32 %v3322, %v3364
    %3366 = vmatmul.f32.gmra.mxu0 %v3327
    %v3367 = vpop.f32.mrf.mxu0
    %v3368 = vadd.f32 %v3322, %v3367
    %3369 = vmatmul.f32.gmra.mxu0 %v3330
    %v3370 = vpop.f32.mrf.mxu0
    %v3371 = vadd.f32 %v3322, %v3370
    %3372 = vmatmul.f32.gmra.mxu0 %v3333
    %v3373 = vpop.f32.mrf.mxu0
    %v3374 = vadd.f32 %v3322, %v3373
    %3375 = vmatmul.f32.gmra.mxu0 %v3336
    %v3376 = vpop.f32.mrf.mxu0
    %v3377 = vadd.f32 %v3322, %v3376
    %3378 = vmatmul.f32.gmra.mxu0 %v3339
    %v3379 = vpop.f32.mrf.mxu0
    %v3380 = vadd.f32 %v3322, %v3379
    %3381 = vmatmul.f32.gmra.mxu0 %v3342
    %v3382 = vpop.f32.mrf.mxu0
    %v3383 = vadd.f32 %v3322, %v3382
    %3384 = vmatmul.f32.gmra.mxu0 %v3345
    %v3385 = vpop.f32.mrf.mxu0
    %v3386 = vadd.f32 %v3322, %v3385
    %3387 = vdwg.mxu0
    %v3388 = vadd.f32 %v3238, %v3365
    %v3389 = vadd.f32 %v3239, %v3368
    %v3390 = vadd.f32 %v3240, %v3371
    %v3391 = vadd.f32 %v3241, %v3374
    %v3392 = vadd.f32 %v3242, %v3377
    %v3393 = vadd.f32 %v3243, %v3380
    %v3394 = vadd.f32 %v3244, %v3383
    %v3395 = vadd.f32 %v3245, %v3386
    %v3396 = vld [vmem:[#allocation5 + $0x1a4] sm:$0x1]
    %v3397 = vld [vmem:[#allocation5 + $0x1a5] sm:$0x1]
    %v3398 = vsel %vm169, %v3388, 0.0
    %3399 = vadd.xlane.f32.xlu0 %v3398
    %v3400 = vpop.xlane.xlu0 %3399
    %v3401 = vsel %vm169, %v3389, 0.0
    %3402 = vadd.xlane.f32.xlu0 %v3401
    %v3403 = vpop.xlane.xlu0 %3402
    %v3404 = vsel %vm169, %v3390, 0.0
    %3405 = vadd.xlane.f32.xlu0 %v3404
    %v3406 = vpop.xlane.xlu0 %3405
    %v3407 = vsel %vm169, %v3391, 0.0
    %3408 = vadd.xlane.f32.xlu0 %v3407
    %v3409 = vpop.xlane.xlu0 %3408
    %v3410 = vsel %vm169, %v3392, 0.0
    %3411 = vadd.xlane.f32.xlu0 %v3410
    %v3412 = vpop.xlane.xlu0 %3411
    %v3413 = vsel %vm169, %v3393, 0.0
    %3414 = vadd.xlane.f32.xlu0 %v3413
    %v3415 = vpop.xlane.xlu0 %3414
    %v3416 = vsel %vm169, %v3394, 0.0
    %3417 = vadd.xlane.f32.xlu0 %v3416
    %v3418 = vpop.xlane.xlu0 %3417
    %v3419 = vsel %vm169, %v3395, 0.0
    %3420 = vadd.xlane.f32.xlu0 %v3419
    %v3421 = vpop.xlane.xlu0 %3420
    %v3422 = vmul.f32 %v3400, %v1359
    %v3423 = vmul.f32 %v3403, %v1359
    %v3424 = vmul.f32 %v3406, %v1359
    %v3425 = vmul.f32 %v3409, %v1359
    %v3426 = vmul.f32 %v3412, %v1359
    %v3427 = vmul.f32 %v3415, %v1359
    %v3428 = vmul.f32 %v3418, %v1359
    %v3429 = vmul.f32 %v3421, %v1359
    %v3430 = vsub.f32 %v3388, %v3422
    %v3431 = vsub.f32 %v3389, %v3423
    %v3432 = vsub.f32 %v3390, %v3424
    %v3433 = vsub.f32 %v3391, %v3425
    %v3434 = vsub.f32 %v3392, %v3426
    %v3435 = vsub.f32 %v3393, %v3427
    %v3436 = vsub.f32 %v3394, %v3428
    %v3437 = vsub.f32 %v3395, %v3429
    %v3438 = vmul.f32 %v3430, %v3430
    %v3439 = vmul.f32 %v3431, %v3431
    %v3440 = vmul.f32 %v3432, %v3432
    %v3441 = vmul.f32 %v3433, %v3433
    %v3442 = vmul.f32 %v3434, %v3434
    %v3443 = vmul.f32 %v3435, %v3435
    %v3444 = vmul.f32 %v3436, %v3436
    %v3445 = vmul.f32 %v3437, %v3437
    %v3446 = vsel %vm169, %v3438, 0.0
    %3447 = vadd.xlane.f32.xlu0 %v3446
    %v3448 = vpop.xlane.xlu0 %3447
    %v3449 = vsel %vm169, %v3439, 0.0
    %3450 = vadd.xlane.f32.xlu0 %v3449
    %v3451 = vpop.xlane.xlu0 %3450
    %v3452 = vsel %vm169, %v3440, 0.0
    %3453 = vadd.xlane.f32.xlu0 %v3452
    %v3454 = vpop.xlane.xlu0 %3453
    %v3455 = vsel %vm169, %v3441, 0.0
    %3456 = vadd.xlane.f32.xlu0 %v3455
    %v3457 = vpop.xlane.xlu0 %3456
    %v3458 = vsel %vm169, %v3442, 0.0
    %3459 = vadd.xlane.f32.xlu0 %v3458
    %v3460 = vpop.xlane.xlu0 %3459
    %v3461 = vsel %vm169, %v3443, 0.0
    %3462 = vadd.xlane.f32.xlu0 %v3461
    %v3463 = vpop.xlane.xlu0 %3462
    %v3464 = vsel %vm169, %v3444, 0.0
    %3465 = vadd.xlane.f32.xlu0 %v3464
    %v3466 = vpop.xlane.xlu0 %3465
    %v3467 = vsel %vm169, %v3445, 0.0
    %3468 = vadd.xlane.f32.xlu0 %v3467
    %v3469 = vpop.xlane.xlu0 %3468
    %v3470 = vmul.f32 %v3448, %v1359
    %v3471 = vmul.f32 %v3451, %v1359
    %v3472 = vmul.f32 %v3454, %v1359
    %v3473 = vmul.f32 %v3457, %v1359
    %v3474 = vmul.f32 %v3460, %v1359
    %v3475 = vmul.f32 %v3463, %v1359
    %v3476 = vmul.f32 %v3466, %v1359
    %v3477 = vmul.f32 %v3469, %v1359
    %v3478 = vadd.f32 %v3470, 1e-05
    %v3479 = vadd.f32 %v3471, 1e-05
    %v3480 = vadd.f32 %v3472, 1e-05
    %v3481 = vadd.f32 %v3473, 1e-05
    %v3482 = vadd.f32 %v3474, 1e-05
    %v3483 = vadd.f32 %v3475, 1e-05
    %v3484 = vadd.f32 %v3476, 1e-05
    %v3485 = vadd.f32 %v3477, 1e-05
    %v3486 = vrsqrt.pop %v3478
    %v3487 = vmul.f32 %v3486, %v3478
    %v3488 = vmul.f32 %v3487, %v3486
    %v3489 = vmul.f32 0.5, %v3488
    %v3490 = vsub.f32 1.5, %v3489
    %v3491 = vmul.f32 %v3486, %v3490
    %vm3492 = vweird.f32 %v3478
    %vm3493 = vweird.f32 %v3486
    %vm3494 = vmor %vm3492, %vm3493
    %v3495 = vsel %vm3494, %v3486, %v3491
    %v3496 = vrsqrt.pop %v3479
    %v3497 = vmul.f32 %v3496, %v3479
    %v3498 = vmul.f32 %v3497, %v3496
    %v3499 = vmul.f32 0.5, %v3498
    %v3500 = vsub.f32 1.5, %v3499
    %v3501 = vmul.f32 %v3496, %v3500
    %vm3502 = vweird.f32 %v3479
    %vm3503 = vweird.f32 %v3496
    %vm3504 = vmor %vm3502, %vm3503
    %v3505 = vsel %vm3504, %v3496, %v3501
    %v3506 = vrsqrt.pop %v3480
    %v3507 = vmul.f32 %v3506, %v3480
    %v3508 = vmul.f32 %v3507, %v3506
    %v3509 = vmul.f32 0.5, %v3508
    %v3510 = vsub.f32 1.5, %v3509
    %v3511 = vmul.f32 %v3506, %v3510
    %vm3512 = vweird.f32 %v3480
    %vm3513 = vweird.f32 %v3506
    %vm3514 = vmor %vm3512, %vm3513
    %v3515 = vsel %vm3514, %v3506, %v3511
    %v3516 = vrsqrt.pop %v3481
    %v3517 = vmul.f32 %v3516, %v3481
    %v3518 = vmul.f32 %v3517, %v3516
    %v3519 = vmul.f32 0.5, %v3518
    %v3520 = vsub.f32 1.5, %v3519
    %v3521 = vmul.f32 %v3516, %v3520
    %vm3522 = vweird.f32 %v3481
    %vm3523 = vweird.f32 %v3516
    %vm3524 = vmor %vm3522, %vm3523
    %v3525 = vsel %vm3524, %v3516, %v3521
    %v3526 = vrsqrt.pop %v3482
    %v3527 = vmul.f32 %v3526, %v3482
    %v3528 = vmul.f32 %v3527, %v3526
    %v3529 = vmul.f32 0.5, %v3528
    %v3530 = vsub.f32 1.5, %v3529
    %v3531 = vmul.f32 %v3526, %v3530
    %vm3532 = vweird.f32 %v3482
    %vm3533 = vweird.f32 %v3526
    %vm3534 = vmor %vm3532, %vm3533
    %v3535 = vsel %vm3534, %v3526, %v3531
    %v3536 = vrsqrt.pop %v3483
    %v3537 = vmul.f32 %v3536, %v3483
    %v3538 = vmul.f32 %v3537, %v3536
    %v3539 = vmul.f32 0.5, %v3538
    %v3540 = vsub.f32 1.5, %v3539
    %v3541 = vmul.f32 %v3536, %v3540
    %vm3542 = vweird.f32 %v3483
    %vm3543 = vweird.f32 %v3536
    %vm3544 = vmor %vm3542, %vm3543
    %v3545 = vsel %vm3544, %v3536, %v3541
    %v3546 = vrsqrt.pop %v3484
    %v3547 = vmul.f32 %v3546, %v3484
    %v3548 = vmul.f32 %v3547, %v3546
    %v3549 = vmul.f32 0.5, %v3548
    %v3550 = vsub.f32 1.5, %v3549
    %v3551 = vmul.f32 %v3546, %v3550
    %vm3552 = vweird.f32 %v3484
    %vm3553 = vweird.f32 %v3546
    %vm3554 = vmor %vm3552, %vm3553
    %v3555 = vsel %vm3554, %v3546, %v3551
    %v3556 = vrsqrt.pop %v3485
    %v3557 = vmul.f32 %v3556, %v3485
    %v3558 = vmul.f32 %v3557, %v3556
    %v3559 = vmul.f32 0.5, %v3558
    %v3560 = vsub.f32 1.5, %v3559
    %v3561 = vmul.f32 %v3556, %v3560
    %vm3562 = vweird.f32 %v3485
    %vm3563 = vweird.f32 %v3556
    %vm3564 = vmor %vm3562, %vm3563
    %v3565 = vsel %vm3564, %v3556, %v3561
    %v3566 = vmul.f32 %v3430, %v3495
    %v3567 = vmul.f32 %v3431, %v3505
    %v3568 = vmul.f32 %v3432, %v3515
    %v3569 = vmul.f32 %v3433, %v3525
    %v3570 = vmul.f32 %v3434, %v3535
    %v3571 = vmul.f32 %v3435, %v3545
    %v3572 = vmul.f32 %v3436, %v3555
    %v3573 = vmul.f32 %v3437, %v3565
    %v3574 = vperm.slane %v3396, 0
    %v3575 = vmul.f32 %v3566, %v3574
    %v3576 = vmul.f32 %v3567, %v3574
    %v3577 = vmul.f32 %v3568, %v3574
    %v3578 = vmul.f32 %v3569, %v3574
    %v3579 = vmul.f32 %v3570, %v3574
    %v3580 = vmul.f32 %v3571, %v3574
    %v3581 = vmul.f32 %v3572, %v3574
    %v3582 = vmul.f32 %v3573, %v3574
    %v3583 = vperm.slane %v3397, 0
    %v3584 = vadd.f32 %v3575, %v3583
    %v3585 = vadd.f32 %v3576, %v3583
    %v3586 = vadd.f32 %v3577, %v3583
    %v3587 = vadd.f32 %v3578, %v3583
    %v3588 = vadd.f32 %v3579, %v3583
    %v3589 = vadd.f32 %v3580, %v3583
    %v3590 = vadd.f32 %v3581, %v3583
    %v3591 = vadd.f32 %v3582, %v3583
    %v3592 = vld [vmem:[#allocation5 + $0x1a8] sm:$0x1]
    %v3593 = vperm.slane %v3592, 0
    %v3595 = vsel %vm380, %v62, 0
    %3597 = vmatpush.msra.mxu0 0.0
    %3598 = vmatpush.msra.mxu0 0.0
    %3599 = vmatpush.msra.mxu0 0.0
    %3600 = vmatpush.msra.mxu0 0.0
    %3601 = vmatpush.msra.mxu0 0.0
    %3602 = vmatpush.msra.mxu0 0.0
    %3603 = vmatpush.msra.mxu0 0.0
    %3604 = vmatpush.msra.mxu0 0.0
    %3605 = vmatpush.msra.mxu0 %v3591
    %3606 = vmatpush.msra.mxu0 %v3590
    %3607 = vmatpush.msra.mxu0 %v3589
    %3608 = vmatpush.msra.mxu0 %v3588
    %3609 = vmatpush.msra.mxu0 %v3587
    %3610 = vmatpush.msra.mxu0 %v3586
    %3611 = vmatpush.msra.mxu0 %v3585
    %3612 = vmatpush.msra.mxu0 %v3584
    %3613 = vmatmul.f32.gmra.mxu0 %v3595
    %v3614 = vpop.f32.mrf.mxu0
    %v3615 = vadd.f32 %v3593, %v3614
    %3616 = vdwg.mxu0
    %3617 = vst.msk [vmem:[#allocation7] sm:$0xff] %vm169, %v3615
    // Predicated region
    $region18: #{merging_transformer.1} parent=1 // pred_check
      _
    $region19: #{merging_transformer.1} parent=1 // pred_check_branch
      %3619 = sbr.rel (0) target = $region21
    $region20: #{merging_transformer.1} parent=1 // pred_region
      %3621 = vsyncadd [#allocation4], 0
      %s3623 = sshll.u32 [#allocation7], 4
      %s3624 = int_to_ptr.vmem [resolvable:$true] %s3623
      %s3625 = sshll.u32 %s2, 4
      %s3626 = int_to_ptr.hbm [resolvable:$true] %s3625
      %3628 = dma.vmem_to_hbm [thread:$0]  %s3624, 128, %s3626, [#allocation4]
    $region21: #{merging_transformer.1} parent=1 // pred_fallthru
      _
    // Predicated region
    $region22: #{merging_transformer.1} parent=1 // pred_check
      _
    $region23: #{merging_transformer.1} parent=1 // pred_check_branch
      %3630 = sbr.rel (0) target = $region25
    $region24: #{merging_transformer.1} parent=1 // pred_region
      %3632 = dma.done [#allocation4], 128
    $region25: #{merging_transformer.1} parent=1 // pred_fallthru
      _
    %3633 = vsyncpa [#allocation3], 1
    %3634 = vsyncpa [#allocation6], 1
    %3635 = vsyncpa [#allocation4], 1

</llo_original>
